<compile_context>
chip_gen: v5e
topology: v5e:2x2
jax: 0.10.0
libtpu: 0.0.40
codegen_flags: <defaults>
</compile_context>

<pallas_src>
import functools

import jax
import jax.numpy as jnp
from jax.experimental import pallas as pl
from jax.experimental.pallas import tpu as pltpu


_VMEM_LIMIT = 32 * 1024 * 1024


# ----------------------------------------------------------------------------
# Fused matmul kernel:  out = [relu]((A @ B) * scale + bias)
# A, B are bf16 (MXU-native); accumulation and the affine epilogue are f32.
# ----------------------------------------------------------------------------
def _fused_matmul_kernel(a_ref, b_ref, scale_ref, bias_ref, o_ref, *, relu):
    acc = jnp.dot(a_ref[...], b_ref[...], preferred_element_type=jnp.float32)
    acc = acc * scale_ref[...] + bias_ref[...]          # per-output-column affine
    if relu:
        acc = jnp.maximum(acc, 0.0)
    o_ref[...] = acc.astype(o_ref.dtype)


def fused_matmul(a, b, scale, bias, *, relu, out_dtype=jnp.bfloat16):
    """a: (M, K), b: (K, N), scale/bias: (N,) broadcast over rows."""
    M, K = a.shape
    Kb, N = b.shape
    assert K == Kb
    a = a.astype(jnp.bfloat16)
    b = b.astype(jnp.bfloat16)
    scale = scale.astype(jnp.float32).reshape(1, N)
    bias = bias.astype(jnp.float32).reshape(1, N)
    tm = min(M, 4096)
    tn = min(N, 256)
    assert M % tm == 0 and N % tn == 0
    grid = (M // tm, N // tn)
    return pl.pallas_call(
        functools.partial(_fused_matmul_kernel, relu=relu),
        out_shape=jax.ShapeDtypeStruct((M, N), out_dtype),
        grid=grid,
        in_specs=[
            pl.BlockSpec((tm, K), lambda i, j: (i, 0)),
            pl.BlockSpec((K, tn), lambda i, j: (0, j)),
            pl.BlockSpec((1, tn), lambda i, j: (0, j)),
            pl.BlockSpec((1, tn), lambda i, j: (0, j)),
        ],
        out_specs=pl.BlockSpec((tm, tn), lambda i, j: (i, j)),
        compiler_params=pltpu.CompilerParams(
            dimension_semantics=("parallel", "parallel"),
            vmem_limit_bytes=_VMEM_LIMIT,
        ),
    )(a, b, scale, bias)


# ----------------------------------------------------------------------------
# Direct Conv3x3 (stride 1, pad 1) + BN(eval) + ReLU: 9 shifted-window matmuls
# per (image, Cout-tile).  Activations are kept spatially flattened (N, H*W, C)
# so each 3x3 tap is a contiguous window of the padded flat input.
# ----------------------------------------------------------------------------
def _conv3x3_kernel(x_ref, w_ref, scale_ref, bias_ref, o_ref, *, H, W):
    # x_ref:  (1, H*W + 2*W + 2, Cin)  f32  zero-padded, flattened-spatial
    # w_ref:  (9, Cin, tn)             bf16 (tap index t = kh*3 + kw)
    # scale_ref, bias_ref: (1, tn)     f32
    # o_ref:  (1, H*W, tn)             bf16
    S = H * W
    tn = o_ref.shape[-1]

    col = jax.lax.broadcasted_iota(jnp.int32, (S, 1), 0) % W
    not_left = col > 0            # tap reads column w-1: invalid at w == 0
    not_right = col < (W - 1)     # tap reads column w+1: invalid at w == W-1

    acc = jnp.zeros((S, tn), jnp.float32)
    for kh in range(3):
        for kw in range(3):
            off = kh * W + kw     # window start in the padded flat input
            lhs = x_ref[0, pl.ds(off, S), :].astype(jnp.bfloat16)
            if kw == 0:
                lhs = jnp.where(not_left, lhs, jnp.zeros_like(lhs))
            elif kw == 2:
                lhs = jnp.where(not_right, lhs, jnp.zeros_like(lhs))
            acc = acc + jnp.dot(lhs, w_ref[kh * 3 + kw],
                                preferred_element_type=jnp.float32)

    acc = acc * scale_ref[...] + bias_ref[...]
    acc = jnp.maximum(acc, 0.0)
    o_ref[0, :, :] = acc.astype(o_ref.dtype)


def conv3x3_bn_relu(x, w_hwio, conv_b, bn, H, W, eps=1e-5):
    """x: (N, H*W, Cin) activations; w_hwio: (3, 3, Cin, Cout)."""
    N, S, Cin = x.shape
    assert S == H * W
    Cout = w_hwio.shape[-1]
    tn = min(Cout, 256)
    assert Cout % tn == 0

    # zero-pad the flat spatial dim by W+1 on each side: element (p + kh*W + kw)
    # of the padded array is input pixel (h+kh-1, w+kw-1) for output pixel p.
    xp = jnp.pad(x.astype(jnp.float32), ((0, 0), (W + 1, W + 1), (0, 0)))
    Sp = S + 2 * W + 2
    w9 = w_hwio.reshape(9, Cin, Cout).astype(jnp.bfloat16)
    scale = (bn["gamma"] / jnp.sqrt(bn["var"] + eps)).astype(jnp.float32)
    bias = ((conv_b - bn["mean"]) * scale + bn["beta"]).astype(jnp.float32)

    return pl.pallas_call(
        functools.partial(_conv3x3_kernel, H=H, W=W),
        out_shape=jax.ShapeDtypeStruct((N, S, Cout), jnp.bfloat16),
        grid=(N, Cout // tn),
        in_specs=[
            pl.BlockSpec((1, Sp, Cin), lambda n, j: (n, 0, 0)),
            pl.BlockSpec((9, Cin, tn), lambda n, j: (0, 0, j)),
            pl.BlockSpec((1, tn), lambda n, j: (0, j)),
            pl.BlockSpec((1, tn), lambda n, j: (0, j)),
        ],
        out_specs=pl.BlockSpec((1, S, tn), lambda n, j: (n, 0, j)),
        compiler_params=pltpu.CompilerParams(
            dimension_semantics=("parallel", "parallel"),
            vmem_limit_bytes=_VMEM_LIMIT,
        ),
    )(xp, w9, scale.reshape(1, Cout), bias.reshape(1, Cout))


# ----------------------------------------------------------------------------
# MaxPool 2x2 (stride 2).  Input is read once: the free reshape
# (N, H*W, C) -> (N, H*W/2, 2C) places each horizontal pair in the lane dim.
# ----------------------------------------------------------------------------
def _maxpool2x2_kernel(x_ref, o_ref, *, C, Wo, hb):
    # x_ref: (1, 2*hb*Wo, 2C)  — 2*hb input rows, pairs packed along lanes
    # o_ref: (1, hb*Wo, C)
    for r in range(hb):
        top = x_ref[0, pl.ds((2 * r) * Wo, Wo), :]        # input row 2r
        bot = x_ref[0, pl.ds((2 * r + 1) * Wo, Wo), :]    # input row 2r+1
        m = jnp.maximum(top, bot)                         # (Wo, 2C)
        # fold the horizontal pair (lane halves) together; rolling a 2C-wide
        # value by C maps the second half onto the first either way.
        m = jnp.maximum(m, pltpu.roll(m, shift=C, axis=1))
        o_ref[0, pl.ds(r * Wo, Wo), :] = m[:, :C]


def maxpool2x2(x, H, W):
    """x: (N, H*W, C) -> (N, (H//2)*(W//2), C)."""
    N, S, C = x.shape
    assert S == H * W and H % 2 == 0 and W % 2 == 0
    Ho, Wo = H // 2, W // 2
    hb = min(Ho, 16)
    assert Ho % hb == 0
    y = x.reshape(N, S // 2, 2 * C)       # free reshape, no HBM copy
    return pl.pallas_call(
        functools.partial(_maxpool2x2_kernel, C=C, Wo=Wo, hb=hb),
        out_shape=jax.ShapeDtypeStruct((N, Ho * Wo, C), x.dtype),
        grid=(N, Ho // hb),
        in_specs=[pl.BlockSpec((1, 2 * hb * Wo, 2 * C), lambda n, i: (n, i, 0))],
        out_specs=pl.BlockSpec((1, hb * Wo, C), lambda n, i: (n, i, 0)),
        compiler_params=pltpu.CompilerParams(
            dimension_semantics=("parallel", "parallel"),
            vmem_limit_bytes=_VMEM_LIMIT,
        ),
    )(y)


# ----------------------------------------------------------------------------
# Conv1 (Cin=3) via a tiny im2col (K padded 27 -> 32) + fused matmul.
# ----------------------------------------------------------------------------
def conv1_bn_relu_im2col(x_nhwc, w_hwio, conv_b, bn, eps=1e-5):
    N, H, W, Cin = x_nhwc.shape
    Cout = w_hwio.shape[-1]
    xb = x_nhwc.astype(jnp.bfloat16)
    xp = jnp.pad(xb, ((0, 0), (1, 1), (1, 1), (0, 0)))
    cols = [xp[:, kh:kh + H, kw:kw + W, :] for kh in range(3) for kw in range(3)]
    patches = jnp.concatenate(cols, axis=-1).reshape(N * H * W, 9 * Cin)
    K = 9 * Cin
    Kp = ((K + 31) // 32) * 32
    patches = jnp.pad(patches, ((0, 0), (0, Kp - K)))
    wm = jnp.pad(w_hwio.reshape(K, Cout).astype(jnp.bfloat16),
                 ((0, Kp - K), (0, 0)))
    scale = bn["gamma"] / jnp.sqrt(bn["var"] + eps)
    bias = (conv_b - bn["mean"]) * scale + bn["beta"]
    y = fused_matmul(patches, wm, scale, bias, relu=True, out_dtype=jnp.bfloat16)
    return y.reshape(N, H * W, Cout)


# ----------------------------------------------------------------------------
# Parameters (deterministic synthetic init, shapes from the nn.Module).
# ----------------------------------------------------------------------------
_CONV_DEFS = [(3, 64), (64, 128), (128, 256), (256, 512), (512, 512)]
_FC_DEFS = [(512 * 4 * 4, 1024), (1024, 512), (512, 11)]


def init_params(key):
    params = {"conv": [], "fc": []}
    for cin, cout in _CONV_DEFS:
        key, kw, kb = jax.random.split(key, 3)
        fan_in = 9 * cin
        w = jax.random.normal(kw, (3, 3, cin, cout), jnp.float32) * jnp.sqrt(
            2.0 / fan_in)
        b = jax.random.normal(kb, (cout,), jnp.float32) * 0.01
        bn = dict(
            gamma=jnp.ones((cout,), jnp.float32),
            beta=jnp.zeros((cout,), jnp.float32),
            mean=jnp.zeros((cout,), jnp.float32),
            var=jnp.ones((cout,), jnp.float32),
        )
        params["conv"].append((w, b, bn))
    for fin, fout in _FC_DEFS:
        key, kw, kb = jax.random.split(key, 3)
        w = jax.random.normal(kw, (fin, fout), jnp.float32) * jnp.sqrt(2.0 / fin)
        b = jax.random.normal(kb, (fout,), jnp.float32) * 0.01
        params["fc"].append((w, b))
    return params


# ----------------------------------------------------------------------------
# Full forward pass (mirrors Classifier.forward).
# ----------------------------------------------------------------------------
def classifier_forward(params, x_nchw):
    x = jnp.transpose(x_nchw, (0, 2, 3, 1))          # NCHW -> NHWC
    n, H, W, _ = x.shape

    # conv1 (+BN+ReLU) and pool1
    w1, b1, bn1 = params["conv"][0]
    x = conv1_bn_relu_im2col(x, w1, b1, bn1)          # (N, H*W, 64) bf16
    x = maxpool2x2(x, H, W)
    H, W = H // 2, W // 2

    # conv2..conv5 (+BN+ReLU) and pools, im2col-free direct conv
    for (w, b, bn) in params["conv"][1:]:
        x = conv3x3_bn_relu(x, w, b, bn, H, W)        # (N, H*W, Cout) bf16
        x = maxpool2x2(x, H, W)
        H, W = H // 2, W // 2

    # x.view(N, -1) in PyTorch flattens NCHW channel-major; match that ordering.
    C = x.shape[-1]
    x = x.reshape(n, H, W, C)
    x = jnp.transpose(x, (0, 3, 1, 2)).reshape(n, -1)

    # FC head
    (wf1, bf1), (wf2, bf2), (wf3, bf3) = params["fc"]
    x = fused_matmul(x, wf1, jnp.ones((wf1.shape[1],), jnp.float32), bf1,
                     relu=True, out_dtype=jnp.bfloat16)
    x = fused_matmul(x, wf2, jnp.ones((wf2.shape[1],), jnp.float32), bf2,
                     relu=True, out_dtype=jnp.bfloat16)
    # pad the 11-wide output to 128 lanes for dense stores; slice afterwards.
    n_out = wf3.shape[1]
    npad = 128 - n_out
    w3p = jnp.pad(wf3, ((0, 0), (0, npad)))
    b3p = jnp.pad(bf3, ((0, npad),))
    x = fused_matmul(x, w3p, jnp.ones((128,), jnp.float32), b3p,
                     relu=False, out_dtype=jnp.float32)
    return x[:, :n_out]


if __name__ == "__main__":
    key = jax.random.PRNGKey(0)
    # Input implied by the module: 3 channels, 128x128 spatial (512*4*4 flatten).
    x = jax.random.normal(key, (2, 3, 128, 128), jnp.float32)
    params = init_params(jax.random.PRNGKey(1))
    out = classifier_forward(params, x)
    out = jax.block_until_ready(out)
    assert out.shape == (2, 11), out.shape
    assert bool(jnp.all(jnp.isfinite(out)))
    print("KERNEL_OK")
</pallas_src>

<mosaic_0001>
module attributes {stable_mosaic.version = 11 : i64} {
  func.func @_fused_matmul_kernel(%arg0: i32, %arg1: i32, %arg2: memref<4096x32xbf16, #tpu.memory_space<vmem>>, %arg3: memref<32x64xbf16, #tpu.memory_space<vmem>>, %arg4: memref<1x64xf32, #tpu.memory_space<vmem>>, %arg5: memref<1x64xf32, #tpu.memory_space<vmem>>, %arg6: memref<4096x64xbf16, #tpu.memory_space<vmem>>) attributes {dimension_semantics = [#tpu.dimension_semantics<parallel>, #tpu.dimension_semantics<parallel>], iteration_bounds = array<i64: 8, 1>, scalar_prefetch = 0 : i64, scratch_operands = 0 : i64, tpu.core_type = #tpu.core_type<tc>, window_params = [{transform_indices = @transform_0, window_bounds = array<i64: 4096, 32>}, {transform_indices = @transform_1, window_bounds = array<i64: 32, 64>}, {transform_indices = @transform_2, window_bounds = array<i64: 1, 64>}, {transform_indices = @transform_3, window_bounds = array<i64: 1, 64>}, {transform_indices = @transform_4, window_bounds = array<i64: 4096, 64>}]} {
    %c0 = arith.constant 0 : index
    %c0_0 = arith.constant 0 : index
    %0 = vector.load %arg2[%c0, %c0_0] : memref<4096x32xbf16, #tpu.memory_space<vmem>>, vector<4096x32xbf16>
    %c0_1 = arith.constant 0 : index
    %c0_2 = arith.constant 0 : index
    %1 = vector.load %arg3[%c0_1, %c0_2] : memref<32x64xbf16, #tpu.memory_space<vmem>>, vector<32x64xbf16>
    %cst = arith.constant dense<0.000000e+00> : vector<4096x64xf32>
    %2 = tpu.matmul %0, %1, %cst {dimension_numbers = #tpu.dot_dimension_numbers<[1], [0], [0], [1], [0, 0, 1, 1], [], []>} : vector<4096x32xbf16>, vector<32x64xbf16>, vector<4096x64xf32> -> vector<4096x64xf32>
    %c0_3 = arith.constant 0 : index
    %c0_4 = arith.constant 0 : index
    %3 = vector.load %arg4[%c0_3, %c0_4] : memref<1x64xf32, #tpu.memory_space<vmem>>, vector<1x64xf32>
    %4 = vector.broadcast %3 : vector<1x64xf32> to vector<4096x64xf32>
    %5 = arith.mulf %2, %4 : vector<4096x64xf32>
    %c0_5 = arith.constant 0 : index
    %c0_6 = arith.constant 0 : index
    %6 = vector.load %arg5[%c0_5, %c0_6] : memref<1x64xf32, #tpu.memory_space<vmem>>, vector<1x64xf32>
    %7 = vector.broadcast %6 : vector<1x64xf32> to vector<4096x64xf32>
    %8 = arith.addf %5, %7 : vector<4096x64xf32>
    %cst_7 = arith.constant 0.000000e+00 : f32
    %9 = vector.broadcast %cst_7 : f32 to vector<4096x64xf32>
    %10 = arith.maximumf %8, %9 : vector<4096x64xf32>
    %11 = arith.truncf %10 : vector<4096x64xf32> to vector<4096x64xbf16>
    %c0_8 = arith.constant 0 : index
    %c0_9 = arith.constant 0 : index
    %12 = vector.load %arg6[%c0_8, %c0_9] : memref<4096x64xbf16, #tpu.memory_space<vmem>>, vector<4096x64xbf16>
    tpu.vector_store %arg6[%c0_8, %c0_9], %11 {strides = array<i32>} : memref<4096x64xbf16, #tpu.memory_space<vmem>>, vector<4096x64xbf16>,
    return
  }
  func.func @transform_0(%arg0: i32, %arg1: i32) -> (i32, i32) {
    %c0_i32 = arith.constant 0 : i32
    %c0_i32_0 = arith.constant 0 : i32
    return %arg0, %c0_i32 : i32, i32
  }
  func.func @transform_1(%arg0: i32, %arg1: i32) -> (i32, i32) {
    %c0_i32 = arith.constant 0 : i32
    %c0_i32_0 = arith.constant 0 : i32
    return %c0_i32, %arg1 : i32, i32
  }
  func.func @transform_2(%arg0: i32, %arg1: i32) -> (i32, i32) {
    %c0_i32 = arith.constant 0 : i32
    %c0_i32_0 = arith.constant 0 : i32
    return %c0_i32, %arg1 : i32, i32
  }
  func.func @transform_3(%arg0: i32, %arg1: i32) -> (i32, i32) {
    %c0_i32 = arith.constant 0 : i32
    %c0_i32_0 = arith.constant 0 : i32
    return %c0_i32, %arg1 : i32, i32
  }
  func.func @transform_4(%arg0: i32, %arg1: i32) -> (i32, i32) {
    %c0_i32 = arith.constant 0 : i32
    return %arg0, %arg1 : i32, i32
  }
}

</mosaic_0001>

<llo_original>
// kernel: tpu_custom_call.1
$region0: #{tpu_custom_call.1}
  #allocation0 [shape = 'u32[]', space=smem, size = 0x4, offset = 0x4, fixed_abs, tag = 'smem constant byte address 0x4 - core index']
  #allocation1 [shape = 'u32[72,128]{1,0:T(1,128)}', space=vmem, size = 0x9000, scoped, tag = 'internal scratch']
  %s0 = inlined_call_operand.vmem [shape: bf16[32768,32], index: 0, kind: input, shape index: {}]
  %s1 = inlined_call_operand.vmem [shape: bf16[32,64], index: 1, kind: input, shape index: {}]
  %s2 = inlined_call_operand.vmem [shape: f32[1,64], index: 2, kind: input, shape index: {}]
  %s3 = inlined_call_operand.vmem [shape: f32[1,64], index: 3, kind: input, shape index: {}]
  %s4 = inlined_call_operand.vmem [shape: bf16[32768,64], index: 4, kind: output, shape index: {}]
  %s5 = sld [smem:[#allocation0]]
  $region49: #{tpu_custom_call.1} parent=0
    _
  %s7 = ssub.s32 1, %s5
  %s8 = scalar_select 0, %s7, %s5
  loop: start=0, step=1, limit=10
  $region2: #{tpu_custom_call.1} parent=0 // loop_pre_header
    _
  $region3: #{tpu_custom_call.1} parent=0 // loop_header
    %s10 = sphi 0, %s14
    %p11 = scmp.ge.s32.totalorder %s10, 10
    %s17 = sphi 0, %s29
    %s18 = sphi 0, %s25
    %s19 = sphi 0, %s17
    %s20 = sphi 0, %s18
    %s21 = sphi 0, %s19
    %s22 = sphi 0, %s20
    %s32 = sphi 0, %s34
    %s35 = sphi 0, %s32
    %s36 = sphi 0, %s35
    %s52 = sphi 0, %s36
    %s58 = sphi 0, %s60
    %s61 = sphi 0, %s58
    %s62 = sphi 0, %s61
    %s78 = sphi 0, %s62
    %s84 = sphi 0, %s86
    %s87 = sphi 0, %s84
    %s88 = sphi 0, %s87
    %s104 = sphi 0, %s88
    %s110 = sphi 0, %s112
    %s113 = sphi 0, %s110
    %s114 = sphi 0, %s113
    %s130 = sphi 0, %s114
    %s138 = sphi 0, %s140
    %s141 = sphi 0, %s138
    %s142 = sphi 0, %s141
    %s158 = sphi 0, %s142
  $region4: #{tpu_custom_call.1} parent=0 // loop_header_branch
    %13 = sbr.rel (%p11) target = $region8
  $region5: #{tpu_custom_call.1} parent=0 // loop_body
    %s15 = ssub.s32 %s10, 1
    %s16 = ssub.s32 %s10, 2
    %s23 = sadd.s32 1, %s18
    %p24 = scmp.ge.s32.totalorder %s23, 1
    %s25 = scalar_select %p24, 0, %s23
    %s26 = sadd.s32 1, %s17
    %s27 = scalar_select %p24, %s26, %s17
    %p28 = scmp.ge.s32.totalorder %s27, 8
    %s29 = scalar_select %p28, 0, %s27
    %s30 = ssub.s32 %s17, %s29
    %p31 = scmp.eq.s32.totalorder %s30, 0
    %s33 = sadd.s32 %s32, 1
    %s34 = scalar_select %p31, %s32, %s33
    %p37 = pneg %p31
    %p38 = scmp.eq.s32.totalorder %s10, 7
    %p39 = por %p37, %p38
    %p40 = scmp.ne.s32.totalorder %s32, %s35
    %p41 = scmp.eq.s32.totalorder %s10, 0
    %p42 = por %p40, %p41
    %p43 = scmp.ne.s32.totalorder %s32, %s35
    %p44 = scmp.eq.s32.totalorder %s15, 7
    %p45 = por %p43, %p44
    %p46 = scmp.ne.s32.totalorder %s35, %s36
    %p47 = scmp.eq.s32.totalorder %s15, 0
    %p48 = por %p46, %p47
    %p49 = scmp.ne.s32.totalorder %s35, %s36
    %p50 = scmp.eq.s32.totalorder %s16, 7
    %p51 = por %p49, %p50
    %p53 = scmp.ne.s32.totalorder %s36, %s52
    %p54 = scmp.eq.s32.totalorder %s16, 0
    %p55 = por %p53, %p54
    %s56 = ssub.s32 %s18, %s25
    %p57 = scmp.eq.s32.totalorder %s56, 0
    %s59 = sadd.s32 %s58, 1
    %s60 = scalar_select %p57, %s58, %s59
    %p63 = pneg %p57
    %p64 = scmp.eq.s32.totalorder %s10, 7
    %p65 = por %p63, %p64
    %p66 = scmp.ne.s32.totalorder %s58, %s61
    %p67 = scmp.eq.s32.totalorder %s10, 0
    %p68 = por %p66, %p67
    %p69 = scmp.ne.s32.totalorder %s58, %s61
    %p70 = scmp.eq.s32.totalorder %s15, 7
    %p71 = por %p69, %p70
    %p72 = scmp.ne.s32.totalorder %s61, %s62
    %p73 = scmp.eq.s32.totalorder %s15, 0
    %p74 = por %p72, %p73
    %p75 = scmp.ne.s32.totalorder %s61, %s62
    %p76 = scmp.eq.s32.totalorder %s16, 7
    %p77 = por %p75, %p76
    %p79 = scmp.ne.s32.totalorder %s62, %s78
    %p80 = scmp.eq.s32.totalorder %s16, 0
    %p81 = por %p79, %p80
    %s82 = ssub.s32 %s18, %s25
    %p83 = scmp.eq.s32.totalorder %s82, 0
    %s85 = sadd.s32 %s84, 1
    %s86 = scalar_select %p83, %s84, %s85
    %p89 = pneg %p83
    %p90 = scmp.eq.s32.totalorder %s10, 7
    %p91 = por %p89, %p90
    %p92 = scmp.ne.s32.totalorder %s84, %s87
    %p93 = scmp.eq.s32.totalorder %s10, 0
    %p94 = por %p92, %p93
    %p95 = scmp.ne.s32.totalorder %s84, %s87
    %p96 = scmp.eq.s32.totalorder %s15, 7
    %p97 = por %p95, %p96
    %p98 = scmp.ne.s32.totalorder %s87, %s88
    %p99 = scmp.eq.s32.totalorder %s15, 0
    %p100 = por %p98, %p99
    %p101 = scmp.ne.s32.totalorder %s87, %s88
    %p102 = scmp.eq.s32.totalorder %s16, 7
    %p103 = por %p101, %p102
    %p105 = scmp.ne.s32.totalorder %s88, %s104
    %p106 = scmp.eq.s32.totalorder %s16, 0
    %p107 = por %p105, %p106
    %s108 = ssub.s32 %s18, %s25
    %p109 = scmp.eq.s32.totalorder %s108, 0
    %s111 = sadd.s32 %s110, 1
    %s112 = scalar_select %p109, %s110, %s111
    %p115 = pneg %p109
    %p116 = scmp.eq.s32.totalorder %s10, 7
    %p117 = por %p115, %p116
    %p118 = scmp.ne.s32.totalorder %s110, %s113
    %p119 = scmp.eq.s32.totalorder %s10, 0
    %p120 = por %p118, %p119
    %p121 = scmp.ne.s32.totalorder %s110, %s113
    %p122 = scmp.eq.s32.totalorder %s15, 7
    %p123 = por %p121, %p122
    %p124 = scmp.ne.s32.totalorder %s113, %s114
    %p125 = scmp.eq.s32.totalorder %s15, 0
    %p126 = por %p124, %p125
    %p127 = scmp.ne.s32.totalorder %s113, %s114
    %p128 = scmp.eq.s32.totalorder %s16, 7
    %p129 = por %p127, %p128
    %p131 = scmp.ne.s32.totalorder %s114, %s130
    %p132 = scmp.eq.s32.totalorder %s16, 0
    %p133 = por %p131, %p132
    %s134 = ssub.s32 %s17, %s29
    %s135 = ssub.s32 %s18, %s25
    %s136 = sor.u32 %s134, %s135
    %p137 = scmp.eq.s32.totalorder %s136, 0
    %s139 = sadd.s32 %s138, 1
    %s140 = scalar_select %p137, %s138, %s139
    %p143 = pneg %p137
    %p144 = scmp.eq.s32.totalorder %s10, 7
    %p145 = por %p143, %p144
    %p146 = scmp.ne.s32.totalorder %s138, %s141
    %p147 = scmp.eq.s32.totalorder %s10, 0
    %p148 = por %p146, %p147
    %p149 = scmp.ne.s32.totalorder %s138, %s141
    %p150 = scmp.eq.s32.totalorder %s15, 7
    %p151 = por %p149, %p150
    %p152 = scmp.ne.s32.totalorder %s141, %s142
    %p153 = scmp.eq.s32.totalorder %s15, 0
    %p154 = por %p152, %p153
    %p155 = scmp.ne.s32.totalorder %s141, %s142
    %p156 = scmp.eq.s32.totalorder %s16, 7
    %p157 = por %p155, %p156
    %p159 = scmp.ne.s32.totalorder %s142, %s158
    %p160 = scmp.eq.s32.totalorder %s16, 0
    %p161 = por %p159, %p160
    %p162 = scmp.le.s32.totalorder 1, %s10
    %p163 = scmp.lt.s32.totalorder %s10, 9
    %p164 = pnand %p162, %p163
    %p165 = pneg %p164
    // Predicated region
    $region9: #{tpu_custom_call.1} parent=5 // pred_check
      _
    $region10: #{tpu_custom_call.1} parent=5 // pred_check_branch
      %167 = sbr.rel (%p164) target = $region12
    $region11: #{tpu_custom_call.1} parent=5 // pred_region
      %s168 = ssub.s32 %s10, 1
      // Predicated region
      $region13: #{tpu_custom_call.1} parent=11 // pred_check
        %p169 = pneg %p74
      $region14: #{tpu_custom_call.1} parent=11 // pred_check_branch
        %171 = sbr.rel (%p169) target = $region16
      $region15: #{tpu_custom_call.1} parent=11 // pred_region
        %p172 = scmp.lt.s32.totalorder %s20, 0
        %s173 = scalar_select %p172, %s20, 0
        %s174 = smul.addr %s173, 4
        %s175 = scalar_lea.vmem %s1, %s174
      $region16: #{tpu_custom_call.1} parent=11 // pred_fallthru
        _
      // Predicated region
      $region17: #{tpu_custom_call.1} parent=11 // pred_check
        %p176 = pneg %p100
      $region18: #{tpu_custom_call.1} parent=11 // pred_check_branch
        %178 = sbr.rel (%p176) target = $region20
      $region19: #{tpu_custom_call.1} parent=11 // pred_region
        %p179 = scmp.lt.s32.totalorder %s20, 0
        %s180 = scalar_select %p179, %s20, 0
        %s181 = scalar_lea.vmem %s2, %s180
      $region20: #{tpu_custom_call.1} parent=11 // pred_fallthru
        _
      // Predicated region
      $region21: #{tpu_custom_call.1} parent=11 // pred_check
        %p182 = pneg %p126
      $region22: #{tpu_custom_call.1} parent=11 // pred_check_branch
        %184 = sbr.rel (%p182) target = $region24
      $region23: #{tpu_custom_call.1} parent=11 // pred_region
        %p185 = scmp.lt.s32.totalorder %s20, 0
        %s186 = scalar_select %p185, %s20, 0
        %s187 = scalar_lea.vmem %s3, %s186
      $region24: #{tpu_custom_call.1} parent=11 // pred_fallthru
        _
    $region12: #{tpu_custom_call.1} parent=5 // pred_fallthru
      _
    %p188 = scmp.lt.s32.totalorder %s10, 8
    // Predicated region
    $region25: #{tpu_custom_call.1} parent=5 // pred_check
      %p189 = pneg %p188
    $region26: #{tpu_custom_call.1} parent=5 // pred_check_branch
      %191 = sbr.rel (%p189) target = $region28
    $region27: #{tpu_custom_call.1} parent=5 // pred_region
      // Predicated region
      $region29: #{tpu_custom_call.1} parent=27 // pred_check
        %p192 = pneg %p42
      $region30: #{tpu_custom_call.1} parent=27 // pred_check_branch
        %194 = sbr.rel (%p192) target = $region32
      $region31: #{tpu_custom_call.1} parent=27 // pred_region
        %s195 = smul.u32 512, %s17
        %p196 = scmp.lt.s32.totalorder %s195, 4095
        %s197 = scalar_select %p196, %s195, 4095
        %s198 = smul.addr %s197, 4
        %s199 = scalar_lea.vmem %s0, %s198
        %s200 = smul.u32 512, %s17
      $region32: #{tpu_custom_call.1} parent=27 // pred_fallthru
        _
    $region28: #{tpu_custom_call.1} parent=5 // pred_fallthru
      _
    %p201 = scmp.le.s32.totalorder 1, %s10
    %p202 = scmp.lt.s32.totalorder %s10, 9
    %p203 = pnand %p201, %p202
    %p204 = pneg %p203
    // Predicated region
    $region33: #{tpu_custom_call.1} parent=5 // pred_check
      _
    $region34: #{tpu_custom_call.1} parent=5 // pred_check_branch
      %206 = sbr.rel (%p203) target = $region36
    $region35: #{tpu_custom_call.1} parent=5 // pred_region
      %s207 = ssub.s32 %s10, 1
      %s208 = smul.u32 512, %s19
      %p209 = scmp.lt.s32.totalorder %s208, 4095
      %s210 = scalar_select %p209, %s208, 4095
      %s211 = smul.addr %s210, 4
      %s212 = scalar_lea.vmem %s0, %s211
      %p213 = pneg %p48
      %p214 = pneg %p45
      %p215 = scmp.lt.s32.totalorder %s20, 0
      %s216 = scalar_select %p215, %s20, 0
      %s217 = smul.addr %s216, 4
      %s218 = scalar_lea.vmem %s1, %s217
      %p219 = pneg %p74
      %p220 = pneg %p71
      %p221 = scmp.lt.s32.totalorder %s20, 0
      %s222 = scalar_select %p221, %s20, 0
      %s223 = scalar_lea.vmem %s2, %s222
      %p224 = pneg %p100
      %p225 = pneg %p97
      %p226 = scmp.lt.s32.totalorder %s20, 0
      %s227 = scalar_select %p226, %s20, 0
      %s228 = scalar_lea.vmem %s3, %s227
      %p229 = pneg %p126
      %p230 = pneg %p123
      %p231 = pneg %p154
      %p232 = pneg %p151
      %s233 = smul.u32 512, %s19
      %p234 = scmp.lt.s32.totalorder %s233, 4095
      %s235 = scalar_select %p234, %s233, 4095
      %p236 = scmp.lt.s32.totalorder %s20, 0
      %s237 = scalar_select %p236, %s20, 0
      %s238 = sadd.s32 %s237, %s235
      %s239 = smul.addr %s238, 4
      %s240 = scalar_lea.vmem %s4, %s239
      %s241 = smul.u32 512, %s19
      %p242 = scmp.lt.s32.totalorder %s241, 4095
      %s243 = scalar_select %p242, %s241, 4095
      %s244 = smul.addr %s243, 4
      %s245 = scalar_lea.vmem %s0, %s244
      %s246 = smul.u32 512, %s19
      %p247 = scmp.lt.s32.totalorder %s20, 0
      %s248 = scalar_select %p247, %s20, 0
      %s249 = smul.addr %s248, 4
      %s250 = scalar_lea.vmem %s1, %s249
      %p251 = scmp.lt.s32.totalorder %s20, 0
      %s252 = scalar_select %p251, %s20, 0
      %s253 = scalar_lea.vmem %s2, %s252
      %p254 = scmp.lt.s32.totalorder %s20, 0
      %s255 = scalar_select %p254, %s20, 0
      %s256 = scalar_lea.vmem %s3, %s255
      %s257 = smul.u32 512, %s19
      %p258 = scmp.lt.s32.totalorder %s257, 4095
      %s259 = scalar_select %p258, %s257, 4095
      %p260 = scmp.lt.s32.totalorder %s20, 0
      %s261 = scalar_select %p260, %s20, 0
      %s262 = sadd.s32 %s261, %s259
      %s263 = smul.addr %s262, 4
      %s264 = scalar_lea.vmem %s4, %s263
      %s265 = smul.u32 512, %s19
      %v267 = vld [vmem:[%s245] sm:$0xf]
      %v268 = vld [vmem:[%s245 + $0x4] sm:$0xf]
      %v269 = vld [vmem:[%s245 + $0x8] sm:$0xf]
      %v270 = vld [vmem:[%s245 + $0xc] sm:$0xf]
      %v271 = vld [vmem:[%s245 + $0x10] sm:$0xf]
      %v272 = vld [vmem:[%s245 + $0x14] sm:$0xf]
      %v273 = vld [vmem:[%s245 + $0x18] sm:$0xf]
      %v274 = vld [vmem:[%s245 + $0x1c] sm:$0xf]
      %v275 = vld [vmem:[%s245 + $0x20] sm:$0xf]
      %v276 = vld [vmem:[%s245 + $0x24] sm:$0xf]
      %v277 = vld [vmem:[%s245 + $0x28] sm:$0xf]
      %v278 = vld [vmem:[%s245 + $0x2c] sm:$0xf]
      %v279 = vld [vmem:[%s245 + $0x30] sm:$0xf]
      %v280 = vld [vmem:[%s245 + $0x34] sm:$0xf]
      %v281 = vld [vmem:[%s245 + $0x38] sm:$0xf]
      %v282 = vld [vmem:[%s245 + $0x3c] sm:$0xf]
      %v283 = vld [vmem:[%s245 + $0x40] sm:$0xf]
      %v284 = vld [vmem:[%s245 + $0x44] sm:$0xf]
      %v285 = vld [vmem:[%s245 + $0x48] sm:$0xf]
      %v286 = vld [vmem:[%s245 + $0x4c] sm:$0xf]
      %v287 = vld [vmem:[%s245 + $0x50] sm:$0xf]
      %v288 = vld [vmem:[%s245 + $0x54] sm:$0xf]
      %v289 = vld [vmem:[%s245 + $0x58] sm:$0xf]
      %v290 = vld [vmem:[%s245 + $0x5c] sm:$0xf]
      %v291 = vld [vmem:[%s245 + $0x60] sm:$0xf]
      %v292 = vld [vmem:[%s245 + $0x64] sm:$0xf]
      %v293 = vld [vmem:[%s245 + $0x68] sm:$0xf]
      %v294 = vld [vmem:[%s245 + $0x6c] sm:$0xf]
      %v295 = vld [vmem:[%s245 + $0x70] sm:$0xf]
      %v296 = vld [vmem:[%s245 + $0x74] sm:$0xf]
      %v297 = vld [vmem:[%s245 + $0x78] sm:$0xf]
      %v298 = vld [vmem:[%s245 + $0x7c] sm:$0xf]
      %v299 = vld [vmem:[%s245 + $0x80] sm:$0xf]
      %v300 = vld [vmem:[%s245 + $0x84] sm:$0xf]
      %v301 = vld [vmem:[%s245 + $0x88] sm:$0xf]
      %v302 = vld [vmem:[%s245 + $0x8c] sm:$0xf]
      %v303 = vld [vmem:[%s245 + $0x90] sm:$0xf]
      %v304 = vld [vmem:[%s245 + $0x94] sm:$0xf]
      %v305 = vld [vmem:[%s245 + $0x98] sm:$0xf]
      %v306 = vld [vmem:[%s245 + $0x9c] sm:$0xf]
      %v307 = vld [vmem:[%s245 + $0xa0] sm:$0xf]
      %v308 = vld [vmem:[%s245 + $0xa4] sm:$0xf]
      %v309 = vld [vmem:[%s245 + $0xa8] sm:$0xf]
      %v310 = vld [vmem:[%s245 + $0xac] sm:$0xf]
      %v311 = vld [vmem:[%s245 + $0xb0] sm:$0xf]
      %v312 = vld [vmem:[%s245 + $0xb4] sm:$0xf]
      %v313 = vld [vmem:[%s245 + $0xb8] sm:$0xf]
      %v314 = vld [vmem:[%s245 + $0xbc] sm:$0xf]
      %v315 = vld [vmem:[%s245 + $0xc0] sm:$0xf]
      %v316 = vld [vmem:[%s245 + $0xc4] sm:$0xf]
      %v317 = vld [vmem:[%s245 + $0xc8] sm:$0xf]
      %v318 = vld [vmem:[%s245 + $0xcc] sm:$0xf]
      %v319 = vld [vmem:[%s245 + $0xd0] sm:$0xf]
      %v320 = vld [vmem:[%s245 + $0xd4] sm:$0xf]
      %v321 = vld [vmem:[%s245 + $0xd8] sm:$0xf]
      %v322 = vld [vmem:[%s245 + $0xdc] sm:$0xf]
      %v323 = vld [vmem:[%s245 + $0xe0] sm:$0xf]
      %v324 = vld [vmem:[%s245 + $0xe4] sm:$0xf]
      %v325 = vld [vmem:[%s245 + $0xe8] sm:$0xf]
      %v326 = vld [vmem:[%s245 + $0xec] sm:$0xf]
      %v327 = vld [vmem:[%s245 + $0xf0] sm:$0xf]
      %v328 = vld [vmem:[%s245 + $0xf4] sm:$0xf]
      %v329 = vld [vmem:[%s245 + $0xf8] sm:$0xf]
      %v330 = vld [vmem:[%s245 + $0xfc] sm:$0xf]
      %v331 = vld [vmem:[%s245 + $0x100] sm:$0xf]
      %v332 = vld [vmem:[%s245 + $0x104] sm:$0xf]
      %v333 = vld [vmem:[%s245 + $0x108] sm:$0xf]
      %v334 = vld [vmem:[%s245 + $0x10c] sm:$0xf]
      %v335 = vld [vmem:[%s245 + $0x110] sm:$0xf]
      %v336 = vld [vmem:[%s245 + $0x114] sm:$0xf]
      %v337 = vld [vmem:[%s245 + $0x118] sm:$0xf]
      %v338 = vld [vmem:[%s245 + $0x11c] sm:$0xf]
      %v339 = vld [vmem:[%s245 + $0x120] sm:$0xf]
      %v340 = vld [vmem:[%s245 + $0x124] sm:$0xf]
      %v341 = vld [vmem:[%s245 + $0x128] sm:$0xf]
      %v342 = vld [vmem:[%s245 + $0x12c] sm:$0xf]
      %v343 = vld [vmem:[%s245 + $0x130] sm:$0xf]
      %v344 = vld [vmem:[%s245 + $0x134] sm:$0xf]
      %v345 = vld [vmem:[%s245 + $0x138] sm:$0xf]
      %v346 = vld [vmem:[%s245 + $0x13c] sm:$0xf]
      %v347 = vld [vmem:[%s245 + $0x140] sm:$0xf]
      %v348 = vld [vmem:[%s245 + $0x144] sm:$0xf]
      %v349 = vld [vmem:[%s245 + $0x148] sm:$0xf]
      %v350 = vld [vmem:[%s245 + $0x14c] sm:$0xf]
      %v351 = vld [vmem:[%s245 + $0x150] sm:$0xf]
      %v352 = vld [vmem:[%s245 + $0x154] sm:$0xf]
      %v353 = vld [vmem:[%s245 + $0x158] sm:$0xf]
      %v354 = vld [vmem:[%s245 + $0x15c] sm:$0xf]
      %v355 = vld [vmem:[%s245 + $0x160] sm:$0xf]
      %v356 = vld [vmem:[%s245 + $0x164] sm:$0xf]
      %v357 = vld [vmem:[%s245 + $0x168] sm:$0xf]
      %v358 = vld [vmem:[%s245 + $0x16c] sm:$0xf]
      %v359 = vld [vmem:[%s245 + $0x170] sm:$0xf]
      %v360 = vld [vmem:[%s245 + $0x174] sm:$0xf]
      %v361 = vld [vmem:[%s245 + $0x178] sm:$0xf]
      %v362 = vld [vmem:[%s245 + $0x17c] sm:$0xf]
      %v363 = vld [vmem:[%s245 + $0x180] sm:$0xf]
      %v364 = vld [vmem:[%s245 + $0x184] sm:$0xf]
      %v365 = vld [vmem:[%s245 + $0x188] sm:$0xf]
      %v366 = vld [vmem:[%s245 + $0x18c] sm:$0xf]
      %v367 = vld [vmem:[%s245 + $0x190] sm:$0xf]
      %v368 = vld [vmem:[%s245 + $0x194] sm:$0xf]
      %v369 = vld [vmem:[%s245 + $0x198] sm:$0xf]
      %v370 = vld [vmem:[%s245 + $0x19c] sm:$0xf]
      %v371 = vld [vmem:[%s245 + $0x1a0] sm:$0xf]
      %v372 = vld [vmem:[%s245 + $0x1a4] sm:$0xf]
      %v373 = vld [vmem:[%s245 + $0x1a8] sm:$0xf]
      %v374 = vld [vmem:[%s245 + $0x1ac] sm:$0xf]
      %v375 = vld [vmem:[%s245 + $0x1b0] sm:$0xf]
      %v376 = vld [vmem:[%s245 + $0x1b4] sm:$0xf]
      %v377 = vld [vmem:[%s245 + $0x1b8] sm:$0xf]
      %v378 = vld [vmem:[%s245 + $0x1bc] sm:$0xf]
      %v379 = vld [vmem:[%s245 + $0x1c0] sm:$0xf]
      %v380 = vld [vmem:[%s245 + $0x1c4] sm:$0xf]
      %v381 = vld [vmem:[%s245 + $0x1c8] sm:$0xf]
      %v382 = vld [vmem:[%s245 + $0x1cc] sm:$0xf]
      %v383 = vld [vmem:[%s245 + $0x1d0] sm:$0xf]
      %v384 = vld [vmem:[%s245 + $0x1d4] sm:$0xf]
      %v385 = vld [vmem:[%s245 + $0x1d8] sm:$0xf]
      %v386 = vld [vmem:[%s245 + $0x1dc] sm:$0xf]
      %v387 = vld [vmem:[%s245 + $0x1e0] sm:$0xf]
      %v388 = vld [vmem:[%s245 + $0x1e4] sm:$0xf]
      %v389 = vld [vmem:[%s245 + $0x1e8] sm:$0xf]
      %v390 = vld [vmem:[%s245 + $0x1ec] sm:$0xf]
      %v391 = vld [vmem:[%s245 + $0x1f0] sm:$0xf]
      %v392 = vld [vmem:[%s245 + $0x1f4] sm:$0xf]
      %v393 = vld [vmem:[%s245 + $0x1f8] sm:$0xf]
      %v394 = vld [vmem:[%s245 + $0x1fc] sm:$0xf]
      %v395 = vld [vmem:[%s245 + $0x200] sm:$0xf]
      %v396 = vld [vmem:[%s245 + $0x204] sm:$0xf]
      %v397 = vld [vmem:[%s245 + $0x208] sm:$0xf]
      %v398 = vld [vmem:[%s245 + $0x20c] sm:$0xf]
      %v399 = vld [vmem:[%s245 + $0x210] sm:$0xf]
      %v400 = vld [vmem:[%s245 + $0x214] sm:$0xf]
      %v401 = vld [vmem:[%s245 + $0x218] sm:$0xf]
      %v402 = vld [vmem:[%s245 + $0x21c] sm:$0xf]
      %v403 = vld [vmem:[%s245 + $0x220] sm:$0xf]
      %v404 = vld [vmem:[%s245 + $0x224] sm:$0xf]
      %v405 = vld [vmem:[%s245 + $0x228] sm:$0xf]
      %v406 = vld [vmem:[%s245 + $0x22c] sm:$0xf]
      %v407 = vld [vmem:[%s245 + $0x230] sm:$0xf]
      %v408 = vld [vmem:[%s245 + $0x234] sm:$0xf]
      %v409 = vld [vmem:[%s245 + $0x238] sm:$0xf]
      %v410 = vld [vmem:[%s245 + $0x23c] sm:$0xf]
      %v411 = vld [vmem:[%s245 + $0x240] sm:$0xf]
      %v412 = vld [vmem:[%s245 + $0x244] sm:$0xf]
      %v413 = vld [vmem:[%s245 + $0x248] sm:$0xf]
      %v414 = vld [vmem:[%s245 + $0x24c] sm:$0xf]
      %v415 = vld [vmem:[%s245 + $0x250] sm:$0xf]
      %v416 = vld [vmem:[%s245 + $0x254] sm:$0xf]
      %v417 = vld [vmem:[%s245 + $0x258] sm:$0xf]
      %v418 = vld [vmem:[%s245 + $0x25c] sm:$0xf]
      %v419 = vld [vmem:[%s245 + $0x260] sm:$0xf]
      %v420 = vld [vmem:[%s245 + $0x264] sm:$0xf]
      %v421 = vld [vmem:[%s245 + $0x268] sm:$0xf]
      %v422 = vld [vmem:[%s245 + $0x26c] sm:$0xf]
      %v423 = vld [vmem:[%s245 + $0x270] sm:$0xf]
      %v424 = vld [vmem:[%s245 + $0x274] sm:$0xf]
      %v425 = vld [vmem:[%s245 + $0x278] sm:$0xf]
      %v426 = vld [vmem:[%s245 + $0x27c] sm:$0xf]
      %v427 = vld [vmem:[%s245 + $0x280] sm:$0xf]
      %v428 = vld [vmem:[%s245 + $0x284] sm:$0xf]
      %v429 = vld [vmem:[%s245 + $0x288] sm:$0xf]
      %v430 = vld [vmem:[%s245 + $0x28c] sm:$0xf]
      %v431 = vld [vmem:[%s245 + $0x290] sm:$0xf]
      %v432 = vld [vmem:[%s245 + $0x294] sm:$0xf]
      %v433 = vld [vmem:[%s245 + $0x298] sm:$0xf]
      %v434 = vld [vmem:[%s245 + $0x29c] sm:$0xf]
      %v435 = vld [vmem:[%s245 + $0x2a0] sm:$0xf]
      %v436 = vld [vmem:[%s245 + $0x2a4] sm:$0xf]
      %v437 = vld [vmem:[%s245 + $0x2a8] sm:$0xf]
      %v438 = vld [vmem:[%s245 + $0x2ac] sm:$0xf]
      %v439 = vld [vmem:[%s245 + $0x2b0] sm:$0xf]
      %v440 = vld [vmem:[%s245 + $0x2b4] sm:$0xf]
      %v441 = vld [vmem:[%s245 + $0x2b8] sm:$0xf]
      %v442 = vld [vmem:[%s245 + $0x2bc] sm:$0xf]
      %v443 = vld [vmem:[%s245 + $0x2c0] sm:$0xf]
      %v444 = vld [vmem:[%s245 + $0x2c4] sm:$0xf]
      %v445 = vld [vmem:[%s245 + $0x2c8] sm:$0xf]
      %v446 = vld [vmem:[%s245 + $0x2cc] sm:$0xf]
      %v447 = vld [vmem:[%s245 + $0x2d0] sm:$0xf]
      %v448 = vld [vmem:[%s245 + $0x2d4] sm:$0xf]
      %v449 = vld [vmem:[%s245 + $0x2d8] sm:$0xf]
      %v450 = vld [vmem:[%s245 + $0x2dc] sm:$0xf]
      %v451 = vld [vmem:[%s245 + $0x2e0] sm:$0xf]
      %v452 = vld [vmem:[%s245 + $0x2e4] sm:$0xf]
      %v453 = vld [vmem:[%s245 + $0x2e8] sm:$0xf]
      %v454 = vld [vmem:[%s245 + $0x2ec] sm:$0xf]
      %v455 = vld [vmem:[%s245 + $0x2f0] sm:$0xf]
      %v456 = vld [vmem:[%s245 + $0x2f4] sm:$0xf]
      %v457 = vld [vmem:[%s245 + $0x2f8] sm:$0xf]
      %v458 = vld [vmem:[%s245 + $0x2fc] sm:$0xf]
      %v459 = vld [vmem:[%s245 + $0x300] sm:$0xf]
      %v460 = vld [vmem:[%s245 + $0x304] sm:$0xf]
      %v461 = vld [vmem:[%s245 + $0x308] sm:$0xf]
      %v462 = vld [vmem:[%s245 + $0x30c] sm:$0xf]
      %v463 = vld [vmem:[%s245 + $0x310] sm:$0xf]
      %v464 = vld [vmem:[%s245 + $0x314] sm:$0xf]
      %v465 = vld [vmem:[%s245 + $0x318] sm:$0xf]
      %v466 = vld [vmem:[%s245 + $0x31c] sm:$0xf]
      %v467 = vld [vmem:[%s245 + $0x320] sm:$0xf]
      %v468 = vld [vmem:[%s245 + $0x324] sm:$0xf]
      %v469 = vld [vmem:[%s245 + $0x328] sm:$0xf]
      %v470 = vld [vmem:[%s245 + $0x32c] sm:$0xf]
      %v471 = vld [vmem:[%s245 + $0x330] sm:$0xf]
      %v472 = vld [vmem:[%s245 + $0x334] sm:$0xf]
      %v473 = vld [vmem:[%s245 + $0x338] sm:$0xf]
      %v474 = vld [vmem:[%s245 + $0x33c] sm:$0xf]
      %v475 = vld [vmem:[%s245 + $0x340] sm:$0xf]
      %v476 = vld [vmem:[%s245 + $0x344] sm:$0xf]
      %v477 = vld [vmem:[%s245 + $0x348] sm:$0xf]
      %v478 = vld [vmem:[%s245 + $0x34c] sm:$0xf]
      %v479 = vld [vmem:[%s245 + $0x350] sm:$0xf]
      %v480 = vld [vmem:[%s245 + $0x354] sm:$0xf]
      %v481 = vld [vmem:[%s245 + $0x358] sm:$0xf]
      %v482 = vld [vmem:[%s245 + $0x35c] sm:$0xf]
      %v483 = vld [vmem:[%s245 + $0x360] sm:$0xf]
      %v484 = vld [vmem:[%s245 + $0x364] sm:$0xf]
      %v485 = vld [vmem:[%s245 + $0x368] sm:$0xf]
      %v486 = vld [vmem:[%s245 + $0x36c] sm:$0xf]
      %v487 = vld [vmem:[%s245 + $0x370] sm:$0xf]
      %v488 = vld [vmem:[%s245 + $0x374] sm:$0xf]
      %v489 = vld [vmem:[%s245 + $0x378] sm:$0xf]
      %v490 = vld [vmem:[%s245 + $0x37c] sm:$0xf]
      %v491 = vld [vmem:[%s245 + $0x380] sm:$0xf]
      %v492 = vld [vmem:[%s245 + $0x384] sm:$0xf]
      %v493 = vld [vmem:[%s245 + $0x388] sm:$0xf]
      %v494 = vld [vmem:[%s245 + $0x38c] sm:$0xf]
      %v495 = vld [vmem:[%s245 + $0x390] sm:$0xf]
      %v496 = vld [vmem:[%s245 + $0x394] sm:$0xf]
      %v497 = vld [vmem:[%s245 + $0x398] sm:$0xf]
      %v498 = vld [vmem:[%s245 + $0x39c] sm:$0xf]
      %v499 = vld [vmem:[%s245 + $0x3a0] sm:$0xf]
      %v500 = vld [vmem:[%s245 + $0x3a4] sm:$0xf]
      %v501 = vld [vmem:[%s245 + $0x3a8] sm:$0xf]
      %v502 = vld [vmem:[%s245 + $0x3ac] sm:$0xf]
      %v503 = vld [vmem:[%s245 + $0x3b0] sm:$0xf]
      %v504 = vld [vmem:[%s245 + $0x3b4] sm:$0xf]
      %v505 = vld [vmem:[%s245 + $0x3b8] sm:$0xf]
      %v506 = vld [vmem:[%s245 + $0x3bc] sm:$0xf]
      %v507 = vld [vmem:[%s245 + $0x3c0] sm:$0xf]
      %v508 = vld [vmem:[%s245 + $0x3c4] sm:$0xf]
      %v509 = vld [vmem:[%s245 + $0x3c8] sm:$0xf]
      %v510 = vld [vmem:[%s245 + $0x3cc] sm:$0xf]
      %v511 = vld [vmem:[%s245 + $0x3d0] sm:$0xf]
      %v512 = vld [vmem:[%s245 + $0x3d4] sm:$0xf]
      %v513 = vld [vmem:[%s245 + $0x3d8] sm:$0xf]
      %v514 = vld [vmem:[%s245 + $0x3dc] sm:$0xf]
      %v515 = vld [vmem:[%s245 + $0x3e0] sm:$0xf]
      %v516 = vld [vmem:[%s245 + $0x3e4] sm:$0xf]
      %v517 = vld [vmem:[%s245 + $0x3e8] sm:$0xf]
      %v518 = vld [vmem:[%s245 + $0x3ec] sm:$0xf]
      %v519 = vld [vmem:[%s245 + $0x3f0] sm:$0xf]
      %v520 = vld [vmem:[%s245 + $0x3f4] sm:$0xf]
      %v521 = vld [vmem:[%s245 + $0x3f8] sm:$0xf]
      %v522 = vld [vmem:[%s245 + $0x3fc] sm:$0xf]
      %v523 = vld [vmem:[%s245 + $0x400] sm:$0xf]
      %v524 = vld [vmem:[%s245 + $0x404] sm:$0xf]
      %v525 = vld [vmem:[%s245 + $0x408] sm:$0xf]
      %v526 = vld [vmem:[%s245 + $0x40c] sm:$0xf]
      %v527 = vld [vmem:[%s245 + $0x410] sm:$0xf]
      %v528 = vld [vmem:[%s245 + $0x414] sm:$0xf]
      %v529 = vld [vmem:[%s245 + $0x418] sm:$0xf]
      %v530 = vld [vmem:[%s245 + $0x41c] sm:$0xf]
      %v531 = vld [vmem:[%s245 + $0x420] sm:$0xf]
      %v532 = vld [vmem:[%s245 + $0x424] sm:$0xf]
      %v533 = vld [vmem:[%s245 + $0x428] sm:$0xf]
      %v534 = vld [vmem:[%s245 + $0x42c] sm:$0xf]
      %v535 = vld [vmem:[%s245 + $0x430] sm:$0xf]
      %v536 = vld [vmem:[%s245 + $0x434] sm:$0xf]
      %v537 = vld [vmem:[%s245 + $0x438] sm:$0xf]
      %v538 = vld [vmem:[%s245 + $0x43c] sm:$0xf]
      %v539 = vld [vmem:[%s245 + $0x440] sm:$0xf]
      %v540 = vld [vmem:[%s245 + $0x444] sm:$0xf]
      %v541 = vld [vmem:[%s245 + $0x448] sm:$0xf]
      %v542 = vld [vmem:[%s245 + $0x44c] sm:$0xf]
      %v543 = vld [vmem:[%s245 + $0x450] sm:$0xf]
      %v544 = vld [vmem:[%s245 + $0x454] sm:$0xf]
      %v545 = vld [vmem:[%s245 + $0x458] sm:$0xf]
      %v546 = vld [vmem:[%s245 + $0x45c] sm:$0xf]
      %v547 = vld [vmem:[%s245 + $0x460] sm:$0xf]
      %v548 = vld [vmem:[%s245 + $0x464] sm:$0xf]
      %v549 = vld [vmem:[%s245 + $0x468] sm:$0xf]
      %v550 = vld [vmem:[%s245 + $0x46c] sm:$0xf]
      %v551 = vld [vmem:[%s245 + $0x470] sm:$0xf]
      %v552 = vld [vmem:[%s245 + $0x474] sm:$0xf]
      %v553 = vld [vmem:[%s245 + $0x478] sm:$0xf]
      %v554 = vld [vmem:[%s245 + $0x47c] sm:$0xf]
      %v555 = vld [vmem:[%s245 + $0x480] sm:$0xf]
      %v556 = vld [vmem:[%s245 + $0x484] sm:$0xf]
      %v557 = vld [vmem:[%s245 + $0x488] sm:$0xf]
      %v558 = vld [vmem:[%s245 + $0x48c] sm:$0xf]
      %v559 = vld [vmem:[%s245 + $0x490] sm:$0xf]
      %v560 = vld [vmem:[%s245 + $0x494] sm:$0xf]
      %v561 = vld [vmem:[%s245 + $0x498] sm:$0xf]
      %v562 = vld [vmem:[%s245 + $0x49c] sm:$0xf]
      %v563 = vld [vmem:[%s245 + $0x4a0] sm:$0xf]
      %v564 = vld [vmem:[%s245 + $0x4a4] sm:$0xf]
      %v565 = vld [vmem:[%s245 + $0x4a8] sm:$0xf]
      %v566 = vld [vmem:[%s245 + $0x4ac] sm:$0xf]
      %v567 = vld [vmem:[%s245 + $0x4b0] sm:$0xf]
      %v568 = vld [vmem:[%s245 + $0x4b4] sm:$0xf]
      %v569 = vld [vmem:[%s245 + $0x4b8] sm:$0xf]
      %v570 = vld [vmem:[%s245 + $0x4bc] sm:$0xf]
      %v571 = vld [vmem:[%s245 + $0x4c0] sm:$0xf]
      %v572 = vld [vmem:[%s245 + $0x4c4] sm:$0xf]
      %v573 = vld [vmem:[%s245 + $0x4c8] sm:$0xf]
      %v574 = vld [vmem:[%s245 + $0x4cc] sm:$0xf]
      %v575 = vld [vmem:[%s245 + $0x4d0] sm:$0xf]
      %v576 = vld [vmem:[%s245 + $0x4d4] sm:$0xf]
      %v577 = vld [vmem:[%s245 + $0x4d8] sm:$0xf]
      %v578 = vld [vmem:[%s245 + $0x4dc] sm:$0xf]
      %v579 = vld [vmem:[%s245 + $0x4e0] sm:$0xf]
      %v580 = vld [vmem:[%s245 + $0x4e4] sm:$0xf]
      %v581 = vld [vmem:[%s245 + $0x4e8] sm:$0xf]
      %v582 = vld [vmem:[%s245 + $0x4ec] sm:$0xf]
      %v583 = vld [vmem:[%s245 + $0x4f0] sm:$0xf]
      %v584 = vld [vmem:[%s245 + $0x4f4] sm:$0xf]
      %v585 = vld [vmem:[%s245 + $0x4f8] sm:$0xf]
      %v586 = vld [vmem:[%s245 + $0x4fc] sm:$0xf]
      %v587 = vld [vmem:[%s245 + $0x500] sm:$0xf]
      %v588 = vld [vmem:[%s245 + $0x504] sm:$0xf]
      %v589 = vld [vmem:[%s245 + $0x508] sm:$0xf]
      %v590 = vld [vmem:[%s245 + $0x50c] sm:$0xf]
      %v591 = vld [vmem:[%s245 + $0x510] sm:$0xf]
      %v592 = vld [vmem:[%s245 + $0x514] sm:$0xf]
      %v593 = vld [vmem:[%s245 + $0x518] sm:$0xf]
      %v594 = vld [vmem:[%s245 + $0x51c] sm:$0xf]
      %v595 = vld [vmem:[%s245 + $0x520] sm:$0xf]
      %v596 = vld [vmem:[%s245 + $0x524] sm:$0xf]
      %v597 = vld [vmem:[%s245 + $0x528] sm:$0xf]
      %v598 = vld [vmem:[%s245 + $0x52c] sm:$0xf]
      %v599 = vld [vmem:[%s245 + $0x530] sm:$0xf]
      %v600 = vld [vmem:[%s245 + $0x534] sm:$0xf]
      %v601 = vld [vmem:[%s245 + $0x538] sm:$0xf]
      %v602 = vld [vmem:[%s245 + $0x53c] sm:$0xf]
      %v603 = vld [vmem:[%s245 + $0x540] sm:$0xf]
      %v604 = vld [vmem:[%s245 + $0x544] sm:$0xf]
      %v605 = vld [vmem:[%s245 + $0x548] sm:$0xf]
      %v606 = vld [vmem:[%s245 + $0x54c] sm:$0xf]
      %v607 = vld [vmem:[%s245 + $0x550] sm:$0xf]
      %v608 = vld [vmem:[%s245 + $0x554] sm:$0xf]
      %v609 = vld [vmem:[%s245 + $0x558] sm:$0xf]
      %v610 = vld [vmem:[%s245 + $0x55c] sm:$0xf]
      %v611 = vld [vmem:[%s245 + $0x560] sm:$0xf]
      %v612 = vld [vmem:[%s245 + $0x564] sm:$0xf]
      %v613 = vld [vmem:[%s245 + $0x568] sm:$0xf]
      %v614 = vld [vmem:[%s245 + $0x56c] sm:$0xf]
      %v615 = vld [vmem:[%s245 + $0x570] sm:$0xf]
      %v616 = vld [vmem:[%s245 + $0x574] sm:$0xf]
      %v617 = vld [vmem:[%s245 + $0x578] sm:$0xf]
      %v618 = vld [vmem:[%s245 + $0x57c] sm:$0xf]
      %v619 = vld [vmem:[%s245 + $0x580] sm:$0xf]
      %v620 = vld [vmem:[%s245 + $0x584] sm:$0xf]
      %v621 = vld [vmem:[%s245 + $0x588] sm:$0xf]
      %v622 = vld [vmem:[%s245 + $0x58c] sm:$0xf]
      %v623 = vld [vmem:[%s245 + $0x590] sm:$0xf]
      %v624 = vld [vmem:[%s245 + $0x594] sm:$0xf]
      %v625 = vld [vmem:[%s245 + $0x598] sm:$0xf]
      %v626 = vld [vmem:[%s245 + $0x59c] sm:$0xf]
      %v627 = vld [vmem:[%s245 + $0x5a0] sm:$0xf]
      %v628 = vld [vmem:[%s245 + $0x5a4] sm:$0xf]
      %v629 = vld [vmem:[%s245 + $0x5a8] sm:$0xf]
      %v630 = vld [vmem:[%s245 + $0x5ac] sm:$0xf]
      %v631 = vld [vmem:[%s245 + $0x5b0] sm:$0xf]
      %v632 = vld [vmem:[%s245 + $0x5b4] sm:$0xf]
      %v633 = vld [vmem:[%s245 + $0x5b8] sm:$0xf]
      %v634 = vld [vmem:[%s245 + $0x5bc] sm:$0xf]
      %v635 = vld [vmem:[%s245 + $0x5c0] sm:$0xf]
      %v636 = vld [vmem:[%s245 + $0x5c4] sm:$0xf]
      %v637 = vld [vmem:[%s245 + $0x5c8] sm:$0xf]
      %v638 = vld [vmem:[%s245 + $0x5cc] sm:$0xf]
      %v639 = vld [vmem:[%s245 + $0x5d0] sm:$0xf]
      %v640 = vld [vmem:[%s245 + $0x5d4] sm:$0xf]
      %v641 = vld [vmem:[%s245 + $0x5d8] sm:$0xf]
      %v642 = vld [vmem:[%s245 + $0x5dc] sm:$0xf]
      %v643 = vld [vmem:[%s245 + $0x5e0] sm:$0xf]
      %v644 = vld [vmem:[%s245 + $0x5e4] sm:$0xf]
      %v645 = vld [vmem:[%s245 + $0x5e8] sm:$0xf]
      %v646 = vld [vmem:[%s245 + $0x5ec] sm:$0xf]
      %v647 = vld [vmem:[%s245 + $0x5f0] sm:$0xf]
      %v648 = vld [vmem:[%s245 + $0x5f4] sm:$0xf]
      %v649 = vld [vmem:[%s245 + $0x5f8] sm:$0xf]
      %v650 = vld [vmem:[%s245 + $0x5fc] sm:$0xf]
      %v651 = vld [vmem:[%s245 + $0x600] sm:$0xf]
      %v652 = vld [vmem:[%s245 + $0x604] sm:$0xf]
      %v653 = vld [vmem:[%s245 + $0x608] sm:$0xf]
      %v654 = vld [vmem:[%s245 + $0x60c] sm:$0xf]
      %v655 = vld [vmem:[%s245 + $0x610] sm:$0xf]
      %v656 = vld [vmem:[%s245 + $0x614] sm:$0xf]
      %v657 = vld [vmem:[%s245 + $0x618] sm:$0xf]
      %v658 = vld [vmem:[%s245 + $0x61c] sm:$0xf]
      %v659 = vld [vmem:[%s245 + $0x620] sm:$0xf]
      %v660 = vld [vmem:[%s245 + $0x624] sm:$0xf]
      %v661 = vld [vmem:[%s245 + $0x628] sm:$0xf]
      %v662 = vld [vmem:[%s245 + $0x62c] sm:$0xf]
      %v663 = vld [vmem:[%s245 + $0x630] sm:$0xf]
      %v664 = vld [vmem:[%s245 + $0x634] sm:$0xf]
      %v665 = vld [vmem:[%s245 + $0x638] sm:$0xf]
      %v666 = vld [vmem:[%s245 + $0x63c] sm:$0xf]
      %v667 = vld [vmem:[%s245 + $0x640] sm:$0xf]
      %v668 = vld [vmem:[%s245 + $0x644] sm:$0xf]
      %v669 = vld [vmem:[%s245 + $0x648] sm:$0xf]
      %v670 = vld [vmem:[%s245 + $0x64c] sm:$0xf]
      %v671 = vld [vmem:[%s245 + $0x650] sm:$0xf]
      %v672 = vld [vmem:[%s245 + $0x654] sm:$0xf]
      %v673 = vld [vmem:[%s245 + $0x658] sm:$0xf]
      %v674 = vld [vmem:[%s245 + $0x65c] sm:$0xf]
      %v675 = vld [vmem:[%s245 + $0x660] sm:$0xf]
      %v676 = vld [vmem:[%s245 + $0x664] sm:$0xf]
      %v677 = vld [vmem:[%s245 + $0x668] sm:$0xf]
      %v678 = vld [vmem:[%s245 + $0x66c] sm:$0xf]
      %v679 = vld [vmem:[%s245 + $0x670] sm:$0xf]
      %v680 = vld [vmem:[%s245 + $0x674] sm:$0xf]
      %v681 = vld [vmem:[%s245 + $0x678] sm:$0xf]
      %v682 = vld [vmem:[%s245 + $0x67c] sm:$0xf]
      %v683 = vld [vmem:[%s245 + $0x680] sm:$0xf]
      %v684 = vld [vmem:[%s245 + $0x684] sm:$0xf]
      %v685 = vld [vmem:[%s245 + $0x688] sm:$0xf]
      %v686 = vld [vmem:[%s245 + $0x68c] sm:$0xf]
      %v687 = vld [vmem:[%s245 + $0x690] sm:$0xf]
      %v688 = vld [vmem:[%s245 + $0x694] sm:$0xf]
      %v689 = vld [vmem:[%s245 + $0x698] sm:$0xf]
      %v690 = vld [vmem:[%s245 + $0x69c] sm:$0xf]
      %v691 = vld [vmem:[%s245 + $0x6a0] sm:$0xf]
      %v692 = vld [vmem:[%s245 + $0x6a4] sm:$0xf]
      %v693 = vld [vmem:[%s245 + $0x6a8] sm:$0xf]
      %v694 = vld [vmem:[%s245 + $0x6ac] sm:$0xf]
      %v695 = vld [vmem:[%s245 + $0x6b0] sm:$0xf]
      %v696 = vld [vmem:[%s245 + $0x6b4] sm:$0xf]
      %v697 = vld [vmem:[%s245 + $0x6b8] sm:$0xf]
      %v698 = vld [vmem:[%s245 + $0x6bc] sm:$0xf]
      %v699 = vld [vmem:[%s245 + $0x6c0] sm:$0xf]
      %v700 = vld [vmem:[%s245 + $0x6c4] sm:$0xf]
      %v701 = vld [vmem:[%s245 + $0x6c8] sm:$0xf]
      %v702 = vld [vmem:[%s245 + $0x6cc] sm:$0xf]
      %v703 = vld [vmem:[%s245 + $0x6d0] sm:$0xf]
      %v704 = vld [vmem:[%s245 + $0x6d4] sm:$0xf]
      %v705 = vld [vmem:[%s245 + $0x6d8] sm:$0xf]
      %v706 = vld [vmem:[%s245 + $0x6dc] sm:$0xf]
      %v707 = vld [vmem:[%s245 + $0x6e0] sm:$0xf]
      %v708 = vld [vmem:[%s245 + $0x6e4] sm:$0xf]
      %v709 = vld [vmem:[%s245 + $0x6e8] sm:$0xf]
      %v710 = vld [vmem:[%s245 + $0x6ec] sm:$0xf]
      %v711 = vld [vmem:[%s245 + $0x6f0] sm:$0xf]
      %v712 = vld [vmem:[%s245 + $0x6f4] sm:$0xf]
      %v713 = vld [vmem:[%s245 + $0x6f8] sm:$0xf]
      %v714 = vld [vmem:[%s245 + $0x6fc] sm:$0xf]
      %v715 = vld [vmem:[%s245 + $0x700] sm:$0xf]
      %v716 = vld [vmem:[%s245 + $0x704] sm:$0xf]
      %v717 = vld [vmem:[%s245 + $0x708] sm:$0xf]
      %v718 = vld [vmem:[%s245 + $0x70c] sm:$0xf]
      %v719 = vld [vmem:[%s245 + $0x710] sm:$0xf]
      %v720 = vld [vmem:[%s245 + $0x714] sm:$0xf]
      %v721 = vld [vmem:[%s245 + $0x718] sm:$0xf]
      %v722 = vld [vmem:[%s245 + $0x71c] sm:$0xf]
      %v723 = vld [vmem:[%s245 + $0x720] sm:$0xf]
      %v724 = vld [vmem:[%s245 + $0x724] sm:$0xf]
      %v725 = vld [vmem:[%s245 + $0x728] sm:$0xf]
      %v726 = vld [vmem:[%s245 + $0x72c] sm:$0xf]
      %v727 = vld [vmem:[%s245 + $0x730] sm:$0xf]
      %v728 = vld [vmem:[%s245 + $0x734] sm:$0xf]
      %v729 = vld [vmem:[%s245 + $0x738] sm:$0xf]
      %v730 = vld [vmem:[%s245 + $0x73c] sm:$0xf]
      %v731 = vld [vmem:[%s245 + $0x740] sm:$0xf]
      %v732 = vld [vmem:[%s245 + $0x744] sm:$0xf]
      %v733 = vld [vmem:[%s245 + $0x748] sm:$0xf]
      %v734 = vld [vmem:[%s245 + $0x74c] sm:$0xf]
      %v735 = vld [vmem:[%s245 + $0x750] sm:$0xf]
      %v736 = vld [vmem:[%s245 + $0x754] sm:$0xf]
      %v737 = vld [vmem:[%s245 + $0x758] sm:$0xf]
      %v738 = vld [vmem:[%s245 + $0x75c] sm:$0xf]
      %v739 = vld [vmem:[%s245 + $0x760] sm:$0xf]
      %v740 = vld [vmem:[%s245 + $0x764] sm:$0xf]
      %v741 = vld [vmem:[%s245 + $0x768] sm:$0xf]
      %v742 = vld [vmem:[%s245 + $0x76c] sm:$0xf]
      %v743 = vld [vmem:[%s245 + $0x770] sm:$0xf]
      %v744 = vld [vmem:[%s245 + $0x774] sm:$0xf]
      %v745 = vld [vmem:[%s245 + $0x778] sm:$0xf]
      %v746 = vld [vmem:[%s245 + $0x77c] sm:$0xf]
      %v747 = vld [vmem:[%s245 + $0x780] sm:$0xf]
      %v748 = vld [vmem:[%s245 + $0x784] sm:$0xf]
      %v749 = vld [vmem:[%s245 + $0x788] sm:$0xf]
      %v750 = vld [vmem:[%s245 + $0x78c] sm:$0xf]
      %v751 = vld [vmem:[%s245 + $0x790] sm:$0xf]
      %v752 = vld [vmem:[%s245 + $0x794] sm:$0xf]
      %v753 = vld [vmem:[%s245 + $0x798] sm:$0xf]
      %v754 = vld [vmem:[%s245 + $0x79c] sm:$0xf]
      %v755 = vld [vmem:[%s245 + $0x7a0] sm:$0xf]
      %v756 = vld [vmem:[%s245 + $0x7a4] sm:$0xf]
      %v757 = vld [vmem:[%s245 + $0x7a8] sm:$0xf]
      %v758 = vld [vmem:[%s245 + $0x7ac] sm:$0xf]
      %v759 = vld [vmem:[%s245 + $0x7b0] sm:$0xf]
      %v760 = vld [vmem:[%s245 + $0x7b4] sm:$0xf]
      %v761 = vld [vmem:[%s245 + $0x7b8] sm:$0xf]
      %v762 = vld [vmem:[%s245 + $0x7bc] sm:$0xf]
      %v763 = vld [vmem:[%s245 + $0x7c0] sm:$0xf]
      %v764 = vld [vmem:[%s245 + $0x7c4] sm:$0xf]
      %v765 = vld [vmem:[%s245 + $0x7c8] sm:$0xf]
      %v766 = vld [vmem:[%s245 + $0x7cc] sm:$0xf]
      %v767 = vld [vmem:[%s245 + $0x7d0] sm:$0xf]
      %v768 = vld [vmem:[%s245 + $0x7d4] sm:$0xf]
      %v769 = vld [vmem:[%s245 + $0x7d8] sm:$0xf]
      %v770 = vld [vmem:[%s245 + $0x7dc] sm:$0xf]
      %v771 = vld [vmem:[%s245 + $0x7e0] sm:$0xf]
      %v772 = vld [vmem:[%s245 + $0x7e4] sm:$0xf]
      %v773 = vld [vmem:[%s245 + $0x7e8] sm:$0xf]
      %v774 = vld [vmem:[%s245 + $0x7ec] sm:$0xf]
      %v775 = vld [vmem:[%s245 + $0x7f0] sm:$0xf]
      %v776 = vld [vmem:[%s245 + $0x7f4] sm:$0xf]
      %v777 = vld [vmem:[%s245 + $0x7f8] sm:$0xf]
      %v778 = vld [vmem:[%s245 + $0x7fc] sm:$0xf]
      %v779 = vld [vmem:[%s250] sm:$0xf]
      %v780 = vld [vmem:[%s250 + $0x4] sm:$0xf]
      %v781 = vld [vmem:[%s250 + $0x8] sm:$0xf]
      %v782 = vld [vmem:[%s250 + $0xc] sm:$0xf]
      %v1295 = vunpack.c.l.b16 %v267
      %v1296 = vunpack.c.l.b16 %v268
      %v1297 = vunpack.c.l.b16 %v269
      %v1298 = vunpack.c.l.b16 %v270
      %v1299 = vunpack.c.l.b16 %v271
      %v1300 = vunpack.c.l.b16 %v272
      %v1301 = vunpack.c.l.b16 %v273
      %v1302 = vunpack.c.l.b16 %v274
      %v1303 = vunpack.c.l.b16 %v275
      %v1304 = vunpack.c.l.b16 %v276
      %v1305 = vunpack.c.l.b16 %v277
      %v1306 = vunpack.c.l.b16 %v278
      %v1307 = vunpack.c.l.b16 %v279
      %v1308 = vunpack.c.l.b16 %v280
      %v1309 = vunpack.c.l.b16 %v281
      %v1310 = vunpack.c.l.b16 %v282
      %v1311 = vunpack.c.l.b16 %v283
      %v1312 = vunpack.c.l.b16 %v284
      %v1313 = vunpack.c.l.b16 %v285
      %v1314 = vunpack.c.l.b16 %v286
      %v1315 = vunpack.c.l.b16 %v287
      %v1316 = vunpack.c.l.b16 %v288
      %v1317 = vunpack.c.l.b16 %v289
      %v1318 = vunpack.c.l.b16 %v290
      %v1319 = vunpack.c.l.b16 %v291
      %v1320 = vunpack.c.l.b16 %v292
      %v1321 = vunpack.c.l.b16 %v293
      %v1322 = vunpack.c.l.b16 %v294
      %v1323 = vunpack.c.l.b16 %v295
      %v1324 = vunpack.c.l.b16 %v296
      %v1325 = vunpack.c.l.b16 %v297
      %v1326 = vunpack.c.l.b16 %v298
      %v1327 = vunpack.c.l.b16 %v299
      %v1328 = vunpack.c.l.b16 %v300
      %v1329 = vunpack.c.l.b16 %v301
      %v1330 = vunpack.c.l.b16 %v302
      %v1331 = vunpack.c.l.b16 %v303
      %v1332 = vunpack.c.l.b16 %v304
      %v1333 = vunpack.c.l.b16 %v305
      %v1334 = vunpack.c.l.b16 %v306
      %v1335 = vunpack.c.l.b16 %v307
      %v1336 = vunpack.c.l.b16 %v308
      %v1337 = vunpack.c.l.b16 %v309
      %v1338 = vunpack.c.l.b16 %v310
      %v1339 = vunpack.c.l.b16 %v311
      %v1340 = vunpack.c.l.b16 %v312
      %v1341 = vunpack.c.l.b16 %v313
      %v1342 = vunpack.c.l.b16 %v314
      %v1343 = vunpack.c.l.b16 %v315
      %v1344 = vunpack.c.l.b16 %v316
      %v1345 = vunpack.c.l.b16 %v317
      %v1346 = vunpack.c.l.b16 %v318
      %v1347 = vunpack.c.l.b16 %v319
      %v1348 = vunpack.c.l.b16 %v320
      %v1349 = vunpack.c.l.b16 %v321
      %v1350 = vunpack.c.l.b16 %v322
      %v1351 = vunpack.c.l.b16 %v323
      %v1352 = vunpack.c.l.b16 %v324
      %v1353 = vunpack.c.l.b16 %v325
      %v1354 = vunpack.c.l.b16 %v326
      %v1355 = vunpack.c.l.b16 %v327
      %v1356 = vunpack.c.l.b16 %v328
      %v1357 = vunpack.c.l.b16 %v329
      %v1358 = vunpack.c.l.b16 %v330
      %v1359 = vunpack.c.l.b16 %v331
      %v1360 = vunpack.c.l.b16 %v332
      %v1361 = vunpack.c.l.b16 %v333
      %v1362 = vunpack.c.l.b16 %v334
      %v1363 = vunpack.c.l.b16 %v335
      %v1364 = vunpack.c.l.b16 %v336
      %v1365 = vunpack.c.l.b16 %v337
      %v1366 = vunpack.c.l.b16 %v338
      %v1367 = vunpack.c.l.b16 %v339
      %v1368 = vunpack.c.l.b16 %v340
      %v1369 = vunpack.c.l.b16 %v341
      %v1370 = vunpack.c.l.b16 %v342
      %v1371 = vunpack.c.l.b16 %v343
      %v1372 = vunpack.c.l.b16 %v344
      %v1373 = vunpack.c.l.b16 %v345
      %v1374 = vunpack.c.l.b16 %v346
      %v1375 = vunpack.c.l.b16 %v347
      %v1376 = vunpack.c.l.b16 %v348
      %v1377 = vunpack.c.l.b16 %v349
      %v1378 = vunpack.c.l.b16 %v350
      %v1379 = vunpack.c.l.b16 %v351
      %v1380 = vunpack.c.l.b16 %v352
      %v1381 = vunpack.c.l.b16 %v353
      %v1382 = vunpack.c.l.b16 %v354
      %v1383 = vunpack.c.l.b16 %v355
      %v1384 = vunpack.c.l.b16 %v356
      %v1385 = vunpack.c.l.b16 %v357
      %v1386 = vunpack.c.l.b16 %v358
      %v1387 = vunpack.c.l.b16 %v359
      %v1388 = vunpack.c.l.b16 %v360
      %v1389 = vunpack.c.l.b16 %v361
      %v1390 = vunpack.c.l.b16 %v362
      %v1391 = vunpack.c.l.b16 %v363
      %v1392 = vunpack.c.l.b16 %v364
      %v1393 = vunpack.c.l.b16 %v365
      %v1394 = vunpack.c.l.b16 %v366
      %v1395 = vunpack.c.l.b16 %v367
      %v1396 = vunpack.c.l.b16 %v368
      %v1397 = vunpack.c.l.b16 %v369
      %v1398 = vunpack.c.l.b16 %v370
      %v1399 = vunpack.c.l.b16 %v371
      %v1400 = vunpack.c.l.b16 %v372
      %v1401 = vunpack.c.l.b16 %v373
      %v1402 = vunpack.c.l.b16 %v374
      %v1403 = vunpack.c.l.b16 %v375
      %v1404 = vunpack.c.l.b16 %v376
      %v1405 = vunpack.c.l.b16 %v377
      %v1406 = vunpack.c.l.b16 %v378
      %v1407 = vunpack.c.l.b16 %v379
      %v1408 = vunpack.c.l.b16 %v380
      %v1409 = vunpack.c.l.b16 %v381
      %v1410 = vunpack.c.l.b16 %v382
      %v1411 = vunpack.c.l.b16 %v383
      %v1412 = vunpack.c.l.b16 %v384
      %v1413 = vunpack.c.l.b16 %v385
      %v1414 = vunpack.c.l.b16 %v386
      %v1415 = vunpack.c.l.b16 %v387
      %v1416 = vunpack.c.l.b16 %v388
      %v1417 = vunpack.c.l.b16 %v389
      %v1418 = vunpack.c.l.b16 %v390
      %v1419 = vunpack.c.l.b16 %v391
      %v1420 = vunpack.c.l.b16 %v392
      %v1421 = vunpack.c.l.b16 %v393
      %v1422 = vunpack.c.l.b16 %v394
      %v1423 = vunpack.c.l.b16 %v395
      %v1424 = vunpack.c.l.b16 %v396
      %v1425 = vunpack.c.l.b16 %v397
      %v1426 = vunpack.c.l.b16 %v398
      %v1427 = vunpack.c.l.b16 %v399
      %v1428 = vunpack.c.l.b16 %v400
      %v1429 = vunpack.c.l.b16 %v401
      %v1430 = vunpack.c.l.b16 %v402
      %v1431 = vunpack.c.l.b16 %v403
      %v1432 = vunpack.c.l.b16 %v404
      %v1433 = vunpack.c.l.b16 %v405
      %v1434 = vunpack.c.l.b16 %v406
      %v1435 = vunpack.c.l.b16 %v407
      %v1436 = vunpack.c.l.b16 %v408
      %v1437 = vunpack.c.l.b16 %v409
      %v1438 = vunpack.c.l.b16 %v410
      %v1439 = vunpack.c.l.b16 %v411
      %v1440 = vunpack.c.l.b16 %v412
      %v1441 = vunpack.c.l.b16 %v413
      %v1442 = vunpack.c.l.b16 %v414
      %v1443 = vunpack.c.l.b16 %v415
      %v1444 = vunpack.c.l.b16 %v416
      %v1445 = vunpack.c.l.b16 %v417
      %v1446 = vunpack.c.l.b16 %v418
      %v1447 = vunpack.c.l.b16 %v419
      %v1448 = vunpack.c.l.b16 %v420
      %v1449 = vunpack.c.l.b16 %v421
      %v1450 = vunpack.c.l.b16 %v422
      %v1451 = vunpack.c.l.b16 %v423
      %v1452 = vunpack.c.l.b16 %v424
      %v1453 = vunpack.c.l.b16 %v425
      %v1454 = vunpack.c.l.b16 %v426
      %v1455 = vunpack.c.l.b16 %v427
      %v1456 = vunpack.c.l.b16 %v428
      %v1457 = vunpack.c.l.b16 %v429
      %v1458 = vunpack.c.l.b16 %v430
      %v1459 = vunpack.c.l.b16 %v431
      %v1460 = vunpack.c.l.b16 %v432
      %v1461 = vunpack.c.l.b16 %v433
      %v1462 = vunpack.c.l.b16 %v434
      %v1463 = vunpack.c.l.b16 %v435
      %v1464 = vunpack.c.l.b16 %v436
      %v1465 = vunpack.c.l.b16 %v437
      %v1466 = vunpack.c.l.b16 %v438
      %v1467 = vunpack.c.l.b16 %v439
      %v1468 = vunpack.c.l.b16 %v440
      %v1469 = vunpack.c.l.b16 %v441
      %v1470 = vunpack.c.l.b16 %v442
      %v1471 = vunpack.c.l.b16 %v443
      %v1472 = vunpack.c.l.b16 %v444
      %v1473 = vunpack.c.l.b16 %v445
      %v1474 = vunpack.c.l.b16 %v446
      %v1475 = vunpack.c.l.b16 %v447
      %v1476 = vunpack.c.l.b16 %v448
      %v1477 = vunpack.c.l.b16 %v449
      %v1478 = vunpack.c.l.b16 %v450
      %v1479 = vunpack.c.l.b16 %v451
      %v1480 = vunpack.c.l.b16 %v452
      %v1481 = vunpack.c.l.b16 %v453
      %v1482 = vunpack.c.l.b16 %v454
      %v1483 = vunpack.c.l.b16 %v455
      %v1484 = vunpack.c.l.b16 %v456
      %v1485 = vunpack.c.l.b16 %v457
      %v1486 = vunpack.c.l.b16 %v458
      %v1487 = vunpack.c.l.b16 %v459
      %v1488 = vunpack.c.l.b16 %v460
      %v1489 = vunpack.c.l.b16 %v461
      %v1490 = vunpack.c.l.b16 %v462
      %v1491 = vunpack.c.l.b16 %v463
      %v1492 = vunpack.c.l.b16 %v464
      %v1493 = vunpack.c.l.b16 %v465
      %v1494 = vunpack.c.l.b16 %v466
      %v1495 = vunpack.c.l.b16 %v467
      %v1496 = vunpack.c.l.b16 %v468
      %v1497 = vunpack.c.l.b16 %v469
      %v1498 = vunpack.c.l.b16 %v470
      %v1499 = vunpack.c.l.b16 %v471
      %v1500 = vunpack.c.l.b16 %v472
      %v1501 = vunpack.c.l.b16 %v473
      %v1502 = vunpack.c.l.b16 %v474
      %v1503 = vunpack.c.l.b16 %v475
      %v1504 = vunpack.c.l.b16 %v476
      %v1505 = vunpack.c.l.b16 %v477
      %v1506 = vunpack.c.l.b16 %v478
      %v1507 = vunpack.c.l.b16 %v479
      %v1508 = vunpack.c.l.b16 %v480
      %v1509 = vunpack.c.l.b16 %v481
      %v1510 = vunpack.c.l.b16 %v482
      %v1511 = vunpack.c.l.b16 %v483
      %v1512 = vunpack.c.l.b16 %v484
      %v1513 = vunpack.c.l.b16 %v485
      %v1514 = vunpack.c.l.b16 %v486
      %v1515 = vunpack.c.l.b16 %v487
      %v1516 = vunpack.c.l.b16 %v488
      %v1517 = vunpack.c.l.b16 %v489
      %v1518 = vunpack.c.l.b16 %v490
      %v1519 = vunpack.c.l.b16 %v491
      %v1520 = vunpack.c.l.b16 %v492
      %v1521 = vunpack.c.l.b16 %v493
      %v1522 = vunpack.c.l.b16 %v494
      %v1523 = vunpack.c.l.b16 %v495
      %v1524 = vunpack.c.l.b16 %v496
      %v1525 = vunpack.c.l.b16 %v497
      %v1526 = vunpack.c.l.b16 %v498
      %v1527 = vunpack.c.l.b16 %v499
      %v1528 = vunpack.c.l.b16 %v500
      %v1529 = vunpack.c.l.b16 %v501
      %v1530 = vunpack.c.l.b16 %v502
      %v1531 = vunpack.c.l.b16 %v503
      %v1532 = vunpack.c.l.b16 %v504
      %v1533 = vunpack.c.l.b16 %v505
      %v1534 = vunpack.c.l.b16 %v506
      %v1535 = vunpack.c.l.b16 %v507
      %v1536 = vunpack.c.l.b16 %v508
      %v1537 = vunpack.c.l.b16 %v509
      %v1538 = vunpack.c.l.b16 %v510
      %v1539 = vunpack.c.l.b16 %v511
      %v1540 = vunpack.c.l.b16 %v512
      %v1541 = vunpack.c.l.b16 %v513
      %v1542 = vunpack.c.l.b16 %v514
      %v1543 = vunpack.c.l.b16 %v515
      %v1544 = vunpack.c.l.b16 %v516
      %v1545 = vunpack.c.l.b16 %v517
      %v1546 = vunpack.c.l.b16 %v518
      %v1547 = vunpack.c.l.b16 %v519
      %v1548 = vunpack.c.l.b16 %v520
      %v1549 = vunpack.c.l.b16 %v521
      %v1550 = vunpack.c.l.b16 %v522
      %v1551 = vunpack.c.l.b16 %v523
      %v1552 = vunpack.c.l.b16 %v524
      %v1553 = vunpack.c.l.b16 %v525
      %v1554 = vunpack.c.l.b16 %v526
      %v1555 = vunpack.c.l.b16 %v527
      %v1556 = vunpack.c.l.b16 %v528
      %v1557 = vunpack.c.l.b16 %v529
      %v1558 = vunpack.c.l.b16 %v530
      %v1559 = vunpack.c.l.b16 %v531
      %v1560 = vunpack.c.l.b16 %v532
      %v1561 = vunpack.c.l.b16 %v533
      %v1562 = vunpack.c.l.b16 %v534
      %v1563 = vunpack.c.l.b16 %v535
      %v1564 = vunpack.c.l.b16 %v536
      %v1565 = vunpack.c.l.b16 %v537
      %v1566 = vunpack.c.l.b16 %v538
      %v1567 = vunpack.c.l.b16 %v539
      %v1568 = vunpack.c.l.b16 %v540
      %v1569 = vunpack.c.l.b16 %v541
      %v1570 = vunpack.c.l.b16 %v542
      %v1571 = vunpack.c.l.b16 %v543
      %v1572 = vunpack.c.l.b16 %v544
      %v1573 = vunpack.c.l.b16 %v545
      %v1574 = vunpack.c.l.b16 %v546
      %v1575 = vunpack.c.l.b16 %v547
      %v1576 = vunpack.c.l.b16 %v548
      %v1577 = vunpack.c.l.b16 %v549
      %v1578 = vunpack.c.l.b16 %v550
      %v1579 = vunpack.c.l.b16 %v551
      %v1580 = vunpack.c.l.b16 %v552
      %v1581 = vunpack.c.l.b16 %v553
      %v1582 = vunpack.c.l.b16 %v554
      %v1583 = vunpack.c.l.b16 %v555
      %v1584 = vunpack.c.l.b16 %v556
      %v1585 = vunpack.c.l.b16 %v557
      %v1586 = vunpack.c.l.b16 %v558
      %v1587 = vunpack.c.l.b16 %v559
      %v1588 = vunpack.c.l.b16 %v560
      %v1589 = vunpack.c.l.b16 %v561
      %v1590 = vunpack.c.l.b16 %v562
      %v1591 = vunpack.c.l.b16 %v563
      %v1592 = vunpack.c.l.b16 %v564
      %v1593 = vunpack.c.l.b16 %v565
      %v1594 = vunpack.c.l.b16 %v566
      %v1595 = vunpack.c.l.b16 %v567
      %v1596 = vunpack.c.l.b16 %v568
      %v1597 = vunpack.c.l.b16 %v569
      %v1598 = vunpack.c.l.b16 %v570
      %v1599 = vunpack.c.l.b16 %v571
      %v1600 = vunpack.c.l.b16 %v572
      %v1601 = vunpack.c.l.b16 %v573
      %v1602 = vunpack.c.l.b16 %v574
      %v1603 = vunpack.c.l.b16 %v575
      %v1604 = vunpack.c.l.b16 %v576
      %v1605 = vunpack.c.l.b16 %v577
      %v1606 = vunpack.c.l.b16 %v578
      %v1607 = vunpack.c.l.b16 %v579
      %v1608 = vunpack.c.l.b16 %v580
      %v1609 = vunpack.c.l.b16 %v581
      %v1610 = vunpack.c.l.b16 %v582
      %v1611 = vunpack.c.l.b16 %v583
      %v1612 = vunpack.c.l.b16 %v584
      %v1613 = vunpack.c.l.b16 %v585
      %v1614 = vunpack.c.l.b16 %v586
      %v1615 = vunpack.c.l.b16 %v587
      %v1616 = vunpack.c.l.b16 %v588
      %v1617 = vunpack.c.l.b16 %v589
      %v1618 = vunpack.c.l.b16 %v590
      %v1619 = vunpack.c.l.b16 %v591
      %v1620 = vunpack.c.l.b16 %v592
      %v1621 = vunpack.c.l.b16 %v593
      %v1622 = vunpack.c.l.b16 %v594
      %v1623 = vunpack.c.l.b16 %v595
      %v1624 = vunpack.c.l.b16 %v596
      %v1625 = vunpack.c.l.b16 %v597
      %v1626 = vunpack.c.l.b16 %v598
      %v1627 = vunpack.c.l.b16 %v599
      %v1628 = vunpack.c.l.b16 %v600
      %v1629 = vunpack.c.l.b16 %v601
      %v1630 = vunpack.c.l.b16 %v602
      %v1631 = vunpack.c.l.b16 %v603
      %v1632 = vunpack.c.l.b16 %v604
      %v1633 = vunpack.c.l.b16 %v605
      %v1634 = vunpack.c.l.b16 %v606
      %v1635 = vunpack.c.l.b16 %v607
      %v1636 = vunpack.c.l.b16 %v608
      %v1637 = vunpack.c.l.b16 %v609
      %v1638 = vunpack.c.l.b16 %v610
      %v1639 = vunpack.c.l.b16 %v611
      %v1640 = vunpack.c.l.b16 %v612
      %v1641 = vunpack.c.l.b16 %v613
      %v1642 = vunpack.c.l.b16 %v614
      %v1643 = vunpack.c.l.b16 %v615
      %v1644 = vunpack.c.l.b16 %v616
      %v1645 = vunpack.c.l.b16 %v617
      %v1646 = vunpack.c.l.b16 %v618
      %v1647 = vunpack.c.l.b16 %v619
      %v1648 = vunpack.c.l.b16 %v620
      %v1649 = vunpack.c.l.b16 %v621
      %v1650 = vunpack.c.l.b16 %v622
      %v1651 = vunpack.c.l.b16 %v623
      %v1652 = vunpack.c.l.b16 %v624
      %v1653 = vunpack.c.l.b16 %v625
      %v1654 = vunpack.c.l.b16 %v626
      %v1655 = vunpack.c.l.b16 %v627
      %v1656 = vunpack.c.l.b16 %v628
      %v1657 = vunpack.c.l.b16 %v629
      %v1658 = vunpack.c.l.b16 %v630
      %v1659 = vunpack.c.l.b16 %v631
      %v1660 = vunpack.c.l.b16 %v632
      %v1661 = vunpack.c.l.b16 %v633
      %v1662 = vunpack.c.l.b16 %v634
      %v1663 = vunpack.c.l.b16 %v635
      %v1664 = vunpack.c.l.b16 %v636
      %v1665 = vunpack.c.l.b16 %v637
      %v1666 = vunpack.c.l.b16 %v638
      %v1667 = vunpack.c.l.b16 %v639
      %v1668 = vunpack.c.l.b16 %v640
      %v1669 = vunpack.c.l.b16 %v641
      %v1670 = vunpack.c.l.b16 %v642
      %v1671 = vunpack.c.l.b16 %v643
      %v1672 = vunpack.c.l.b16 %v644
      %v1673 = vunpack.c.l.b16 %v645
      %v1674 = vunpack.c.l.b16 %v646
      %v1675 = vunpack.c.l.b16 %v647
      %v1676 = vunpack.c.l.b16 %v648
      %v1677 = vunpack.c.l.b16 %v649
      %v1678 = vunpack.c.l.b16 %v650
      %v1679 = vunpack.c.l.b16 %v651
      %v1680 = vunpack.c.l.b16 %v652
      %v1681 = vunpack.c.l.b16 %v653
      %v1682 = vunpack.c.l.b16 %v654
      %v1683 = vunpack.c.l.b16 %v655
      %v1684 = vunpack.c.l.b16 %v656
      %v1685 = vunpack.c.l.b16 %v657
      %v1686 = vunpack.c.l.b16 %v658
      %v1687 = vunpack.c.l.b16 %v659
      %v1688 = vunpack.c.l.b16 %v660
      %v1689 = vunpack.c.l.b16 %v661
      %v1690 = vunpack.c.l.b16 %v662
      %v1691 = vunpack.c.l.b16 %v663
      %v1692 = vunpack.c.l.b16 %v664
      %v1693 = vunpack.c.l.b16 %v665
      %v1694 = vunpack.c.l.b16 %v666
      %v1695 = vunpack.c.l.b16 %v667
      %v1696 = vunpack.c.l.b16 %v668
      %v1697 = vunpack.c.l.b16 %v669
      %v1698 = vunpack.c.l.b16 %v670
      %v1699 = vunpack.c.l.b16 %v671
      %v1700 = vunpack.c.l.b16 %v672
      %v1701 = vunpack.c.l.b16 %v673
      %v1702 = vunpack.c.l.b16 %v674
      %v1703 = vunpack.c.l.b16 %v675
      %v1704 = vunpack.c.l.b16 %v676
      %v1705 = vunpack.c.l.b16 %v677
      %v1706 = vunpack.c.l.b16 %v678
      %v1707 = vunpack.c.l.b16 %v679
      %v1708 = vunpack.c.l.b16 %v680
      %v1709 = vunpack.c.l.b16 %v681
      %v1710 = vunpack.c.l.b16 %v682
      %v1711 = vunpack.c.l.b16 %v683
      %v1712 = vunpack.c.l.b16 %v684
      %v1713 = vunpack.c.l.b16 %v685
      %v1714 = vunpack.c.l.b16 %v686
      %v1715 = vunpack.c.l.b16 %v687
      %v1716 = vunpack.c.l.b16 %v688
      %v1717 = vunpack.c.l.b16 %v689
      %v1718 = vunpack.c.l.b16 %v690
      %v1719 = vunpack.c.l.b16 %v691
      %v1720 = vunpack.c.l.b16 %v692
      %v1721 = vunpack.c.l.b16 %v693
      %v1722 = vunpack.c.l.b16 %v694
      %v1723 = vunpack.c.l.b16 %v695
      %v1724 = vunpack.c.l.b16 %v696
      %v1725 = vunpack.c.l.b16 %v697
      %v1726 = vunpack.c.l.b16 %v698
      %v1727 = vunpack.c.l.b16 %v699
      %v1728 = vunpack.c.l.b16 %v700
      %v1729 = vunpack.c.l.b16 %v701
      %v1730 = vunpack.c.l.b16 %v702
      %v1731 = vunpack.c.l.b16 %v703
      %v1732 = vunpack.c.l.b16 %v704
      %v1733 = vunpack.c.l.b16 %v705
      %v1734 = vunpack.c.l.b16 %v706
      %v1735 = vunpack.c.l.b16 %v707
      %v1736 = vunpack.c.l.b16 %v708
      %v1737 = vunpack.c.l.b16 %v709
      %v1738 = vunpack.c.l.b16 %v710
      %v1739 = vunpack.c.l.b16 %v711
      %v1740 = vunpack.c.l.b16 %v712
      %v1741 = vunpack.c.l.b16 %v713
      %v1742 = vunpack.c.l.b16 %v714
      %v1743 = vunpack.c.l.b16 %v715
      %v1744 = vunpack.c.l.b16 %v716
      %v1745 = vunpack.c.l.b16 %v717
      %v1746 = vunpack.c.l.b16 %v718
      %v1747 = vunpack.c.l.b16 %v719
      %v1748 = vunpack.c.l.b16 %v720
      %v1749 = vunpack.c.l.b16 %v721
      %v1750 = vunpack.c.l.b16 %v722
      %v1751 = vunpack.c.l.b16 %v723
      %v1752 = vunpack.c.l.b16 %v724
      %v1753 = vunpack.c.l.b16 %v725
      %v1754 = vunpack.c.l.b16 %v726
      %v1755 = vunpack.c.l.b16 %v727
      %v1756 = vunpack.c.l.b16 %v728
      %v1757 = vunpack.c.l.b16 %v729
      %v1758 = vunpack.c.l.b16 %v730
      %v1759 = vunpack.c.l.b16 %v731
      %v1760 = vunpack.c.l.b16 %v732
      %v1761 = vunpack.c.l.b16 %v733
      %v1762 = vunpack.c.l.b16 %v734
      %v1763 = vunpack.c.l.b16 %v735
      %v1764 = vunpack.c.l.b16 %v736
      %v1765 = vunpack.c.l.b16 %v737
      %v1766 = vunpack.c.l.b16 %v738
      %v1767 = vunpack.c.l.b16 %v739
      %v1768 = vunpack.c.l.b16 %v740
      %v1769 = vunpack.c.l.b16 %v741
      %v1770 = vunpack.c.l.b16 %v742
      %v1771 = vunpack.c.l.b16 %v743
      %v1772 = vunpack.c.l.b16 %v744
      %v1773 = vunpack.c.l.b16 %v745
      %v1774 = vunpack.c.l.b16 %v746
      %v1775 = vunpack.c.l.b16 %v747
      %v1776 = vunpack.c.l.b16 %v748
      %v1777 = vunpack.c.l.b16 %v749
      %v1778 = vunpack.c.l.b16 %v750
      %v1779 = vunpack.c.l.b16 %v751
      %v1780 = vunpack.c.l.b16 %v752
      %v1781 = vunpack.c.l.b16 %v753
      %v1782 = vunpack.c.l.b16 %v754
      %v1783 = vunpack.c.l.b16 %v755
      %v1784 = vunpack.c.l.b16 %v756
      %v1785 = vunpack.c.l.b16 %v757
      %v1786 = vunpack.c.l.b16 %v758
      %v1787 = vunpack.c.l.b16 %v759
      %v1788 = vunpack.c.l.b16 %v760
      %v1789 = vunpack.c.l.b16 %v761
      %v1790 = vunpack.c.l.b16 %v762
      %v1791 = vunpack.c.l.b16 %v763
      %v1792 = vunpack.c.l.b16 %v764
      %v1793 = vunpack.c.l.b16 %v765
      %v1794 = vunpack.c.l.b16 %v766
      %v1795 = vunpack.c.l.b16 %v767
      %v1796 = vunpack.c.l.b16 %v768
      %v1797 = vunpack.c.l.b16 %v769
      %v1798 = vunpack.c.l.b16 %v770
      %v1799 = vunpack.c.l.b16 %v771
      %v1800 = vunpack.c.l.b16 %v772
      %v1801 = vunpack.c.l.b16 %v773
      %v1802 = vunpack.c.l.b16 %v774
      %v1803 = vunpack.c.l.b16 %v775
      %v1804 = vunpack.c.l.b16 %v776
      %v1805 = vunpack.c.l.b16 %v777
      %v1806 = vunpack.c.l.b16 %v778
      %v1807 = vpack.c.b16 %v1296, %v1295
      %v1808 = vpack.c.b16 %v1298, %v1297
      %v1809 = vpack.c.b16 %v1300, %v1299
      %v1810 = vpack.c.b16 %v1302, %v1301
      %v1811 = vpack.c.b16 %v1304, %v1303
      %v1812 = vpack.c.b16 %v1306, %v1305
      %v1813 = vpack.c.b16 %v1308, %v1307
      %v1814 = vpack.c.b16 %v1310, %v1309
      %v1815 = vpack.c.b16 %v1312, %v1311
      %v1816 = vpack.c.b16 %v1314, %v1313
      %v1817 = vpack.c.b16 %v1316, %v1315
      %v1818 = vpack.c.b16 %v1318, %v1317
      %v1819 = vpack.c.b16 %v1320, %v1319
      %v1820 = vpack.c.b16 %v1322, %v1321
      %v1821 = vpack.c.b16 %v1324, %v1323
      %v1822 = vpack.c.b16 %v1326, %v1325
      %v1823 = vpack.c.b16 %v1328, %v1327
      %v1824 = vpack.c.b16 %v1330, %v1329
      %v1825 = vpack.c.b16 %v1332, %v1331
      %v1826 = vpack.c.b16 %v1334, %v1333
      %v1827 = vpack.c.b16 %v1336, %v1335
      %v1828 = vpack.c.b16 %v1338, %v1337
      %v1829 = vpack.c.b16 %v1340, %v1339
      %v1830 = vpack.c.b16 %v1342, %v1341
      %v1831 = vpack.c.b16 %v1344, %v1343
      %v1832 = vpack.c.b16 %v1346, %v1345
      %v1833 = vpack.c.b16 %v1348, %v1347
      %v1834 = vpack.c.b16 %v1350, %v1349
      %v1835 = vpack.c.b16 %v1352, %v1351
      %v1836 = vpack.c.b16 %v1354, %v1353
      %v1837 = vpack.c.b16 %v1356, %v1355
      %v1838 = vpack.c.b16 %v1358, %v1357
      %v1839 = vpack.c.b16 %v1360, %v1359
      %v1840 = vpack.c.b16 %v1362, %v1361
      %v1841 = vpack.c.b16 %v1364, %v1363
      %v1842 = vpack.c.b16 %v1366, %v1365
      %v1843 = vpack.c.b16 %v1368, %v1367
      %v1844 = vpack.c.b16 %v1370, %v1369
      %v1845 = vpack.c.b16 %v1372, %v1371
      %v1846 = vpack.c.b16 %v1374, %v1373
      %v1847 = vpack.c.b16 %v1376, %v1375
      %v1848 = vpack.c.b16 %v1378, %v1377
      %v1849 = vpack.c.b16 %v1380, %v1379
      %v1850 = vpack.c.b16 %v1382, %v1381
      %v1851 = vpack.c.b16 %v1384, %v1383
      %v1852 = vpack.c.b16 %v1386, %v1385
      %v1853 = vpack.c.b16 %v1388, %v1387
      %v1854 = vpack.c.b16 %v1390, %v1389
      %v1855 = vpack.c.b16 %v1392, %v1391
      %v1856 = vpack.c.b16 %v1394, %v1393
      %v1857 = vpack.c.b16 %v1396, %v1395
      %v1858 = vpack.c.b16 %v1398, %v1397
      %v1859 = vpack.c.b16 %v1400, %v1399
      %v1860 = vpack.c.b16 %v1402, %v1401
      %v1861 = vpack.c.b16 %v1404, %v1403
      %v1862 = vpack.c.b16 %v1406, %v1405
      %v1863 = vpack.c.b16 %v1408, %v1407
      %v1864 = vpack.c.b16 %v1410, %v1409
      %v1865 = vpack.c.b16 %v1412, %v1411
      %v1866 = vpack.c.b16 %v1414, %v1413
      %v1867 = vpack.c.b16 %v1416, %v1415
      %v1868 = vpack.c.b16 %v1418, %v1417
      %v1869 = vpack.c.b16 %v1420, %v1419
      %v1870 = vpack.c.b16 %v1422, %v1421
      %v1871 = vpack.c.b16 %v1424, %v1423
      %v1872 = vpack.c.b16 %v1426, %v1425
      %v1873 = vpack.c.b16 %v1428, %v1427
      %v1874 = vpack.c.b16 %v1430, %v1429
      %v1875 = vpack.c.b16 %v1432, %v1431
      %v1876 = vpack.c.b16 %v1434, %v1433
      %v1877 = vpack.c.b16 %v1436, %v1435
      %v1878 = vpack.c.b16 %v1438, %v1437
      %v1879 = vpack.c.b16 %v1440, %v1439
      %v1880 = vpack.c.b16 %v1442, %v1441
      %v1881 = vpack.c.b16 %v1444, %v1443
      %v1882 = vpack.c.b16 %v1446, %v1445
      %v1883 = vpack.c.b16 %v1448, %v1447
      %v1884 = vpack.c.b16 %v1450, %v1449
      %v1885 = vpack.c.b16 %v1452, %v1451
      %v1886 = vpack.c.b16 %v1454, %v1453
      %v1887 = vpack.c.b16 %v1456, %v1455
      %v1888 = vpack.c.b16 %v1458, %v1457
      %v1889 = vpack.c.b16 %v1460, %v1459
      %v1890 = vpack.c.b16 %v1462, %v1461
      %v1891 = vpack.c.b16 %v1464, %v1463
      %v1892 = vpack.c.b16 %v1466, %v1465
      %v1893 = vpack.c.b16 %v1468, %v1467
      %v1894 = vpack.c.b16 %v1470, %v1469
      %v1895 = vpack.c.b16 %v1472, %v1471
      %v1896 = vpack.c.b16 %v1474, %v1473
      %v1897 = vpack.c.b16 %v1476, %v1475
      %v1898 = vpack.c.b16 %v1478, %v1477
      %v1899 = vpack.c.b16 %v1480, %v1479
      %v1900 = vpack.c.b16 %v1482, %v1481
      %v1901 = vpack.c.b16 %v1484, %v1483
      %v1902 = vpack.c.b16 %v1486, %v1485
      %v1903 = vpack.c.b16 %v1488, %v1487
      %v1904 = vpack.c.b16 %v1490, %v1489
      %v1905 = vpack.c.b16 %v1492, %v1491
      %v1906 = vpack.c.b16 %v1494, %v1493
      %v1907 = vpack.c.b16 %v1496, %v1495
      %v1908 = vpack.c.b16 %v1498, %v1497
      %v1909 = vpack.c.b16 %v1500, %v1499
      %v1910 = vpack.c.b16 %v1502, %v1501
      %v1911 = vpack.c.b16 %v1504, %v1503
      %v1912 = vpack.c.b16 %v1506, %v1505
      %v1913 = vpack.c.b16 %v1508, %v1507
      %v1914 = vpack.c.b16 %v1510, %v1509
      %v1915 = vpack.c.b16 %v1512, %v1511
      %v1916 = vpack.c.b16 %v1514, %v1513
      %v1917 = vpack.c.b16 %v1516, %v1515
      %v1918 = vpack.c.b16 %v1518, %v1517
      %v1919 = vpack.c.b16 %v1520, %v1519
      %v1920 = vpack.c.b16 %v1522, %v1521
      %v1921 = vpack.c.b16 %v1524, %v1523
      %v1922 = vpack.c.b16 %v1526, %v1525
      %v1923 = vpack.c.b16 %v1528, %v1527
      %v1924 = vpack.c.b16 %v1530, %v1529
      %v1925 = vpack.c.b16 %v1532, %v1531
      %v1926 = vpack.c.b16 %v1534, %v1533
      %v1927 = vpack.c.b16 %v1536, %v1535
      %v1928 = vpack.c.b16 %v1538, %v1537
      %v1929 = vpack.c.b16 %v1540, %v1539
      %v1930 = vpack.c.b16 %v1542, %v1541
      %v1931 = vpack.c.b16 %v1544, %v1543
      %v1932 = vpack.c.b16 %v1546, %v1545
      %v1933 = vpack.c.b16 %v1548, %v1547
      %v1934 = vpack.c.b16 %v1550, %v1549
      %v1935 = vpack.c.b16 %v1552, %v1551
      %v1936 = vpack.c.b16 %v1554, %v1553
      %v1937 = vpack.c.b16 %v1556, %v1555
      %v1938 = vpack.c.b16 %v1558, %v1557
      %v1939 = vpack.c.b16 %v1560, %v1559
      %v1940 = vpack.c.b16 %v1562, %v1561
      %v1941 = vpack.c.b16 %v1564, %v1563
      %v1942 = vpack.c.b16 %v1566, %v1565
      %v1943 = vpack.c.b16 %v1568, %v1567
      %v1944 = vpack.c.b16 %v1570, %v1569
      %v1945 = vpack.c.b16 %v1572, %v1571
      %v1946 = vpack.c.b16 %v1574, %v1573
      %v1947 = vpack.c.b16 %v1576, %v1575
      %v1948 = vpack.c.b16 %v1578, %v1577
      %v1949 = vpack.c.b16 %v1580, %v1579
      %v1950 = vpack.c.b16 %v1582, %v1581
      %v1951 = vpack.c.b16 %v1584, %v1583
      %v1952 = vpack.c.b16 %v1586, %v1585
      %v1953 = vpack.c.b16 %v1588, %v1587
      %v1954 = vpack.c.b16 %v1590, %v1589
      %v1955 = vpack.c.b16 %v1592, %v1591
      %v1956 = vpack.c.b16 %v1594, %v1593
      %v1957 = vpack.c.b16 %v1596, %v1595
      %v1958 = vpack.c.b16 %v1598, %v1597
      %v1959 = vpack.c.b16 %v1600, %v1599
      %v1960 = vpack.c.b16 %v1602, %v1601
      %v1961 = vpack.c.b16 %v1604, %v1603
      %v1962 = vpack.c.b16 %v1606, %v1605
      %v1963 = vpack.c.b16 %v1608, %v1607
      %v1964 = vpack.c.b16 %v1610, %v1609
      %v1965 = vpack.c.b16 %v1612, %v1611
      %v1966 = vpack.c.b16 %v1614, %v1613
      %v1967 = vpack.c.b16 %v1616, %v1615
      %v1968 = vpack.c.b16 %v1618, %v1617
      %v1969 = vpack.c.b16 %v1620, %v1619
      %v1970 = vpack.c.b16 %v1622, %v1621
      %v1971 = vpack.c.b16 %v1624, %v1623
      %v1972 = vpack.c.b16 %v1626, %v1625
      %v1973 = vpack.c.b16 %v1628, %v1627
      %v1974 = vpack.c.b16 %v1630, %v1629
      %v1975 = vpack.c.b16 %v1632, %v1631
      %v1976 = vpack.c.b16 %v1634, %v1633
      %v1977 = vpack.c.b16 %v1636, %v1635
      %v1978 = vpack.c.b16 %v1638, %v1637
      %v1979 = vpack.c.b16 %v1640, %v1639
      %v1980 = vpack.c.b16 %v1642, %v1641
      %v1981 = vpack.c.b16 %v1644, %v1643
      %v1982 = vpack.c.b16 %v1646, %v1645
      %v1983 = vpack.c.b16 %v1648, %v1647
      %v1984 = vpack.c.b16 %v1650, %v1649
      %v1985 = vpack.c.b16 %v1652, %v1651
      %v1986 = vpack.c.b16 %v1654, %v1653
      %v1987 = vpack.c.b16 %v1656, %v1655
      %v1988 = vpack.c.b16 %v1658, %v1657
      %v1989 = vpack.c.b16 %v1660, %v1659
      %v1990 = vpack.c.b16 %v1662, %v1661
      %v1991 = vpack.c.b16 %v1664, %v1663
      %v1992 = vpack.c.b16 %v1666, %v1665
      %v1993 = vpack.c.b16 %v1668, %v1667
      %v1994 = vpack.c.b16 %v1670, %v1669
      %v1995 = vpack.c.b16 %v1672, %v1671
      %v1996 = vpack.c.b16 %v1674, %v1673
      %v1997 = vpack.c.b16 %v1676, %v1675
      %v1998 = vpack.c.b16 %v1678, %v1677
      %v1999 = vpack.c.b16 %v1680, %v1679
      %v2000 = vpack.c.b16 %v1682, %v1681
      %v2001 = vpack.c.b16 %v1684, %v1683
      %v2002 = vpack.c.b16 %v1686, %v1685
      %v2003 = vpack.c.b16 %v1688, %v1687
      %v2004 = vpack.c.b16 %v1690, %v1689
      %v2005 = vpack.c.b16 %v1692, %v1691
      %v2006 = vpack.c.b16 %v1694, %v1693
      %v2007 = vpack.c.b16 %v1696, %v1695
      %v2008 = vpack.c.b16 %v1698, %v1697
      %v2009 = vpack.c.b16 %v1700, %v1699
      %v2010 = vpack.c.b16 %v1702, %v1701
      %v2011 = vpack.c.b16 %v1704, %v1703
      %v2012 = vpack.c.b16 %v1706, %v1705
      %v2013 = vpack.c.b16 %v1708, %v1707
      %v2014 = vpack.c.b16 %v1710, %v1709
      %v2015 = vpack.c.b16 %v1712, %v1711
      %v2016 = vpack.c.b16 %v1714, %v1713
      %v2017 = vpack.c.b16 %v1716, %v1715
      %v2018 = vpack.c.b16 %v1718, %v1717
      %v2019 = vpack.c.b16 %v1720, %v1719
      %v2020 = vpack.c.b16 %v1722, %v1721
      %v2021 = vpack.c.b16 %v1724, %v1723
      %v2022 = vpack.c.b16 %v1726, %v1725
      %v2023 = vpack.c.b16 %v1728, %v1727
      %v2024 = vpack.c.b16 %v1730, %v1729
      %v2025 = vpack.c.b16 %v1732, %v1731
      %v2026 = vpack.c.b16 %v1734, %v1733
      %v2027 = vpack.c.b16 %v1736, %v1735
      %v2028 = vpack.c.b16 %v1738, %v1737
      %v2029 = vpack.c.b16 %v1740, %v1739
      %v2030 = vpack.c.b16 %v1742, %v1741
      %v2031 = vpack.c.b16 %v1744, %v1743
      %v2032 = vpack.c.b16 %v1746, %v1745
      %v2033 = vpack.c.b16 %v1748, %v1747
      %v2034 = vpack.c.b16 %v1750, %v1749
      %v2035 = vpack.c.b16 %v1752, %v1751
      %v2036 = vpack.c.b16 %v1754, %v1753
      %v2037 = vpack.c.b16 %v1756, %v1755
      %v2038 = vpack.c.b16 %v1758, %v1757
      %v2039 = vpack.c.b16 %v1760, %v1759
      %v2040 = vpack.c.b16 %v1762, %v1761
      %v2041 = vpack.c.b16 %v1764, %v1763
      %v2042 = vpack.c.b16 %v1766, %v1765
      %v2043 = vpack.c.b16 %v1768, %v1767
      %v2044 = vpack.c.b16 %v1770, %v1769
      %v2045 = vpack.c.b16 %v1772, %v1771
      %v2046 = vpack.c.b16 %v1774, %v1773
      %v2047 = vpack.c.b16 %v1776, %v1775
      %v2048 = vpack.c.b16 %v1778, %v1777
      %v2049 = vpack.c.b16 %v1780, %v1779
      %v2050 = vpack.c.b16 %v1782, %v1781
      %v2051 = vpack.c.b16 %v1784, %v1783
      %v2052 = vpack.c.b16 %v1786, %v1785
      %v2053 = vpack.c.b16 %v1788, %v1787
      %v2054 = vpack.c.b16 %v1790, %v1789
      %v2055 = vpack.c.b16 %v1792, %v1791
      %v2056 = vpack.c.b16 %v1794, %v1793
      %v2057 = vpack.c.b16 %v1796, %v1795
      %v2058 = vpack.c.b16 %v1798, %v1797
      %v2059 = vpack.c.b16 %v1800, %v1799
      %v2060 = vpack.c.b16 %v1802, %v1801
      %v2061 = vpack.c.b16 %v1804, %v1803
      %v2062 = vpack.c.b16 %v1806, %v1805
      %v2067 = vunpack.c.l.b16 %v779
      %v2068 = vunpack.c.l.b16 %v780
      %v2069 = vunpack.c.l.b16 %v781
      %v2070 = vunpack.c.l.b16 %v782
      %v2071 = vpack.c.b16 %v2068, %v2067
      %v2072 = vpack.c.b16 %v2070, %v2069
      %vm2075 = vcmask 261120
      %v2077 = vsel %vm2075, %v1807, 0
      %v2080 = vsel %vm2075, %v1808, 0
      %v2083 = vsel %vm2075, %v1809, 0
      %v2086 = vsel %vm2075, %v1810, 0
      %v2089 = vsel %vm2075, %v1811, 0
      %v2092 = vsel %vm2075, %v1812, 0
      %v2095 = vsel %vm2075, %v1813, 0
      %v2098 = vsel %vm2075, %v1814, 0
      %v2101 = vsel %vm2075, %v1815, 0
      %v2104 = vsel %vm2075, %v1816, 0
      %v2107 = vsel %vm2075, %v1817, 0
      %v2110 = vsel %vm2075, %v1818, 0
      %v2113 = vsel %vm2075, %v1819, 0
      %v2116 = vsel %vm2075, %v1820, 0
      %v2119 = vsel %vm2075, %v1821, 0
      %v2122 = vsel %vm2075, %v1822, 0
      %v2125 = vsel %vm2075, %v1823, 0
      %v2128 = vsel %vm2075, %v1824, 0
      %v2131 = vsel %vm2075, %v1825, 0
      %v2134 = vsel %vm2075, %v1826, 0
      %v2137 = vsel %vm2075, %v1827, 0
      %v2140 = vsel %vm2075, %v1828, 0
      %v2143 = vsel %vm2075, %v1829, 0
      %v2146 = vsel %vm2075, %v1830, 0
      %v2149 = vsel %vm2075, %v1831, 0
      %v2152 = vsel %vm2075, %v1832, 0
      %v2155 = vsel %vm2075, %v1833, 0
      %v2158 = vsel %vm2075, %v1834, 0
      %v2161 = vsel %vm2075, %v1835, 0
      %v2164 = vsel %vm2075, %v1836, 0
      %v2167 = vsel %vm2075, %v1837, 0
      %v2170 = vsel %vm2075, %v1838, 0
      %v2173 = vsel %vm2075, %v1839, 0
      %v2176 = vsel %vm2075, %v1840, 0
      %v2179 = vsel %vm2075, %v1841, 0
      %v2182 = vsel %vm2075, %v1842, 0
      %v2185 = vsel %vm2075, %v1843, 0
      %v2188 = vsel %vm2075, %v1844, 0
      %v2191 = vsel %vm2075, %v1845, 0
      %v2194 = vsel %vm2075, %v1846, 0
      %v2197 = vsel %vm2075, %v1847, 0
      %v2200 = vsel %vm2075, %v1848, 0
      %v2203 = vsel %vm2075, %v1849, 0
      %v2206 = vsel %vm2075, %v1850, 0
      %v2209 = vsel %vm2075, %v1851, 0
      %v2212 = vsel %vm2075, %v1852, 0
      %v2215 = vsel %vm2075, %v1853, 0
      %v2218 = vsel %vm2075, %v1854, 0
      %v2221 = vsel %vm2075, %v1855, 0
      %v2224 = vsel %vm2075, %v1856, 0
      %v2227 = vsel %vm2075, %v1857, 0
      %v2230 = vsel %vm2075, %v1858, 0
      %v2233 = vsel %vm2075, %v1859, 0
      %v2236 = vsel %vm2075, %v1860, 0
      %v2239 = vsel %vm2075, %v1861, 0
      %v2242 = vsel %vm2075, %v1862, 0
      %v2245 = vsel %vm2075, %v1863, 0
      %v2248 = vsel %vm2075, %v1864, 0
      %v2251 = vsel %vm2075, %v1865, 0
      %v2254 = vsel %vm2075, %v1866, 0
      %v2257 = vsel %vm2075, %v1867, 0
      %v2260 = vsel %vm2075, %v1868, 0
      %v2263 = vsel %vm2075, %v1869, 0
      %v2266 = vsel %vm2075, %v1870, 0
      %v2269 = vsel %vm2075, %v1871, 0
      %v2272 = vsel %vm2075, %v1872, 0
      %v2275 = vsel %vm2075, %v1873, 0
      %v2278 = vsel %vm2075, %v1874, 0
      %v2281 = vsel %vm2075, %v1875, 0
      %v2284 = vsel %vm2075, %v1876, 0
      %v2287 = vsel %vm2075, %v1877, 0
      %v2290 = vsel %vm2075, %v1878, 0
      %v2293 = vsel %vm2075, %v1879, 0
      %v2296 = vsel %vm2075, %v1880, 0
      %v2299 = vsel %vm2075, %v1881, 0
      %v2302 = vsel %vm2075, %v1882, 0
      %v2305 = vsel %vm2075, %v1883, 0
      %v2308 = vsel %vm2075, %v1884, 0
      %v2311 = vsel %vm2075, %v1885, 0
      %v2314 = vsel %vm2075, %v1886, 0
      %v2317 = vsel %vm2075, %v1887, 0
      %v2320 = vsel %vm2075, %v1888, 0
      %v2323 = vsel %vm2075, %v1889, 0
      %v2326 = vsel %vm2075, %v1890, 0
      %v2329 = vsel %vm2075, %v1891, 0
      %v2332 = vsel %vm2075, %v1892, 0
      %v2335 = vsel %vm2075, %v1893, 0
      %v2338 = vsel %vm2075, %v1894, 0
      %v2341 = vsel %vm2075, %v1895, 0
      %v2344 = vsel %vm2075, %v1896, 0
      %v2347 = vsel %vm2075, %v1897, 0
      %v2350 = vsel %vm2075, %v1898, 0
      %v2353 = vsel %vm2075, %v1899, 0
      %v2356 = vsel %vm2075, %v1900, 0
      %v2359 = vsel %vm2075, %v1901, 0
      %v2362 = vsel %vm2075, %v1902, 0
      %v2365 = vsel %vm2075, %v1903, 0
      %v2368 = vsel %vm2075, %v1904, 0
      %v2371 = vsel %vm2075, %v1905, 0
      %v2374 = vsel %vm2075, %v1906, 0
      %v2377 = vsel %vm2075, %v1907, 0
      %v2380 = vsel %vm2075, %v1908, 0
      %v2383 = vsel %vm2075, %v1909, 0
      %v2386 = vsel %vm2075, %v1910, 0
      %v2389 = vsel %vm2075, %v1911, 0
      %v2392 = vsel %vm2075, %v1912, 0
      %v2395 = vsel %vm2075, %v1913, 0
      %v2398 = vsel %vm2075, %v1914, 0
      %v2401 = vsel %vm2075, %v1915, 0
      %v2404 = vsel %vm2075, %v1916, 0
      %v2407 = vsel %vm2075, %v1917, 0
      %v2410 = vsel %vm2075, %v1918, 0
      %v2413 = vsel %vm2075, %v1919, 0
      %v2416 = vsel %vm2075, %v1920, 0
      %v2419 = vsel %vm2075, %v1921, 0
      %v2422 = vsel %vm2075, %v1922, 0
      %v2425 = vsel %vm2075, %v1923, 0
      %v2428 = vsel %vm2075, %v1924, 0
      %v2431 = vsel %vm2075, %v1925, 0
      %v2434 = vsel %vm2075, %v1926, 0
      %v2437 = vsel %vm2075, %v1927, 0
      %v2440 = vsel %vm2075, %v1928, 0
      %v2443 = vsel %vm2075, %v1929, 0
      %v2446 = vsel %vm2075, %v1930, 0
      %v2449 = vsel %vm2075, %v1931, 0
      %v2452 = vsel %vm2075, %v1932, 0
      %v2455 = vsel %vm2075, %v1933, 0
      %v2458 = vsel %vm2075, %v1934, 0
      %v2461 = vsel %vm2075, %v1935, 0
      %v2464 = vsel %vm2075, %v1936, 0
      %v2467 = vsel %vm2075, %v1937, 0
      %v2470 = vsel %vm2075, %v1938, 0
      %v2473 = vsel %vm2075, %v1939, 0
      %v2476 = vsel %vm2075, %v1940, 0
      %v2479 = vsel %vm2075, %v1941, 0
      %v2482 = vsel %vm2075, %v1942, 0
      %v2485 = vsel %vm2075, %v1943, 0
      %v2488 = vsel %vm2075, %v1944, 0
      %v2491 = vsel %vm2075, %v1945, 0
      %v2494 = vsel %vm2075, %v1946, 0
      %v2497 = vsel %vm2075, %v1947, 0
      %v2500 = vsel %vm2075, %v1948, 0
      %v2503 = vsel %vm2075, %v1949, 0
      %v2506 = vsel %vm2075, %v1950, 0
      %v2509 = vsel %vm2075, %v1951, 0
      %v2512 = vsel %vm2075, %v1952, 0
      %v2515 = vsel %vm2075, %v1953, 0
      %v2518 = vsel %vm2075, %v1954, 0
      %v2521 = vsel %vm2075, %v1955, 0
      %v2524 = vsel %vm2075, %v1956, 0
      %v2527 = vsel %vm2075, %v1957, 0
      %v2530 = vsel %vm2075, %v1958, 0
      %v2533 = vsel %vm2075, %v1959, 0
      %v2536 = vsel %vm2075, %v1960, 0
      %v2539 = vsel %vm2075, %v1961, 0
      %v2542 = vsel %vm2075, %v1962, 0
      %v2545 = vsel %vm2075, %v1963, 0
      %v2548 = vsel %vm2075, %v1964, 0
      %v2551 = vsel %vm2075, %v1965, 0
      %v2554 = vsel %vm2075, %v1966, 0
      %v2557 = vsel %vm2075, %v1967, 0
      %v2560 = vsel %vm2075, %v1968, 0
      %v2563 = vsel %vm2075, %v1969, 0
      %v2566 = vsel %vm2075, %v1970, 0
      %v2569 = vsel %vm2075, %v1971, 0
      %v2572 = vsel %vm2075, %v1972, 0
      %v2575 = vsel %vm2075, %v1973, 0
      %v2578 = vsel %vm2075, %v1974, 0
      %v2581 = vsel %vm2075, %v1975, 0
      %v2584 = vsel %vm2075, %v1976, 0
      %v2587 = vsel %vm2075, %v1977, 0
      %v2590 = vsel %vm2075, %v1978, 0
      %v2593 = vsel %vm2075, %v1979, 0
      %v2596 = vsel %vm2075, %v1980, 0
      %v2599 = vsel %vm2075, %v1981, 0
      %v2602 = vsel %vm2075, %v1982, 0
      %v2605 = vsel %vm2075, %v1983, 0
      %v2608 = vsel %vm2075, %v1984, 0
      %v2611 = vsel %vm2075, %v1985, 0
      %v2614 = vsel %vm2075, %v1986, 0
      %v2617 = vsel %vm2075, %v1987, 0
      %v2620 = vsel %vm2075, %v1988, 0
      %v2623 = vsel %vm2075, %v1989, 0
      %v2626 = vsel %vm2075, %v1990, 0
      %v2629 = vsel %vm2075, %v1991, 0
      %v2632 = vsel %vm2075, %v1992, 0
      %v2635 = vsel %vm2075, %v1993, 0
      %v2638 = vsel %vm2075, %v1994, 0
      %v2641 = vsel %vm2075, %v1995, 0
      %v2644 = vsel %vm2075, %v1996, 0
      %v2647 = vsel %vm2075, %v1997, 0
      %v2650 = vsel %vm2075, %v1998, 0
      %v2653 = vsel %vm2075, %v1999, 0
      %v2656 = vsel %vm2075, %v2000, 0
      %v2659 = vsel %vm2075, %v2001, 0
      %v2662 = vsel %vm2075, %v2002, 0
      %v2665 = vsel %vm2075, %v2003, 0
      %v2668 = vsel %vm2075, %v2004, 0
      %v2671 = vsel %vm2075, %v2005, 0
      %v2674 = vsel %vm2075, %v2006, 0
      %v2677 = vsel %vm2075, %v2007, 0
      %v2680 = vsel %vm2075, %v2008, 0
      %v2683 = vsel %vm2075, %v2009, 0
      %v2686 = vsel %vm2075, %v2010, 0
      %v2689 = vsel %vm2075, %v2011, 0
      %v2692 = vsel %vm2075, %v2012, 0
      %v2695 = vsel %vm2075, %v2013, 0
      %v2698 = vsel %vm2075, %v2014, 0
      %v2701 = vsel %vm2075, %v2015, 0
      %v2704 = vsel %vm2075, %v2016, 0
      %v2707 = vsel %vm2075, %v2017, 0
      %v2710 = vsel %vm2075, %v2018, 0
      %v2713 = vsel %vm2075, %v2019, 0
      %v2716 = vsel %vm2075, %v2020, 0
      %v2719 = vsel %vm2075, %v2021, 0
      %v2722 = vsel %vm2075, %v2022, 0
      %v2725 = vsel %vm2075, %v2023, 0
      %v2728 = vsel %vm2075, %v2024, 0
      %v2731 = vsel %vm2075, %v2025, 0
      %v2734 = vsel %vm2075, %v2026, 0
      %v2737 = vsel %vm2075, %v2027, 0
      %v2740 = vsel %vm2075, %v2028, 0
      %v2743 = vsel %vm2075, %v2029, 0
      %v2746 = vsel %vm2075, %v2030, 0
      %v2749 = vsel %vm2075, %v2031, 0
      %v2752 = vsel %vm2075, %v2032, 0
      %v2755 = vsel %vm2075, %v2033, 0
      %v2758 = vsel %vm2075, %v2034, 0
      %v2761 = vsel %vm2075, %v2035, 0
      %v2764 = vsel %vm2075, %v2036, 0
      %v2767 = vsel %vm2075, %v2037, 0
      %v2770 = vsel %vm2075, %v2038, 0
      %v2773 = vsel %vm2075, %v2039, 0
      %v2776 = vsel %vm2075, %v2040, 0
      %v2779 = vsel %vm2075, %v2041, 0
      %v2782 = vsel %vm2075, %v2042, 0
      %v2785 = vsel %vm2075, %v2043, 0
      %v2788 = vsel %vm2075, %v2044, 0
      %v2791 = vsel %vm2075, %v2045, 0
      %v2794 = vsel %vm2075, %v2046, 0
      %v2797 = vsel %vm2075, %v2047, 0
      %v2800 = vsel %vm2075, %v2048, 0
      %v2803 = vsel %vm2075, %v2049, 0
      %v2806 = vsel %vm2075, %v2050, 0
      %v2809 = vsel %vm2075, %v2051, 0
      %v2812 = vsel %vm2075, %v2052, 0
      %v2815 = vsel %vm2075, %v2053, 0
      %v2818 = vsel %vm2075, %v2054, 0
      %v2821 = vsel %vm2075, %v2055, 0
      %v2824 = vsel %vm2075, %v2056, 0
      %v2827 = vsel %vm2075, %v2057, 0
      %v2830 = vsel %vm2075, %v2058, 0
      %v2833 = vsel %vm2075, %v2059, 0
      %v2836 = vsel %vm2075, %v2060, 0
      %v2839 = vsel %vm2075, %v2061, 0
      %v2842 = vsel %vm2075, %v2062, 0
      %2844 = vmatpush.bf16.msra.mxu0 0
      %2845 = vmatpush.bf16.msra.mxu0 0
      %2846 = vmatpush.bf16.msra.mxu0 0
      %2847 = vmatpush.bf16.msra.mxu0 0
      %2848 = vmatpush.bf16.msra.mxu0 0
      %2849 = vmatpush.bf16.msra.mxu0 0
      %2850 = vmatpush.bf16.msra.mxu0 %v2072
      %2851 = vmatpush.bf16.msra.mxu0 %v2071
      %2852 = vmatmul.bf16.gmra.mxu0 %v2077
      %v2853 = vpop.f32.mrf.mxu0
      %v2854 = vadd.f32 0.0, %v2853
      %v2855 = vpop.f32.mrf.mxu0
      %v2856 = vadd.f32 0.0, %v2855
      %2857 = vmatmul.bf16.gmra.mxu0 %v2080
      %v2858 = vpop.f32.mrf.mxu0
      %v2859 = vadd.f32 0.0, %v2858
      %v2860 = vpop.f32.mrf.mxu0
      %v2861 = vadd.f32 0.0, %v2860
      %2862 = vmatmul.bf16.gmra.mxu0 %v2083
      %v2863 = vpop.f32.mrf.mxu0
      %v2864 = vadd.f32 0.0, %v2863
      %v2865 = vpop.f32.mrf.mxu0
      %v2866 = vadd.f32 0.0, %v2865
      %2867 = vmatmul.bf16.gmra.mxu0 %v2086
      %v2868 = vpop.f32.mrf.mxu0
      %v2869 = vadd.f32 0.0, %v2868
      %v2870 = vpop.f32.mrf.mxu0
      %v2871 = vadd.f32 0.0, %v2870
      %2872 = vmatmul.bf16.gmra.mxu0 %v2089
      %v2873 = vpop.f32.mrf.mxu0
      %v2874 = vadd.f32 0.0, %v2873
      %v2875 = vpop.f32.mrf.mxu0
      %v2876 = vadd.f32 0.0, %v2875
      %2877 = vmatmul.bf16.gmra.mxu0 %v2092
      %v2878 = vpop.f32.mrf.mxu0
      %v2879 = vadd.f32 0.0, %v2878
      %v2880 = vpop.f32.mrf.mxu0
      %v2881 = vadd.f32 0.0, %v2880
      %2882 = vmatmul.bf16.gmra.mxu0 %v2095
      %v2883 = vpop.f32.mrf.mxu0
      %v2884 = vadd.f32 0.0, %v2883
      %v2885 = vpop.f32.mrf.mxu0
      %v2886 = vadd.f32 0.0, %v2885
      %2887 = vmatmul.bf16.gmra.mxu0 %v2098
      %v2888 = vpop.f32.mrf.mxu0
      %v2889 = vadd.f32 0.0, %v2888
      %v2890 = vpop.f32.mrf.mxu0
      %v2891 = vadd.f32 0.0, %v2890
      %2892 = vmatmul.bf16.gmra.mxu0 %v2101
      %v2893 = vpop.f32.mrf.mxu0
      %v2894 = vadd.f32 0.0, %v2893
      %v2895 = vpop.f32.mrf.mxu0
      %v2896 = vadd.f32 0.0, %v2895
      %2897 = vmatmul.bf16.gmra.mxu0 %v2104
      %v2898 = vpop.f32.mrf.mxu0
      %v2899 = vadd.f32 0.0, %v2898
      %v2900 = vpop.f32.mrf.mxu0
      %v2901 = vadd.f32 0.0, %v2900
      %2902 = vmatmul.bf16.gmra.mxu0 %v2107
      %v2903 = vpop.f32.mrf.mxu0
      %v2904 = vadd.f32 0.0, %v2903
      %v2905 = vpop.f32.mrf.mxu0
      %v2906 = vadd.f32 0.0, %v2905
      %2907 = vmatmul.bf16.gmra.mxu0 %v2110
      %v2908 = vpop.f32.mrf.mxu0
      %v2909 = vadd.f32 0.0, %v2908
      %v2910 = vpop.f32.mrf.mxu0
      %v2911 = vadd.f32 0.0, %v2910
      %2912 = vmatmul.bf16.gmra.mxu0 %v2113
      %v2913 = vpop.f32.mrf.mxu0
      %v2914 = vadd.f32 0.0, %v2913
      %v2915 = vpop.f32.mrf.mxu0
      %v2916 = vadd.f32 0.0, %v2915
      %2917 = vmatmul.bf16.gmra.mxu0 %v2116
      %v2918 = vpop.f32.mrf.mxu0
      %v2919 = vadd.f32 0.0, %v2918
      %v2920 = vpop.f32.mrf.mxu0
      %v2921 = vadd.f32 0.0, %v2920
      %2922 = vmatmul.bf16.gmra.mxu0 %v2119
      %v2923 = vpop.f32.mrf.mxu0
      %v2924 = vadd.f32 0.0, %v2923
      %v2925 = vpop.f32.mrf.mxu0
      %v2926 = vadd.f32 0.0, %v2925
      %2927 = vmatmul.bf16.gmra.mxu0 %v2122
      %v2928 = vpop.f32.mrf.mxu0
      %v2929 = vadd.f32 0.0, %v2928
      %v2930 = vpop.f32.mrf.mxu0
      %v2931 = vadd.f32 0.0, %v2930
      %2932 = vmatmul.bf16.gmra.mxu0 %v2125
      %v2933 = vpop.f32.mrf.mxu0
      %v2934 = vadd.f32 0.0, %v2933
      %v2935 = vpop.f32.mrf.mxu0
      %v2936 = vadd.f32 0.0, %v2935
      %2937 = vmatmul.bf16.gmra.mxu0 %v2128
      %v2938 = vpop.f32.mrf.mxu0
      %v2939 = vadd.f32 0.0, %v2938
      %v2940 = vpop.f32.mrf.mxu0
      %v2941 = vadd.f32 0.0, %v2940
      %2942 = vmatmul.bf16.gmra.mxu0 %v2131
      %v2943 = vpop.f32.mrf.mxu0
      %v2944 = vadd.f32 0.0, %v2943
      %v2945 = vpop.f32.mrf.mxu0
      %v2946 = vadd.f32 0.0, %v2945
      %2947 = vmatmul.bf16.gmra.mxu0 %v2134
      %v2948 = vpop.f32.mrf.mxu0
      %v2949 = vadd.f32 0.0, %v2948
      %v2950 = vpop.f32.mrf.mxu0
      %v2951 = vadd.f32 0.0, %v2950
      %2952 = vmatmul.bf16.gmra.mxu0 %v2137
      %v2953 = vpop.f32.mrf.mxu0
      %v2954 = vadd.f32 0.0, %v2953
      %v2955 = vpop.f32.mrf.mxu0
      %v2956 = vadd.f32 0.0, %v2955
      %2957 = vmatmul.bf16.gmra.mxu0 %v2140
      %v2958 = vpop.f32.mrf.mxu0
      %v2959 = vadd.f32 0.0, %v2958
      %v2960 = vpop.f32.mrf.mxu0
      %v2961 = vadd.f32 0.0, %v2960
      %2962 = vmatmul.bf16.gmra.mxu0 %v2143
      %v2963 = vpop.f32.mrf.mxu0
      %v2964 = vadd.f32 0.0, %v2963
      %v2965 = vpop.f32.mrf.mxu0
      %v2966 = vadd.f32 0.0, %v2965
      %2967 = vmatmul.bf16.gmra.mxu0 %v2146
      %v2968 = vpop.f32.mrf.mxu0
      %v2969 = vadd.f32 0.0, %v2968
      %v2970 = vpop.f32.mrf.mxu0
      %v2971 = vadd.f32 0.0, %v2970
      %2972 = vmatmul.bf16.gmra.mxu0 %v2149
      %v2973 = vpop.f32.mrf.mxu0
      %v2974 = vadd.f32 0.0, %v2973
      %v2975 = vpop.f32.mrf.mxu0
      %v2976 = vadd.f32 0.0, %v2975
      %2977 = vmatmul.bf16.gmra.mxu0 %v2152
      %v2978 = vpop.f32.mrf.mxu0
      %v2979 = vadd.f32 0.0, %v2978
      %v2980 = vpop.f32.mrf.mxu0
      %v2981 = vadd.f32 0.0, %v2980
      %2982 = vmatmul.bf16.gmra.mxu0 %v2155
      %v2983 = vpop.f32.mrf.mxu0
      %v2984 = vadd.f32 0.0, %v2983
      %v2985 = vpop.f32.mrf.mxu0
      %v2986 = vadd.f32 0.0, %v2985
      %2987 = vmatmul.bf16.gmra.mxu0 %v2158
      %v2988 = vpop.f32.mrf.mxu0
      %v2989 = vadd.f32 0.0, %v2988
      %v2990 = vpop.f32.mrf.mxu0
      %v2991 = vadd.f32 0.0, %v2990
      %2992 = vmatmul.bf16.gmra.mxu0 %v2161
      %v2993 = vpop.f32.mrf.mxu0
      %v2994 = vadd.f32 0.0, %v2993
      %v2995 = vpop.f32.mrf.mxu0
      %v2996 = vadd.f32 0.0, %v2995
      %2997 = vmatmul.bf16.gmra.mxu0 %v2164
      %v2998 = vpop.f32.mrf.mxu0
      %v2999 = vadd.f32 0.0, %v2998
      %v3000 = vpop.f32.mrf.mxu0
      %v3001 = vadd.f32 0.0, %v3000
      %3002 = vmatmul.bf16.gmra.mxu0 %v2167
      %v3003 = vpop.f32.mrf.mxu0
      %v3004 = vadd.f32 0.0, %v3003
      %v3005 = vpop.f32.mrf.mxu0
      %v3006 = vadd.f32 0.0, %v3005
      %3007 = vmatmul.bf16.gmra.mxu0 %v2170
      %v3008 = vpop.f32.mrf.mxu0
      %v3009 = vadd.f32 0.0, %v3008
      %v3010 = vpop.f32.mrf.mxu0
      %v3011 = vadd.f32 0.0, %v3010
      %3012 = vmatmul.bf16.gmra.mxu0 %v2173
      %v3013 = vpop.f32.mrf.mxu0
      %v3014 = vadd.f32 0.0, %v3013
      %v3015 = vpop.f32.mrf.mxu0
      %v3016 = vadd.f32 0.0, %v3015
      %3017 = vmatmul.bf16.gmra.mxu0 %v2176
      %v3018 = vpop.f32.mrf.mxu0
      %v3019 = vadd.f32 0.0, %v3018
      %v3020 = vpop.f32.mrf.mxu0
      %v3021 = vadd.f32 0.0, %v3020
      %3022 = vmatmul.bf16.gmra.mxu0 %v2179
      %v3023 = vpop.f32.mrf.mxu0
      %v3024 = vadd.f32 0.0, %v3023
      %v3025 = vpop.f32.mrf.mxu0
      %v3026 = vadd.f32 0.0, %v3025
      %3027 = vmatmul.bf16.gmra.mxu0 %v2182
      %v3028 = vpop.f32.mrf.mxu0
      %v3029 = vadd.f32 0.0, %v3028
      %v3030 = vpop.f32.mrf.mxu0
      %v3031 = vadd.f32 0.0, %v3030
      %3032 = vmatmul.bf16.gmra.mxu0 %v2185
      %v3033 = vpop.f32.mrf.mxu0
      %v3034 = vadd.f32 0.0, %v3033
      %v3035 = vpop.f32.mrf.mxu0
      %v3036 = vadd.f32 0.0, %v3035
      %3037 = vmatmul.bf16.gmra.mxu0 %v2188
      %v3038 = vpop.f32.mrf.mxu0
      %v3039 = vadd.f32 0.0, %v3038
      %v3040 = vpop.f32.mrf.mxu0
      %v3041 = vadd.f32 0.0, %v3040
      %3042 = vmatmul.bf16.gmra.mxu0 %v2191
      %v3043 = vpop.f32.mrf.mxu0
      %v3044 = vadd.f32 0.0, %v3043
      %v3045 = vpop.f32.mrf.mxu0
      %v3046 = vadd.f32 0.0, %v3045
      %3047 = vmatmul.bf16.gmra.mxu0 %v2194
      %v3048 = vpop.f32.mrf.mxu0
      %v3049 = vadd.f32 0.0, %v3048
      %v3050 = vpop.f32.mrf.mxu0
      %v3051 = vadd.f32 0.0, %v3050
      %3052 = vmatmul.bf16.gmra.mxu0 %v2197
      %v3053 = vpop.f32.mrf.mxu0
      %v3054 = vadd.f32 0.0, %v3053
      %v3055 = vpop.f32.mrf.mxu0
      %v3056 = vadd.f32 0.0, %v3055
      %3057 = vmatmul.bf16.gmra.mxu0 %v2200
      %v3058 = vpop.f32.mrf.mxu0
      %v3059 = vadd.f32 0.0, %v3058
      %v3060 = vpop.f32.mrf.mxu0
      %v3061 = vadd.f32 0.0, %v3060
      %3062 = vmatmul.bf16.gmra.mxu0 %v2203
      %v3063 = vpop.f32.mrf.mxu0
      %v3064 = vadd.f32 0.0, %v3063
      %v3065 = vpop.f32.mrf.mxu0
      %v3066 = vadd.f32 0.0, %v3065
      %3067 = vmatmul.bf16.gmra.mxu0 %v2206
      %v3068 = vpop.f32.mrf.mxu0
      %v3069 = vadd.f32 0.0, %v3068
      %v3070 = vpop.f32.mrf.mxu0
      %v3071 = vadd.f32 0.0, %v3070
      %3072 = vmatmul.bf16.gmra.mxu0 %v2209
      %v3073 = vpop.f32.mrf.mxu0
      %v3074 = vadd.f32 0.0, %v3073
      %v3075 = vpop.f32.mrf.mxu0
      %v3076 = vadd.f32 0.0, %v3075
      %3077 = vmatmul.bf16.gmra.mxu0 %v2212
      %v3078 = vpop.f32.mrf.mxu0
      %v3079 = vadd.f32 0.0, %v3078
      %v3080 = vpop.f32.mrf.mxu0
      %v3081 = vadd.f32 0.0, %v3080
      %3082 = vmatmul.bf16.gmra.mxu0 %v2215
      %v3083 = vpop.f32.mrf.mxu0
      %v3084 = vadd.f32 0.0, %v3083
      %v3085 = vpop.f32.mrf.mxu0
      %v3086 = vadd.f32 0.0, %v3085
      %3087 = vmatmul.bf16.gmra.mxu0 %v2218
      %v3088 = vpop.f32.mrf.mxu0
      %v3089 = vadd.f32 0.0, %v3088
      %v3090 = vpop.f32.mrf.mxu0
      %v3091 = vadd.f32 0.0, %v3090
      %3092 = vmatmul.bf16.gmra.mxu0 %v2221
      %v3093 = vpop.f32.mrf.mxu0
      %v3094 = vadd.f32 0.0, %v3093
      %v3095 = vpop.f32.mrf.mxu0
      %v3096 = vadd.f32 0.0, %v3095
      %3097 = vmatmul.bf16.gmra.mxu0 %v2224
      %v3098 = vpop.f32.mrf.mxu0
      %v3099 = vadd.f32 0.0, %v3098
      %v3100 = vpop.f32.mrf.mxu0
      %v3101 = vadd.f32 0.0, %v3100
      %3102 = vmatmul.bf16.gmra.mxu0 %v2227
      %v3103 = vpop.f32.mrf.mxu0
      %v3104 = vadd.f32 0.0, %v3103
      %v3105 = vpop.f32.mrf.mxu0
      %v3106 = vadd.f32 0.0, %v3105
      %3107 = vmatmul.bf16.gmra.mxu0 %v2230
      %v3108 = vpop.f32.mrf.mxu0
      %v3109 = vadd.f32 0.0, %v3108
      %v3110 = vpop.f32.mrf.mxu0
      %v3111 = vadd.f32 0.0, %v3110
      %3112 = vmatmul.bf16.gmra.mxu0 %v2233
      %v3113 = vpop.f32.mrf.mxu0
      %v3114 = vadd.f32 0.0, %v3113
      %v3115 = vpop.f32.mrf.mxu0
      %v3116 = vadd.f32 0.0, %v3115
      %3117 = vmatmul.bf16.gmra.mxu0 %v2236
      %v3118 = vpop.f32.mrf.mxu0
      %v3119 = vadd.f32 0.0, %v3118
      %v3120 = vpop.f32.mrf.mxu0
      %v3121 = vadd.f32 0.0, %v3120
      %3122 = vmatmul.bf16.gmra.mxu0 %v2239
      %v3123 = vpop.f32.mrf.mxu0
      %v3124 = vadd.f32 0.0, %v3123
      %v3125 = vpop.f32.mrf.mxu0
      %v3126 = vadd.f32 0.0, %v3125
      %3127 = vmatmul.bf16.gmra.mxu0 %v2242
      %v3128 = vpop.f32.mrf.mxu0
      %v3129 = vadd.f32 0.0, %v3128
      %v3130 = vpop.f32.mrf.mxu0
      %v3131 = vadd.f32 0.0, %v3130
      %3132 = vmatmul.bf16.gmra.mxu0 %v2245
      %v3133 = vpop.f32.mrf.mxu0
      %v3134 = vadd.f32 0.0, %v3133
      %v3135 = vpop.f32.mrf.mxu0
      %v3136 = vadd.f32 0.0, %v3135
      %3137 = vmatmul.bf16.gmra.mxu0 %v2248
      %v3138 = vpop.f32.mrf.mxu0
      %v3139 = vadd.f32 0.0, %v3138
      %v3140 = vpop.f32.mrf.mxu0
      %v3141 = vadd.f32 0.0, %v3140
      %3142 = vmatmul.bf16.gmra.mxu0 %v2251
      %v3143 = vpop.f32.mrf.mxu0
      %v3144 = vadd.f32 0.0, %v3143
      %v3145 = vpop.f32.mrf.mxu0
      %v3146 = vadd.f32 0.0, %v3145
      %3147 = vmatmul.bf16.gmra.mxu0 %v2254
      %v3148 = vpop.f32.mrf.mxu0
      %v3149 = vadd.f32 0.0, %v3148
      %v3150 = vpop.f32.mrf.mxu0
      %v3151 = vadd.f32 0.0, %v3150
      %3152 = vmatmul.bf16.gmra.mxu0 %v2257
      %v3153 = vpop.f32.mrf.mxu0
      %v3154 = vadd.f32 0.0, %v3153
      %v3155 = vpop.f32.mrf.mxu0
      %v3156 = vadd.f32 0.0, %v3155
      %3157 = vmatmul.bf16.gmra.mxu0 %v2260
      %v3158 = vpop.f32.mrf.mxu0
      %v3159 = vadd.f32 0.0, %v3158
      %v3160 = vpop.f32.mrf.mxu0
      %v3161 = vadd.f32 0.0, %v3160
      %3162 = vmatmul.bf16.gmra.mxu0 %v2263
      %v3163 = vpop.f32.mrf.mxu0
      %v3164 = vadd.f32 0.0, %v3163
      %v3165 = vpop.f32.mrf.mxu0
      %v3166 = vadd.f32 0.0, %v3165
      %3167 = vmatmul.bf16.gmra.mxu0 %v2266
      %v3168 = vpop.f32.mrf.mxu0
      %v3169 = vadd.f32 0.0, %v3168
      %v3170 = vpop.f32.mrf.mxu0
      %v3171 = vadd.f32 0.0, %v3170
      %3172 = vmatmul.bf16.gmra.mxu0 %v2269
      %v3173 = vpop.f32.mrf.mxu0
      %v3174 = vadd.f32 0.0, %v3173
      %v3175 = vpop.f32.mrf.mxu0
      %v3176 = vadd.f32 0.0, %v3175
      %3177 = vmatmul.bf16.gmra.mxu0 %v2272
      %v3178 = vpop.f32.mrf.mxu0
      %v3179 = vadd.f32 0.0, %v3178
      %v3180 = vpop.f32.mrf.mxu0
      %v3181 = vadd.f32 0.0, %v3180
      %3182 = vmatmul.bf16.gmra.mxu0 %v2275
      %v3183 = vpop.f32.mrf.mxu0
      %v3184 = vadd.f32 0.0, %v3183
      %v3185 = vpop.f32.mrf.mxu0
      %v3186 = vadd.f32 0.0, %v3185
      %3187 = vmatmul.bf16.gmra.mxu0 %v2278
      %v3188 = vpop.f32.mrf.mxu0
      %v3189 = vadd.f32 0.0, %v3188
      %v3190 = vpop.f32.mrf.mxu0
      %v3191 = vadd.f32 0.0, %v3190
      %3192 = vmatmul.bf16.gmra.mxu0 %v2281
      %v3193 = vpop.f32.mrf.mxu0
      %v3194 = vadd.f32 0.0, %v3193
      %v3195 = vpop.f32.mrf.mxu0
      %v3196 = vadd.f32 0.0, %v3195
      %3197 = vmatmul.bf16.gmra.mxu0 %v2284
      %v3198 = vpop.f32.mrf.mxu0
      %v3199 = vadd.f32 0.0, %v3198
      %v3200 = vpop.f32.mrf.mxu0
      %v3201 = vadd.f32 0.0, %v3200
      %3202 = vmatmul.bf16.gmra.mxu0 %v2287
      %v3203 = vpop.f32.mrf.mxu0
      %v3204 = vadd.f32 0.0, %v3203
      %v3205 = vpop.f32.mrf.mxu0
      %v3206 = vadd.f32 0.0, %v3205
      %3207 = vmatmul.bf16.gmra.mxu0 %v2290
      %v3208 = vpop.f32.mrf.mxu0
      %v3209 = vadd.f32 0.0, %v3208
      %v3210 = vpop.f32.mrf.mxu0
      %v3211 = vadd.f32 0.0, %v3210
      %3212 = vmatmul.bf16.gmra.mxu0 %v2293
      %v3213 = vpop.f32.mrf.mxu0
      %v3214 = vadd.f32 0.0, %v3213
      %v3215 = vpop.f32.mrf.mxu0
      %v3216 = vadd.f32 0.0, %v3215
      %3217 = vmatmul.bf16.gmra.mxu0 %v2296
      %v3218 = vpop.f32.mrf.mxu0
      %v3219 = vadd.f32 0.0, %v3218
      %v3220 = vpop.f32.mrf.mxu0
      %v3221 = vadd.f32 0.0, %v3220
      %3222 = vmatmul.bf16.gmra.mxu0 %v2299
      %v3223 = vpop.f32.mrf.mxu0
      %v3224 = vadd.f32 0.0, %v3223
      %v3225 = vpop.f32.mrf.mxu0
      %v3226 = vadd.f32 0.0, %v3225
      %3227 = vmatmul.bf16.gmra.mxu0 %v2302
      %v3228 = vpop.f32.mrf.mxu0
      %v3229 = vadd.f32 0.0, %v3228
      %v3230 = vpop.f32.mrf.mxu0
      %v3231 = vadd.f32 0.0, %v3230
      %3232 = vmatmul.bf16.gmra.mxu0 %v2305
      %v3233 = vpop.f32.mrf.mxu0
      %v3234 = vadd.f32 0.0, %v3233
      %v3235 = vpop.f32.mrf.mxu0
      %v3236 = vadd.f32 0.0, %v3235
      %3237 = vmatmul.bf16.gmra.mxu0 %v2308
      %v3238 = vpop.f32.mrf.mxu0
      %v3239 = vadd.f32 0.0, %v3238
      %v3240 = vpop.f32.mrf.mxu0
      %v3241 = vadd.f32 0.0, %v3240
      %3242 = vmatmul.bf16.gmra.mxu0 %v2311
      %v3243 = vpop.f32.mrf.mxu0
      %v3244 = vadd.f32 0.0, %v3243
      %v3245 = vpop.f32.mrf.mxu0
      %v3246 = vadd.f32 0.0, %v3245
      %3247 = vmatmul.bf16.gmra.mxu0 %v2314
      %v3248 = vpop.f32.mrf.mxu0
      %v3249 = vadd.f32 0.0, %v3248
      %v3250 = vpop.f32.mrf.mxu0
      %v3251 = vadd.f32 0.0, %v3250
      %3252 = vmatmul.bf16.gmra.mxu0 %v2317
      %v3253 = vpop.f32.mrf.mxu0
      %v3254 = vadd.f32 0.0, %v3253
      %v3255 = vpop.f32.mrf.mxu0
      %v3256 = vadd.f32 0.0, %v3255
      %3257 = vmatmul.bf16.gmra.mxu0 %v2320
      %v3258 = vpop.f32.mrf.mxu0
      %v3259 = vadd.f32 0.0, %v3258
      %v3260 = vpop.f32.mrf.mxu0
      %v3261 = vadd.f32 0.0, %v3260
      %3262 = vmatmul.bf16.gmra.mxu0 %v2323
      %v3263 = vpop.f32.mrf.mxu0
      %v3264 = vadd.f32 0.0, %v3263
      %v3265 = vpop.f32.mrf.mxu0
      %v3266 = vadd.f32 0.0, %v3265
      %3267 = vmatmul.bf16.gmra.mxu0 %v2326
      %v3268 = vpop.f32.mrf.mxu0
      %v3269 = vadd.f32 0.0, %v3268
      %v3270 = vpop.f32.mrf.mxu0
      %v3271 = vadd.f32 0.0, %v3270
      %3272 = vmatmul.bf16.gmra.mxu0 %v2329
      %v3273 = vpop.f32.mrf.mxu0
      %v3274 = vadd.f32 0.0, %v3273
      %v3275 = vpop.f32.mrf.mxu0
      %v3276 = vadd.f32 0.0, %v3275
      %3277 = vmatmul.bf16.gmra.mxu0 %v2332
      %v3278 = vpop.f32.mrf.mxu0
      %v3279 = vadd.f32 0.0, %v3278
      %v3280 = vpop.f32.mrf.mxu0
      %v3281 = vadd.f32 0.0, %v3280
      %3282 = vmatmul.bf16.gmra.mxu0 %v2335
      %v3283 = vpop.f32.mrf.mxu0
      %v3284 = vadd.f32 0.0, %v3283
      %v3285 = vpop.f32.mrf.mxu0
      %v3286 = vadd.f32 0.0, %v3285
      %3287 = vmatmul.bf16.gmra.mxu0 %v2338
      %v3288 = vpop.f32.mrf.mxu0
      %v3289 = vadd.f32 0.0, %v3288
      %v3290 = vpop.f32.mrf.mxu0
      %v3291 = vadd.f32 0.0, %v3290
      %3292 = vmatmul.bf16.gmra.mxu0 %v2341
      %v3293 = vpop.f32.mrf.mxu0
      %v3294 = vadd.f32 0.0, %v3293
      %v3295 = vpop.f32.mrf.mxu0
      %v3296 = vadd.f32 0.0, %v3295
      %3297 = vmatmul.bf16.gmra.mxu0 %v2344
      %v3298 = vpop.f32.mrf.mxu0
      %v3299 = vadd.f32 0.0, %v3298
      %v3300 = vpop.f32.mrf.mxu0
      %v3301 = vadd.f32 0.0, %v3300
      %3302 = vmatmul.bf16.gmra.mxu0 %v2347
      %v3303 = vpop.f32.mrf.mxu0
      %v3304 = vadd.f32 0.0, %v3303
      %v3305 = vpop.f32.mrf.mxu0
      %v3306 = vadd.f32 0.0, %v3305
      %3307 = vmatmul.bf16.gmra.mxu0 %v2350
      %v3308 = vpop.f32.mrf.mxu0
      %v3309 = vadd.f32 0.0, %v3308
      %v3310 = vpop.f32.mrf.mxu0
      %v3311 = vadd.f32 0.0, %v3310
      %3312 = vmatmul.bf16.gmra.mxu0 %v2353
      %v3313 = vpop.f32.mrf.mxu0
      %v3314 = vadd.f32 0.0, %v3313
      %v3315 = vpop.f32.mrf.mxu0
      %v3316 = vadd.f32 0.0, %v3315
      %3317 = vmatmul.bf16.gmra.mxu0 %v2356
      %v3318 = vpop.f32.mrf.mxu0
      %v3319 = vadd.f32 0.0, %v3318
      %v3320 = vpop.f32.mrf.mxu0
      %v3321 = vadd.f32 0.0, %v3320
      %3322 = vmatmul.bf16.gmra.mxu0 %v2359
      %v3323 = vpop.f32.mrf.mxu0
      %v3324 = vadd.f32 0.0, %v3323
      %v3325 = vpop.f32.mrf.mxu0
      %v3326 = vadd.f32 0.0, %v3325
      %3327 = vmatmul.bf16.gmra.mxu0 %v2362
      %v3328 = vpop.f32.mrf.mxu0
      %v3329 = vadd.f32 0.0, %v3328
      %v3330 = vpop.f32.mrf.mxu0
      %v3331 = vadd.f32 0.0, %v3330
      %3332 = vmatmul.bf16.gmra.mxu0 %v2365
      %v3333 = vpop.f32.mrf.mxu0
      %v3334 = vadd.f32 0.0, %v3333
      %v3335 = vpop.f32.mrf.mxu0
      %v3336 = vadd.f32 0.0, %v3335
      %3337 = vmatmul.bf16.gmra.mxu0 %v2368
      %v3338 = vpop.f32.mrf.mxu0
      %v3339 = vadd.f32 0.0, %v3338
      %v3340 = vpop.f32.mrf.mxu0
      %v3341 = vadd.f32 0.0, %v3340
      %3342 = vmatmul.bf16.gmra.mxu0 %v2371
      %v3343 = vpop.f32.mrf.mxu0
      %v3344 = vadd.f32 0.0, %v3343
      %v3345 = vpop.f32.mrf.mxu0
      %v3346 = vadd.f32 0.0, %v3345
      %3347 = vmatmul.bf16.gmra.mxu0 %v2374
      %v3348 = vpop.f32.mrf.mxu0
      %v3349 = vadd.f32 0.0, %v3348
      %v3350 = vpop.f32.mrf.mxu0
      %v3351 = vadd.f32 0.0, %v3350
      %3352 = vmatmul.bf16.gmra.mxu0 %v2377
      %v3353 = vpop.f32.mrf.mxu0
      %v3354 = vadd.f32 0.0, %v3353
      %v3355 = vpop.f32.mrf.mxu0
      %v3356 = vadd.f32 0.0, %v3355
      %3357 = vmatmul.bf16.gmra.mxu0 %v2380
      %v3358 = vpop.f32.mrf.mxu0
      %v3359 = vadd.f32 0.0, %v3358
      %v3360 = vpop.f32.mrf.mxu0
      %v3361 = vadd.f32 0.0, %v3360
      %3362 = vmatmul.bf16.gmra.mxu0 %v2383
      %v3363 = vpop.f32.mrf.mxu0
      %v3364 = vadd.f32 0.0, %v3363
      %v3365 = vpop.f32.mrf.mxu0
      %v3366 = vadd.f32 0.0, %v3365
      %3367 = vmatmul.bf16.gmra.mxu0 %v2386
      %v3368 = vpop.f32.mrf.mxu0
      %v3369 = vadd.f32 0.0, %v3368
      %v3370 = vpop.f32.mrf.mxu0
      %v3371 = vadd.f32 0.0, %v3370
      %3372 = vmatmul.bf16.gmra.mxu0 %v2389
      %v3373 = vpop.f32.mrf.mxu0
      %v3374 = vadd.f32 0.0, %v3373
      %v3375 = vpop.f32.mrf.mxu0
      %v3376 = vadd.f32 0.0, %v3375
      %3377 = vmatmul.bf16.gmra.mxu0 %v2392
      %v3378 = vpop.f32.mrf.mxu0
      %v3379 = vadd.f32 0.0, %v3378
      %v3380 = vpop.f32.mrf.mxu0
      %v3381 = vadd.f32 0.0, %v3380
      %3382 = vmatmul.bf16.gmra.mxu0 %v2395
      %v3383 = vpop.f32.mrf.mxu0
      %v3384 = vadd.f32 0.0, %v3383
      %v3385 = vpop.f32.mrf.mxu0
      %v3386 = vadd.f32 0.0, %v3385
      %3387 = vmatmul.bf16.gmra.mxu0 %v2398
      %v3388 = vpop.f32.mrf.mxu0
      %v3389 = vadd.f32 0.0, %v3388
      %v3390 = vpop.f32.mrf.mxu0
      %v3391 = vadd.f32 0.0, %v3390
      %3392 = vmatmul.bf16.gmra.mxu0 %v2401
      %v3393 = vpop.f32.mrf.mxu0
      %v3394 = vadd.f32 0.0, %v3393
      %v3395 = vpop.f32.mrf.mxu0
      %v3396 = vadd.f32 0.0, %v3395
      %3397 = vmatmul.bf16.gmra.mxu0 %v2404
      %v3398 = vpop.f32.mrf.mxu0
      %v3399 = vadd.f32 0.0, %v3398
      %v3400 = vpop.f32.mrf.mxu0
      %v3401 = vadd.f32 0.0, %v3400
      %3402 = vmatmul.bf16.gmra.mxu0 %v2407
      %v3403 = vpop.f32.mrf.mxu0
      %v3404 = vadd.f32 0.0, %v3403
      %v3405 = vpop.f32.mrf.mxu0
      %v3406 = vadd.f32 0.0, %v3405
      %3407 = vmatmul.bf16.gmra.mxu0 %v2410
      %v3408 = vpop.f32.mrf.mxu0
      %v3409 = vadd.f32 0.0, %v3408
      %v3410 = vpop.f32.mrf.mxu0
      %v3411 = vadd.f32 0.0, %v3410
      %3412 = vmatmul.bf16.gmra.mxu0 %v2413
      %v3413 = vpop.f32.mrf.mxu0
      %v3414 = vadd.f32 0.0, %v3413
      %v3415 = vpop.f32.mrf.mxu0
      %v3416 = vadd.f32 0.0, %v3415
      %3417 = vmatmul.bf16.gmra.mxu0 %v2416
      %v3418 = vpop.f32.mrf.mxu0
      %v3419 = vadd.f32 0.0, %v3418
      %v3420 = vpop.f32.mrf.mxu0
      %v3421 = vadd.f32 0.0, %v3420
      %3422 = vmatmul.bf16.gmra.mxu0 %v2419
      %v3423 = vpop.f32.mrf.mxu0
      %v3424 = vadd.f32 0.0, %v3423
      %v3425 = vpop.f32.mrf.mxu0
      %v3426 = vadd.f32 0.0, %v3425
      %3427 = vmatmul.bf16.gmra.mxu0 %v2422
      %v3428 = vpop.f32.mrf.mxu0
      %v3429 = vadd.f32 0.0, %v3428
      %v3430 = vpop.f32.mrf.mxu0
      %v3431 = vadd.f32 0.0, %v3430
      %3432 = vmatmul.bf16.gmra.mxu0 %v2425
      %v3433 = vpop.f32.mrf.mxu0
      %v3434 = vadd.f32 0.0, %v3433
      %v3435 = vpop.f32.mrf.mxu0
      %v3436 = vadd.f32 0.0, %v3435
      %3437 = vmatmul.bf16.gmra.mxu0 %v2428
      %v3438 = vpop.f32.mrf.mxu0
      %v3439 = vadd.f32 0.0, %v3438
      %v3440 = vpop.f32.mrf.mxu0
      %v3441 = vadd.f32 0.0, %v3440
      %3442 = vmatmul.bf16.gmra.mxu0 %v2431
      %v3443 = vpop.f32.mrf.mxu0
      %v3444 = vadd.f32 0.0, %v3443
      %v3445 = vpop.f32.mrf.mxu0
      %v3446 = vadd.f32 0.0, %v3445
      %3447 = vmatmul.bf16.gmra.mxu0 %v2434
      %v3448 = vpop.f32.mrf.mxu0
      %v3449 = vadd.f32 0.0, %v3448
      %v3450 = vpop.f32.mrf.mxu0
      %v3451 = vadd.f32 0.0, %v3450
      %3452 = vmatmul.bf16.gmra.mxu0 %v2437
      %v3453 = vpop.f32.mrf.mxu0
      %v3454 = vadd.f32 0.0, %v3453
      %v3455 = vpop.f32.mrf.mxu0
      %v3456 = vadd.f32 0.0, %v3455
      %3457 = vmatmul.bf16.gmra.mxu0 %v2440
      %v3458 = vpop.f32.mrf.mxu0
      %v3459 = vadd.f32 0.0, %v3458
      %v3460 = vpop.f32.mrf.mxu0
      %v3461 = vadd.f32 0.0, %v3460
      %3462 = vmatmul.bf16.gmra.mxu0 %v2443
      %v3463 = vpop.f32.mrf.mxu0
      %v3464 = vadd.f32 0.0, %v3463
      %v3465 = vpop.f32.mrf.mxu0
      %v3466 = vadd.f32 0.0, %v3465
      %3467 = vmatmul.bf16.gmra.mxu0 %v2446
      %v3468 = vpop.f32.mrf.mxu0
      %v3469 = vadd.f32 0.0, %v3468
      %v3470 = vpop.f32.mrf.mxu0
      %v3471 = vadd.f32 0.0, %v3470
      %3472 = vmatmul.bf16.gmra.mxu0 %v2449
      %v3473 = vpop.f32.mrf.mxu0
      %v3474 = vadd.f32 0.0, %v3473
      %v3475 = vpop.f32.mrf.mxu0
      %v3476 = vadd.f32 0.0, %v3475
      %3477 = vmatmul.bf16.gmra.mxu0 %v2452
      %v3478 = vpop.f32.mrf.mxu0
      %v3479 = vadd.f32 0.0, %v3478
      %v3480 = vpop.f32.mrf.mxu0
      %v3481 = vadd.f32 0.0, %v3480
      %3482 = vmatmul.bf16.gmra.mxu0 %v2455
      %v3483 = vpop.f32.mrf.mxu0
      %v3484 = vadd.f32 0.0, %v3483
      %v3485 = vpop.f32.mrf.mxu0
      %v3486 = vadd.f32 0.0, %v3485
      %3487 = vmatmul.bf16.gmra.mxu0 %v2458
      %v3488 = vpop.f32.mrf.mxu0
      %v3489 = vadd.f32 0.0, %v3488
      %v3490 = vpop.f32.mrf.mxu0
      %v3491 = vadd.f32 0.0, %v3490
      %3492 = vmatmul.bf16.gmra.mxu0 %v2461
      %v3493 = vpop.f32.mrf.mxu0
      %v3494 = vadd.f32 0.0, %v3493
      %v3495 = vpop.f32.mrf.mxu0
      %v3496 = vadd.f32 0.0, %v3495
      %3497 = vmatmul.bf16.gmra.mxu0 %v2464
      %v3498 = vpop.f32.mrf.mxu0
      %v3499 = vadd.f32 0.0, %v3498
      %v3500 = vpop.f32.mrf.mxu0
      %v3501 = vadd.f32 0.0, %v3500
      %3502 = vmatmul.bf16.gmra.mxu0 %v2467
      %v3503 = vpop.f32.mrf.mxu0
      %v3504 = vadd.f32 0.0, %v3503
      %v3505 = vpop.f32.mrf.mxu0
      %v3506 = vadd.f32 0.0, %v3505
      %3507 = vmatmul.bf16.gmra.mxu0 %v2470
      %v3508 = vpop.f32.mrf.mxu0
      %v3509 = vadd.f32 0.0, %v3508
      %v3510 = vpop.f32.mrf.mxu0
      %v3511 = vadd.f32 0.0, %v3510
      %3512 = vmatmul.bf16.gmra.mxu0 %v2473
      %v3513 = vpop.f32.mrf.mxu0
      %v3514 = vadd.f32 0.0, %v3513
      %v3515 = vpop.f32.mrf.mxu0
      %v3516 = vadd.f32 0.0, %v3515
      %3517 = vmatmul.bf16.gmra.mxu0 %v2476
      %v3518 = vpop.f32.mrf.mxu0
      %v3519 = vadd.f32 0.0, %v3518
      %v3520 = vpop.f32.mrf.mxu0
      %v3521 = vadd.f32 0.0, %v3520
      %3522 = vmatmul.bf16.gmra.mxu0 %v2479
      %v3523 = vpop.f32.mrf.mxu0
      %v3524 = vadd.f32 0.0, %v3523
      %v3525 = vpop.f32.mrf.mxu0
      %v3526 = vadd.f32 0.0, %v3525
      %3527 = vmatmul.bf16.gmra.mxu0 %v2482
      %v3528 = vpop.f32.mrf.mxu0
      %v3529 = vadd.f32 0.0, %v3528
      %v3530 = vpop.f32.mrf.mxu0
      %v3531 = vadd.f32 0.0, %v3530
      %3532 = vmatmul.bf16.gmra.mxu0 %v2485
      %v3533 = vpop.f32.mrf.mxu0
      %v3534 = vadd.f32 0.0, %v3533
      %v3535 = vpop.f32.mrf.mxu0
      %v3536 = vadd.f32 0.0, %v3535
      %3537 = vmatmul.bf16.gmra.mxu0 %v2488
      %v3538 = vpop.f32.mrf.mxu0
      %v3539 = vadd.f32 0.0, %v3538
      %v3540 = vpop.f32.mrf.mxu0
      %v3541 = vadd.f32 0.0, %v3540
      %3542 = vmatmul.bf16.gmra.mxu0 %v2491
      %v3543 = vpop.f32.mrf.mxu0
      %v3544 = vadd.f32 0.0, %v3543
      %v3545 = vpop.f32.mrf.mxu0
      %v3546 = vadd.f32 0.0, %v3545
      %3547 = vmatmul.bf16.gmra.mxu0 %v2494
      %v3548 = vpop.f32.mrf.mxu0
      %v3549 = vadd.f32 0.0, %v3548
      %v3550 = vpop.f32.mrf.mxu0
      %v3551 = vadd.f32 0.0, %v3550
      %3552 = vmatmul.bf16.gmra.mxu0 %v2497
      %v3553 = vpop.f32.mrf.mxu0
      %v3554 = vadd.f32 0.0, %v3553
      %v3555 = vpop.f32.mrf.mxu0
      %v3556 = vadd.f32 0.0, %v3555
      %3557 = vmatmul.bf16.gmra.mxu0 %v2500
      %v3558 = vpop.f32.mrf.mxu0
      %v3559 = vadd.f32 0.0, %v3558
      %v3560 = vpop.f32.mrf.mxu0
      %v3561 = vadd.f32 0.0, %v3560
      %3562 = vmatmul.bf16.gmra.mxu0 %v2503
      %v3563 = vpop.f32.mrf.mxu0
      %v3564 = vadd.f32 0.0, %v3563
      %v3565 = vpop.f32.mrf.mxu0
      %v3566 = vadd.f32 0.0, %v3565
      %3567 = vmatmul.bf16.gmra.mxu0 %v2506
      %v3568 = vpop.f32.mrf.mxu0
      %v3569 = vadd.f32 0.0, %v3568
      %v3570 = vpop.f32.mrf.mxu0
      %v3571 = vadd.f32 0.0, %v3570
      %3572 = vmatmul.bf16.gmra.mxu0 %v2509
      %v3573 = vpop.f32.mrf.mxu0
      %v3574 = vadd.f32 0.0, %v3573
      %v3575 = vpop.f32.mrf.mxu0
      %v3576 = vadd.f32 0.0, %v3575
      %3577 = vmatmul.bf16.gmra.mxu0 %v2512
      %v3578 = vpop.f32.mrf.mxu0
      %v3579 = vadd.f32 0.0, %v3578
      %v3580 = vpop.f32.mrf.mxu0
      %v3581 = vadd.f32 0.0, %v3580
      %3582 = vmatmul.bf16.gmra.mxu0 %v2515
      %v3583 = vpop.f32.mrf.mxu0
      %v3584 = vadd.f32 0.0, %v3583
      %v3585 = vpop.f32.mrf.mxu0
      %v3586 = vadd.f32 0.0, %v3585
      %3587 = vmatmul.bf16.gmra.mxu0 %v2518
      %v3588 = vpop.f32.mrf.mxu0
      %v3589 = vadd.f32 0.0, %v3588
      %v3590 = vpop.f32.mrf.mxu0
      %v3591 = vadd.f32 0.0, %v3590
      %3592 = vmatmul.bf16.gmra.mxu0 %v2521
      %v3593 = vpop.f32.mrf.mxu0
      %v3594 = vadd.f32 0.0, %v3593
      %v3595 = vpop.f32.mrf.mxu0
      %v3596 = vadd.f32 0.0, %v3595
      %3597 = vmatmul.bf16.gmra.mxu0 %v2524
      %v3598 = vpop.f32.mrf.mxu0
      %v3599 = vadd.f32 0.0, %v3598
      %v3600 = vpop.f32.mrf.mxu0
      %v3601 = vadd.f32 0.0, %v3600
      %3602 = vmatmul.bf16.gmra.mxu0 %v2527
      %v3603 = vpop.f32.mrf.mxu0
      %v3604 = vadd.f32 0.0, %v3603
      %v3605 = vpop.f32.mrf.mxu0
      %v3606 = vadd.f32 0.0, %v3605
      %3607 = vmatmul.bf16.gmra.mxu0 %v2530
      %v3608 = vpop.f32.mrf.mxu0
      %v3609 = vadd.f32 0.0, %v3608
      %v3610 = vpop.f32.mrf.mxu0
      %v3611 = vadd.f32 0.0, %v3610
      %3612 = vmatmul.bf16.gmra.mxu0 %v2533
      %v3613 = vpop.f32.mrf.mxu0
      %v3614 = vadd.f32 0.0, %v3613
      %v3615 = vpop.f32.mrf.mxu0
      %v3616 = vadd.f32 0.0, %v3615
      %3617 = vmatmul.bf16.gmra.mxu0 %v2536
      %v3618 = vpop.f32.mrf.mxu0
      %v3619 = vadd.f32 0.0, %v3618
      %v3620 = vpop.f32.mrf.mxu0
      %v3621 = vadd.f32 0.0, %v3620
      %3622 = vmatmul.bf16.gmra.mxu0 %v2539
      %v3623 = vpop.f32.mrf.mxu0
      %v3624 = vadd.f32 0.0, %v3623
      %v3625 = vpop.f32.mrf.mxu0
      %v3626 = vadd.f32 0.0, %v3625
      %3627 = vmatmul.bf16.gmra.mxu0 %v2542
      %v3628 = vpop.f32.mrf.mxu0
      %v3629 = vadd.f32 0.0, %v3628
      %v3630 = vpop.f32.mrf.mxu0
      %v3631 = vadd.f32 0.0, %v3630
      %3632 = vmatmul.bf16.gmra.mxu0 %v2545
      %v3633 = vpop.f32.mrf.mxu0
      %v3634 = vadd.f32 0.0, %v3633
      %v3635 = vpop.f32.mrf.mxu0
      %v3636 = vadd.f32 0.0, %v3635
      %3637 = vmatmul.bf16.gmra.mxu0 %v2548
      %v3638 = vpop.f32.mrf.mxu0
      %v3639 = vadd.f32 0.0, %v3638
      %v3640 = vpop.f32.mrf.mxu0
      %v3641 = vadd.f32 0.0, %v3640
      %3642 = vmatmul.bf16.gmra.mxu0 %v2551
      %v3643 = vpop.f32.mrf.mxu0
      %v3644 = vadd.f32 0.0, %v3643
      %v3645 = vpop.f32.mrf.mxu0
      %v3646 = vadd.f32 0.0, %v3645
      %3647 = vmatmul.bf16.gmra.mxu0 %v2554
      %v3648 = vpop.f32.mrf.mxu0
      %v3649 = vadd.f32 0.0, %v3648
      %v3650 = vpop.f32.mrf.mxu0
      %v3651 = vadd.f32 0.0, %v3650
      %3652 = vmatmul.bf16.gmra.mxu0 %v2557
      %v3653 = vpop.f32.mrf.mxu0
      %v3654 = vadd.f32 0.0, %v3653
      %v3655 = vpop.f32.mrf.mxu0
      %v3656 = vadd.f32 0.0, %v3655
      %3657 = vmatmul.bf16.gmra.mxu0 %v2560
      %v3658 = vpop.f32.mrf.mxu0
      %v3659 = vadd.f32 0.0, %v3658
      %v3660 = vpop.f32.mrf.mxu0
      %v3661 = vadd.f32 0.0, %v3660
      %3662 = vmatmul.bf16.gmra.mxu0 %v2563
      %v3663 = vpop.f32.mrf.mxu0
      %v3664 = vadd.f32 0.0, %v3663
      %v3665 = vpop.f32.mrf.mxu0
      %v3666 = vadd.f32 0.0, %v3665
      %3667 = vmatmul.bf16.gmra.mxu0 %v2566
      %v3668 = vpop.f32.mrf.mxu0
      %v3669 = vadd.f32 0.0, %v3668
      %v3670 = vpop.f32.mrf.mxu0
      %v3671 = vadd.f32 0.0, %v3670
      %3672 = vmatmul.bf16.gmra.mxu0 %v2569
      %v3673 = vpop.f32.mrf.mxu0
      %v3674 = vadd.f32 0.0, %v3673
      %v3675 = vpop.f32.mrf.mxu0
      %v3676 = vadd.f32 0.0, %v3675
      %3677 = vmatmul.bf16.gmra.mxu0 %v2572
      %v3678 = vpop.f32.mrf.mxu0
      %v3679 = vadd.f32 0.0, %v3678
      %v3680 = vpop.f32.mrf.mxu0
      %v3681 = vadd.f32 0.0, %v3680
      %3682 = vmatmul.bf16.gmra.mxu0 %v2575
      %v3683 = vpop.f32.mrf.mxu0
      %v3684 = vadd.f32 0.0, %v3683
      %v3685 = vpop.f32.mrf.mxu0
      %v3686 = vadd.f32 0.0, %v3685
      %3687 = vmatmul.bf16.gmra.mxu0 %v2578
      %v3688 = vpop.f32.mrf.mxu0
      %v3689 = vadd.f32 0.0, %v3688
      %v3690 = vpop.f32.mrf.mxu0
      %v3691 = vadd.f32 0.0, %v3690
      %3692 = vmatmul.bf16.gmra.mxu0 %v2581
      %v3693 = vpop.f32.mrf.mxu0
      %v3694 = vadd.f32 0.0, %v3693
      %v3695 = vpop.f32.mrf.mxu0
      %v3696 = vadd.f32 0.0, %v3695
      %3697 = vmatmul.bf16.gmra.mxu0 %v2584
      %v3698 = vpop.f32.mrf.mxu0
      %v3699 = vadd.f32 0.0, %v3698
      %v3700 = vpop.f32.mrf.mxu0
      %v3701 = vadd.f32 0.0, %v3700
      %3702 = vmatmul.bf16.gmra.mxu0 %v2587
      %v3703 = vpop.f32.mrf.mxu0
      %v3704 = vadd.f32 0.0, %v3703
      %v3705 = vpop.f32.mrf.mxu0
      %v3706 = vadd.f32 0.0, %v3705
      %3707 = vmatmul.bf16.gmra.mxu0 %v2590
      %v3708 = vpop.f32.mrf.mxu0
      %v3709 = vadd.f32 0.0, %v3708
      %v3710 = vpop.f32.mrf.mxu0
      %v3711 = vadd.f32 0.0, %v3710
      %3712 = vmatmul.bf16.gmra.mxu0 %v2593
      %v3713 = vpop.f32.mrf.mxu0
      %v3714 = vadd.f32 0.0, %v3713
      %v3715 = vpop.f32.mrf.mxu0
      %v3716 = vadd.f32 0.0, %v3715
      %3717 = vmatmul.bf16.gmra.mxu0 %v2596
      %v3718 = vpop.f32.mrf.mxu0
      %v3719 = vadd.f32 0.0, %v3718
      %v3720 = vpop.f32.mrf.mxu0
      %v3721 = vadd.f32 0.0, %v3720
      %3722 = vmatmul.bf16.gmra.mxu0 %v2599
      %v3723 = vpop.f32.mrf.mxu0
      %v3724 = vadd.f32 0.0, %v3723
      %v3725 = vpop.f32.mrf.mxu0
      %v3726 = vadd.f32 0.0, %v3725
      %3727 = vmatmul.bf16.gmra.mxu0 %v2602
      %v3728 = vpop.f32.mrf.mxu0
      %v3729 = vadd.f32 0.0, %v3728
      %v3730 = vpop.f32.mrf.mxu0
      %v3731 = vadd.f32 0.0, %v3730
      %3732 = vmatmul.bf16.gmra.mxu0 %v2605
      %v3733 = vpop.f32.mrf.mxu0
      %v3734 = vadd.f32 0.0, %v3733
      %v3735 = vpop.f32.mrf.mxu0
      %v3736 = vadd.f32 0.0, %v3735
      %3737 = vmatmul.bf16.gmra.mxu0 %v2608
      %v3738 = vpop.f32.mrf.mxu0
      %v3739 = vadd.f32 0.0, %v3738
      %v3740 = vpop.f32.mrf.mxu0
      %v3741 = vadd.f32 0.0, %v3740
      %3742 = vmatmul.bf16.gmra.mxu0 %v2611
      %v3743 = vpop.f32.mrf.mxu0
      %v3744 = vadd.f32 0.0, %v3743
      %v3745 = vpop.f32.mrf.mxu0
      %v3746 = vadd.f32 0.0, %v3745
      %3747 = vmatmul.bf16.gmra.mxu0 %v2614
      %v3748 = vpop.f32.mrf.mxu0
      %v3749 = vadd.f32 0.0, %v3748
      %v3750 = vpop.f32.mrf.mxu0
      %v3751 = vadd.f32 0.0, %v3750
      %3752 = vmatmul.bf16.gmra.mxu0 %v2617
      %v3753 = vpop.f32.mrf.mxu0
      %v3754 = vadd.f32 0.0, %v3753
      %v3755 = vpop.f32.mrf.mxu0
      %v3756 = vadd.f32 0.0, %v3755
      %3757 = vmatmul.bf16.gmra.mxu0 %v2620
      %v3758 = vpop.f32.mrf.mxu0
      %v3759 = vadd.f32 0.0, %v3758
      %v3760 = vpop.f32.mrf.mxu0
      %v3761 = vadd.f32 0.0, %v3760
      %3762 = vmatmul.bf16.gmra.mxu0 %v2623
      %v3763 = vpop.f32.mrf.mxu0
      %v3764 = vadd.f32 0.0, %v3763
      %v3765 = vpop.f32.mrf.mxu0
      %v3766 = vadd.f32 0.0, %v3765
      %3767 = vmatmul.bf16.gmra.mxu0 %v2626
      %v3768 = vpop.f32.mrf.mxu0
      %v3769 = vadd.f32 0.0, %v3768
      %v3770 = vpop.f32.mrf.mxu0
      %v3771 = vadd.f32 0.0, %v3770
      %3772 = vmatmul.bf16.gmra.mxu0 %v2629
      %v3773 = vpop.f32.mrf.mxu0
      %v3774 = vadd.f32 0.0, %v3773
      %v3775 = vpop.f32.mrf.mxu0
      %v3776 = vadd.f32 0.0, %v3775
      %3777 = vmatmul.bf16.gmra.mxu0 %v2632
      %v3778 = vpop.f32.mrf.mxu0
      %v3779 = vadd.f32 0.0, %v3778
      %v3780 = vpop.f32.mrf.mxu0
      %v3781 = vadd.f32 0.0, %v3780
      %3782 = vmatmul.bf16.gmra.mxu0 %v2635
      %v3783 = vpop.f32.mrf.mxu0
      %v3784 = vadd.f32 0.0, %v3783
      %v3785 = vpop.f32.mrf.mxu0
      %v3786 = vadd.f32 0.0, %v3785
      %3787 = vmatmul.bf16.gmra.mxu0 %v2638
      %v3788 = vpop.f32.mrf.mxu0
      %v3789 = vadd.f32 0.0, %v3788
      %v3790 = vpop.f32.mrf.mxu0
      %v3791 = vadd.f32 0.0, %v3790
      %3792 = vmatmul.bf16.gmra.mxu0 %v2641
      %v3793 = vpop.f32.mrf.mxu0
      %v3794 = vadd.f32 0.0, %v3793
      %v3795 = vpop.f32.mrf.mxu0
      %v3796 = vadd.f32 0.0, %v3795
      %3797 = vmatmul.bf16.gmra.mxu0 %v2644
      %v3798 = vpop.f32.mrf.mxu0
      %v3799 = vadd.f32 0.0, %v3798
      %v3800 = vpop.f32.mrf.mxu0
      %v3801 = vadd.f32 0.0, %v3800
      %3802 = vmatmul.bf16.gmra.mxu0 %v2647
      %v3803 = vpop.f32.mrf.mxu0
      %v3804 = vadd.f32 0.0, %v3803
      %v3805 = vpop.f32.mrf.mxu0
      %v3806 = vadd.f32 0.0, %v3805
      %3807 = vmatmul.bf16.gmra.mxu0 %v2650
      %v3808 = vpop.f32.mrf.mxu0
      %v3809 = vadd.f32 0.0, %v3808
      %v3810 = vpop.f32.mrf.mxu0
      %v3811 = vadd.f32 0.0, %v3810
      %3812 = vmatmul.bf16.gmra.mxu0 %v2653
      %v3813 = vpop.f32.mrf.mxu0
      %v3814 = vadd.f32 0.0, %v3813
      %v3815 = vpop.f32.mrf.mxu0
      %v3816 = vadd.f32 0.0, %v3815
      %3817 = vmatmul.bf16.gmra.mxu0 %v2656
      %v3818 = vpop.f32.mrf.mxu0
      %v3819 = vadd.f32 0.0, %v3818
      %v3820 = vpop.f32.mrf.mxu0
      %v3821 = vadd.f32 0.0, %v3820
      %3822 = vmatmul.bf16.gmra.mxu0 %v2659
      %v3823 = vpop.f32.mrf.mxu0
      %v3824 = vadd.f32 0.0, %v3823
      %v3825 = vpop.f32.mrf.mxu0
      %v3826 = vadd.f32 0.0, %v3825
      %3827 = vmatmul.bf16.gmra.mxu0 %v2662
      %v3828 = vpop.f32.mrf.mxu0
      %v3829 = vadd.f32 0.0, %v3828
      %v3830 = vpop.f32.mrf.mxu0
      %v3831 = vadd.f32 0.0, %v3830
      %3832 = vmatmul.bf16.gmra.mxu0 %v2665
      %v3833 = vpop.f32.mrf.mxu0
      %v3834 = vadd.f32 0.0, %v3833
      %v3835 = vpop.f32.mrf.mxu0
      %v3836 = vadd.f32 0.0, %v3835
      %3837 = vmatmul.bf16.gmra.mxu0 %v2668
      %v3838 = vpop.f32.mrf.mxu0
      %v3839 = vadd.f32 0.0, %v3838
      %v3840 = vpop.f32.mrf.mxu0
      %v3841 = vadd.f32 0.0, %v3840
      %3842 = vmatmul.bf16.gmra.mxu0 %v2671
      %v3843 = vpop.f32.mrf.mxu0
      %v3844 = vadd.f32 0.0, %v3843
      %v3845 = vpop.f32.mrf.mxu0
      %v3846 = vadd.f32 0.0, %v3845
      %3847 = vmatmul.bf16.gmra.mxu0 %v2674
      %v3848 = vpop.f32.mrf.mxu0
      %v3849 = vadd.f32 0.0, %v3848
      %v3850 = vpop.f32.mrf.mxu0
      %v3851 = vadd.f32 0.0, %v3850
      %3852 = vmatmul.bf16.gmra.mxu0 %v2677
      %v3853 = vpop.f32.mrf.mxu0
      %v3854 = vadd.f32 0.0, %v3853
      %v3855 = vpop.f32.mrf.mxu0
      %v3856 = vadd.f32 0.0, %v3855
      %3857 = vmatmul.bf16.gmra.mxu0 %v2680
      %v3858 = vpop.f32.mrf.mxu0
      %v3859 = vadd.f32 0.0, %v3858
      %v3860 = vpop.f32.mrf.mxu0
      %v3861 = vadd.f32 0.0, %v3860
      %3862 = vmatmul.bf16.gmra.mxu0 %v2683
      %v3863 = vpop.f32.mrf.mxu0
      %v3864 = vadd.f32 0.0, %v3863
      %v3865 = vpop.f32.mrf.mxu0
      %v3866 = vadd.f32 0.0, %v3865
      %3867 = vmatmul.bf16.gmra.mxu0 %v2686
      %v3868 = vpop.f32.mrf.mxu0
      %v3869 = vadd.f32 0.0, %v3868
      %v3870 = vpop.f32.mrf.mxu0
      %v3871 = vadd.f32 0.0, %v3870
      %3872 = vmatmul.bf16.gmra.mxu0 %v2689
      %v3873 = vpop.f32.mrf.mxu0
      %v3874 = vadd.f32 0.0, %v3873
      %v3875 = vpop.f32.mrf.mxu0
      %v3876 = vadd.f32 0.0, %v3875
      %3877 = vmatmul.bf16.gmra.mxu0 %v2692
      %v3878 = vpop.f32.mrf.mxu0
      %v3879 = vadd.f32 0.0, %v3878
      %v3880 = vpop.f32.mrf.mxu0
      %v3881 = vadd.f32 0.0, %v3880
      %3882 = vmatmul.bf16.gmra.mxu0 %v2695
      %v3883 = vpop.f32.mrf.mxu0
      %v3884 = vadd.f32 0.0, %v3883
      %v3885 = vpop.f32.mrf.mxu0
      %v3886 = vadd.f32 0.0, %v3885
      %3887 = vmatmul.bf16.gmra.mxu0 %v2698
      %v3888 = vpop.f32.mrf.mxu0
      %v3889 = vadd.f32 0.0, %v3888
      %v3890 = vpop.f32.mrf.mxu0
      %v3891 = vadd.f32 0.0, %v3890
      %3892 = vmatmul.bf16.gmra.mxu0 %v2701
      %v3893 = vpop.f32.mrf.mxu0
      %v3894 = vadd.f32 0.0, %v3893
      %v3895 = vpop.f32.mrf.mxu0
      %v3896 = vadd.f32 0.0, %v3895
      %3897 = vmatmul.bf16.gmra.mxu0 %v2704
      %v3898 = vpop.f32.mrf.mxu0
      %v3899 = vadd.f32 0.0, %v3898
      %v3900 = vpop.f32.mrf.mxu0
      %v3901 = vadd.f32 0.0, %v3900
      %3902 = vmatmul.bf16.gmra.mxu0 %v2707
      %v3903 = vpop.f32.mrf.mxu0
      %v3904 = vadd.f32 0.0, %v3903
      %v3905 = vpop.f32.mrf.mxu0
      %v3906 = vadd.f32 0.0, %v3905
      %3907 = vmatmul.bf16.gmra.mxu0 %v2710
      %v3908 = vpop.f32.mrf.mxu0
      %v3909 = vadd.f32 0.0, %v3908
      %v3910 = vpop.f32.mrf.mxu0
      %v3911 = vadd.f32 0.0, %v3910
      %3912 = vmatmul.bf16.gmra.mxu0 %v2713
      %v3913 = vpop.f32.mrf.mxu0
      %v3914 = vadd.f32 0.0, %v3913
      %v3915 = vpop.f32.mrf.mxu0
      %v3916 = vadd.f32 0.0, %v3915
      %3917 = vmatmul.bf16.gmra.mxu0 %v2716
      %v3918 = vpop.f32.mrf.mxu0
      %v3919 = vadd.f32 0.0, %v3918
      %v3920 = vpop.f32.mrf.mxu0
      %v3921 = vadd.f32 0.0, %v3920
      %3922 = vmatmul.bf16.gmra.mxu0 %v2719
      %v3923 = vpop.f32.mrf.mxu0
      %v3924 = vadd.f32 0.0, %v3923
      %v3925 = vpop.f32.mrf.mxu0
      %v3926 = vadd.f32 0.0, %v3925
      %3927 = vmatmul.bf16.gmra.mxu0 %v2722
      %v3928 = vpop.f32.mrf.mxu0
      %v3929 = vadd.f32 0.0, %v3928
      %v3930 = vpop.f32.mrf.mxu0
      %v3931 = vadd.f32 0.0, %v3930
      %3932 = vmatmul.bf16.gmra.mxu0 %v2725
      %v3933 = vpop.f32.mrf.mxu0
      %v3934 = vadd.f32 0.0, %v3933
      %v3935 = vpop.f32.mrf.mxu0
      %v3936 = vadd.f32 0.0, %v3935
      %3937 = vmatmul.bf16.gmra.mxu0 %v2728
      %v3938 = vpop.f32.mrf.mxu0
      %v3939 = vadd.f32 0.0, %v3938
      %v3940 = vpop.f32.mrf.mxu0
      %v3941 = vadd.f32 0.0, %v3940
      %3942 = vmatmul.bf16.gmra.mxu0 %v2731
      %v3943 = vpop.f32.mrf.mxu0
      %v3944 = vadd.f32 0.0, %v3943
      %v3945 = vpop.f32.mrf.mxu0
      %v3946 = vadd.f32 0.0, %v3945
      %3947 = vmatmul.bf16.gmra.mxu0 %v2734
      %v3948 = vpop.f32.mrf.mxu0
      %v3949 = vadd.f32 0.0, %v3948
      %v3950 = vpop.f32.mrf.mxu0
      %v3951 = vadd.f32 0.0, %v3950
      %3952 = vmatmul.bf16.gmra.mxu0 %v2737
      %v3953 = vpop.f32.mrf.mxu0
      %v3954 = vadd.f32 0.0, %v3953
      %v3955 = vpop.f32.mrf.mxu0
      %v3956 = vadd.f32 0.0, %v3955
      %3957 = vmatmul.bf16.gmra.mxu0 %v2740
      %v3958 = vpop.f32.mrf.mxu0
      %v3959 = vadd.f32 0.0, %v3958
      %v3960 = vpop.f32.mrf.mxu0
      %v3961 = vadd.f32 0.0, %v3960
      %3962 = vmatmul.bf16.gmra.mxu0 %v2743
      %v3963 = vpop.f32.mrf.mxu0
      %v3964 = vadd.f32 0.0, %v3963
      %v3965 = vpop.f32.mrf.mxu0
      %v3966 = vadd.f32 0.0, %v3965
      %3967 = vmatmul.bf16.gmra.mxu0 %v2746
      %v3968 = vpop.f32.mrf.mxu0
      %v3969 = vadd.f32 0.0, %v3968
      %v3970 = vpop.f32.mrf.mxu0
      %v3971 = vadd.f32 0.0, %v3970
      %3972 = vmatmul.bf16.gmra.mxu0 %v2749
      %v3973 = vpop.f32.mrf.mxu0
      %v3974 = vadd.f32 0.0, %v3973
      %v3975 = vpop.f32.mrf.mxu0
      %v3976 = vadd.f32 0.0, %v3975
      %3977 = vmatmul.bf16.gmra.mxu0 %v2752
      %v3978 = vpop.f32.mrf.mxu0
      %v3979 = vadd.f32 0.0, %v3978
      %v3980 = vpop.f32.mrf.mxu0
      %v3981 = vadd.f32 0.0, %v3980
      %3982 = vmatmul.bf16.gmra.mxu0 %v2755
      %v3983 = vpop.f32.mrf.mxu0
      %v3984 = vadd.f32 0.0, %v3983
      %v3985 = vpop.f32.mrf.mxu0
      %v3986 = vadd.f32 0.0, %v3985
      %3987 = vmatmul.bf16.gmra.mxu0 %v2758
      %v3988 = vpop.f32.mrf.mxu0
      %v3989 = vadd.f32 0.0, %v3988
      %v3990 = vpop.f32.mrf.mxu0
      %v3991 = vadd.f32 0.0, %v3990
      %3992 = vmatmul.bf16.gmra.mxu0 %v2761
      %v3993 = vpop.f32.mrf.mxu0
      %v3994 = vadd.f32 0.0, %v3993
      %v3995 = vpop.f32.mrf.mxu0
      %v3996 = vadd.f32 0.0, %v3995
      %3997 = vmatmul.bf16.gmra.mxu0 %v2764
      %v3998 = vpop.f32.mrf.mxu0
      %v3999 = vadd.f32 0.0, %v3998
      %v4000 = vpop.f32.mrf.mxu0
      %v4001 = vadd.f32 0.0, %v4000
      %4002 = vmatmul.bf16.gmra.mxu0 %v2767
      %v4003 = vpop.f32.mrf.mxu0
      %v4004 = vadd.f32 0.0, %v4003
      %v4005 = vpop.f32.mrf.mxu0
      %v4006 = vadd.f32 0.0, %v4005
      %4007 = vmatmul.bf16.gmra.mxu0 %v2770
      %v4008 = vpop.f32.mrf.mxu0
      %v4009 = vadd.f32 0.0, %v4008
      %v4010 = vpop.f32.mrf.mxu0
      %v4011 = vadd.f32 0.0, %v4010
      %4012 = vmatmul.bf16.gmra.mxu0 %v2773
      %v4013 = vpop.f32.mrf.mxu0
      %v4014 = vadd.f32 0.0, %v4013
      %v4015 = vpop.f32.mrf.mxu0
      %v4016 = vadd.f32 0.0, %v4015
      %4017 = vmatmul.bf16.gmra.mxu0 %v2776
      %v4018 = vpop.f32.mrf.mxu0
      %v4019 = vadd.f32 0.0, %v4018
      %v4020 = vpop.f32.mrf.mxu0
      %v4021 = vadd.f32 0.0, %v4020
      %4022 = vmatmul.bf16.gmra.mxu0 %v2779
      %v4023 = vpop.f32.mrf.mxu0
      %v4024 = vadd.f32 0.0, %v4023
      %v4025 = vpop.f32.mrf.mxu0
      %v4026 = vadd.f32 0.0, %v4025
      %4027 = vmatmul.bf16.gmra.mxu0 %v2782
      %v4028 = vpop.f32.mrf.mxu0
      %v4029 = vadd.f32 0.0, %v4028
      %v4030 = vpop.f32.mrf.mxu0
      %v4031 = vadd.f32 0.0, %v4030
      %4032 = vmatmul.bf16.gmra.mxu0 %v2785
      %v4033 = vpop.f32.mrf.mxu0
      %v4034 = vadd.f32 0.0, %v4033
      %v4035 = vpop.f32.mrf.mxu0
      %v4036 = vadd.f32 0.0, %v4035
      %4037 = vmatmul.bf16.gmra.mxu0 %v2788
      %v4038 = vpop.f32.mrf.mxu0
      %v4039 = vadd.f32 0.0, %v4038
      %v4040 = vpop.f32.mrf.mxu0
      %v4041 = vadd.f32 0.0, %v4040
      %4042 = vmatmul.bf16.gmra.mxu0 %v2791
      %v4043 = vpop.f32.mrf.mxu0
      %v4044 = vadd.f32 0.0, %v4043
      %v4045 = vpop.f32.mrf.mxu0
      %v4046 = vadd.f32 0.0, %v4045
      %4047 = vmatmul.bf16.gmra.mxu0 %v2794
      %v4048 = vpop.f32.mrf.mxu0
      %v4049 = vadd.f32 0.0, %v4048
      %v4050 = vpop.f32.mrf.mxu0
      %v4051 = vadd.f32 0.0, %v4050
      %4052 = vmatmul.bf16.gmra.mxu0 %v2797
      %v4053 = vpop.f32.mrf.mxu0
      %v4054 = vadd.f32 0.0, %v4053
      %v4055 = vpop.f32.mrf.mxu0
      %v4056 = vadd.f32 0.0, %v4055
      %4057 = vmatmul.bf16.gmra.mxu0 %v2800
      %v4058 = vpop.f32.mrf.mxu0
      %v4059 = vadd.f32 0.0, %v4058
      %v4060 = vpop.f32.mrf.mxu0
      %v4061 = vadd.f32 0.0, %v4060
      %4062 = vmatmul.bf16.gmra.mxu0 %v2803
      %v4063 = vpop.f32.mrf.mxu0
      %v4064 = vadd.f32 0.0, %v4063
      %v4065 = vpop.f32.mrf.mxu0
      %v4066 = vadd.f32 0.0, %v4065
      %4067 = vmatmul.bf16.gmra.mxu0 %v2806
      %v4068 = vpop.f32.mrf.mxu0
      %v4069 = vadd.f32 0.0, %v4068
      %v4070 = vpop.f32.mrf.mxu0
      %v4071 = vadd.f32 0.0, %v4070
      %4072 = vmatmul.bf16.gmra.mxu0 %v2809
      %v4073 = vpop.f32.mrf.mxu0
      %v4074 = vadd.f32 0.0, %v4073
      %v4075 = vpop.f32.mrf.mxu0
      %v4076 = vadd.f32 0.0, %v4075
      %4077 = vmatmul.bf16.gmra.mxu0 %v2812
      %v4078 = vpop.f32.mrf.mxu0
      %v4079 = vadd.f32 0.0, %v4078
      %v4080 = vpop.f32.mrf.mxu0
      %v4081 = vadd.f32 0.0, %v4080
      %4082 = vmatmul.bf16.gmra.mxu0 %v2815
      %v4083 = vpop.f32.mrf.mxu0
      %v4084 = vadd.f32 0.0, %v4083
      %v4085 = vpop.f32.mrf.mxu0
      %v4086 = vadd.f32 0.0, %v4085
      %4087 = vmatmul.bf16.gmra.mxu0 %v2818
      %v4088 = vpop.f32.mrf.mxu0
      %v4089 = vadd.f32 0.0, %v4088
      %v4090 = vpop.f32.mrf.mxu0
      %v4091 = vadd.f32 0.0, %v4090
      %4092 = vmatmul.bf16.gmra.mxu0 %v2821
      %v4093 = vpop.f32.mrf.mxu0
      %v4094 = vadd.f32 0.0, %v4093
      %v4095 = vpop.f32.mrf.mxu0
      %v4096 = vadd.f32 0.0, %v4095
      %4097 = vmatmul.bf16.gmra.mxu0 %v2824
      %v4098 = vpop.f32.mrf.mxu0
      %v4099 = vadd.f32 0.0, %v4098
      %v4100 = vpop.f32.mrf.mxu0
      %v4101 = vadd.f32 0.0, %v4100
      %4102 = vmatmul.bf16.gmra.mxu0 %v2827
      %v4103 = vpop.f32.mrf.mxu0
      %v4104 = vadd.f32 0.0, %v4103
      %v4105 = vpop.f32.mrf.mxu0
      %v4106 = vadd.f32 0.0, %v4105
      %4107 = vmatmul.bf16.gmra.mxu0 %v2830
      %v4108 = vpop.f32.mrf.mxu0
      %v4109 = vadd.f32 0.0, %v4108
      %v4110 = vpop.f32.mrf.mxu0
      %v4111 = vadd.f32 0.0, %v4110
      %4112 = vmatmul.bf16.gmra.mxu0 %v2833
      %v4113 = vpop.f32.mrf.mxu0
      %v4114 = vadd.f32 0.0, %v4113
      %v4115 = vpop.f32.mrf.mxu0
      %v4116 = vadd.f32 0.0, %v4115
      %4117 = vmatmul.bf16.gmra.mxu0 %v2836
      %v4118 = vpop.f32.mrf.mxu0
      %v4119 = vadd.f32 0.0, %v4118
      %v4120 = vpop.f32.mrf.mxu0
      %v4121 = vadd.f32 0.0, %v4120
      %4122 = vmatmul.bf16.gmra.mxu0 %v2839
      %v4123 = vpop.f32.mrf.mxu0
      %v4124 = vadd.f32 0.0, %v4123
      %v4125 = vpop.f32.mrf.mxu0
      %v4126 = vadd.f32 0.0, %v4125
      %4127 = vmatmul.bf16.gmra.mxu0 %v2842
      %v4128 = vpop.f32.mrf.mxu0
      %v4129 = vadd.f32 0.0, %v4128
      %v4130 = vpop.f32.mrf.mxu0
      %v4131 = vadd.f32 0.0, %v4130
      %4132 = vdwg.mxu0
      %v4133 = vld [vmem:[%s253] sm:$0x1]
      %v4135 = vperm.slane %v4133, 0
      %v4137 = vmul.f32 %v2854, %v4135
      %v4138 = vmul.f32 %v2856, %v4135
      %v4139 = vmul.f32 %v2859, %v4135
      %v4140 = vmul.f32 %v2861, %v4135
      %v4141 = vmul.f32 %v2864, %v4135
      %v4142 = vmul.f32 %v2866, %v4135
      %v4143 = vmul.f32 %v2869, %v4135
      %v4144 = vmul.f32 %v2871, %v4135
      %v4145 = vmul.f32 %v2874, %v4135
      %v4146 = vmul.f32 %v2876, %v4135
      %v4147 = vmul.f32 %v2879, %v4135
      %v4148 = vmul.f32 %v2881, %v4135
      %v4149 = vmul.f32 %v2884, %v4135
      %v4150 = vmul.f32 %v2886, %v4135
      %v4151 = vmul.f32 %v2889, %v4135
      %v4152 = vmul.f32 %v2891, %v4135
      %v4153 = vmul.f32 %v2894, %v4135
      %v4154 = vmul.f32 %v2896, %v4135
      %v4155 = vmul.f32 %v2899, %v4135
      %v4156 = vmul.f32 %v2901, %v4135
      %v4157 = vmul.f32 %v2904, %v4135
      %v4158 = vmul.f32 %v2906, %v4135
      %v4159 = vmul.f32 %v2909, %v4135
      %v4160 = vmul.f32 %v2911, %v4135
      %v4161 = vmul.f32 %v2914, %v4135
      %v4162 = vmul.f32 %v2916, %v4135
      %v4163 = vmul.f32 %v2919, %v4135
      %v4164 = vmul.f32 %v2921, %v4135
      %v4165 = vmul.f32 %v2924, %v4135
      %v4166 = vmul.f32 %v2926, %v4135
      %v4167 = vmul.f32 %v2929, %v4135
      %v4168 = vmul.f32 %v2931, %v4135
      %v4169 = vmul.f32 %v2934, %v4135
      %v4170 = vmul.f32 %v2936, %v4135
      %v4171 = vmul.f32 %v2939, %v4135
      %v4172 = vmul.f32 %v2941, %v4135
      %v4173 = vmul.f32 %v2944, %v4135
      %v4174 = vmul.f32 %v2946, %v4135
      %v4175 = vmul.f32 %v2949, %v4135
      %v4176 = vmul.f32 %v2951, %v4135
      %v4177 = vmul.f32 %v2954, %v4135
      %v4178 = vmul.f32 %v2956, %v4135
      %v4179 = vmul.f32 %v2959, %v4135
      %v4180 = vmul.f32 %v2961, %v4135
      %v4181 = vmul.f32 %v2964, %v4135
      %v4182 = vmul.f32 %v2966, %v4135
      %v4183 = vmul.f32 %v2969, %v4135
      %v4184 = vmul.f32 %v2971, %v4135
      %v4185 = vmul.f32 %v2974, %v4135
      %v4186 = vmul.f32 %v2976, %v4135
      %v4187 = vmul.f32 %v2979, %v4135
      %v4188 = vmul.f32 %v2981, %v4135
      %v4189 = vmul.f32 %v2984, %v4135
      %v4190 = vmul.f32 %v2986, %v4135
      %v4191 = vmul.f32 %v2989, %v4135
      %v4192 = vmul.f32 %v2991, %v4135
      %v4193 = vmul.f32 %v2994, %v4135
      %v4194 = vmul.f32 %v2996, %v4135
      %v4195 = vmul.f32 %v2999, %v4135
      %v4196 = vmul.f32 %v3001, %v4135
      %v4197 = vmul.f32 %v3004, %v4135
      %v4198 = vmul.f32 %v3006, %v4135
      %v4199 = vmul.f32 %v3009, %v4135
      %v4200 = vmul.f32 %v3011, %v4135
      %v4201 = vmul.f32 %v3014, %v4135
      %v4202 = vmul.f32 %v3016, %v4135
      %v4203 = vmul.f32 %v3019, %v4135
      %v4204 = vmul.f32 %v3021, %v4135
      %v4205 = vmul.f32 %v3024, %v4135
      %v4206 = vmul.f32 %v3026, %v4135
      %v4207 = vmul.f32 %v3029, %v4135
      %v4208 = vmul.f32 %v3031, %v4135
      %v4209 = vmul.f32 %v3034, %v4135
      %v4210 = vmul.f32 %v3036, %v4135
      %v4211 = vmul.f32 %v3039, %v4135
      %v4212 = vmul.f32 %v3041, %v4135
      %v4213 = vmul.f32 %v3044, %v4135
      %v4214 = vmul.f32 %v3046, %v4135
      %v4215 = vmul.f32 %v3049, %v4135
      %v4216 = vmul.f32 %v3051, %v4135
      %v4217 = vmul.f32 %v3054, %v4135
      %v4218 = vmul.f32 %v3056, %v4135
      %v4219 = vmul.f32 %v3059, %v4135
      %v4220 = vmul.f32 %v3061, %v4135
      %v4221 = vmul.f32 %v3064, %v4135
      %v4222 = vmul.f32 %v3066, %v4135
      %v4223 = vmul.f32 %v3069, %v4135
      %v4224 = vmul.f32 %v3071, %v4135
      %v4225 = vmul.f32 %v3074, %v4135
      %v4226 = vmul.f32 %v3076, %v4135
      %v4227 = vmul.f32 %v3079, %v4135
      %v4228 = vmul.f32 %v3081, %v4135
      %v4229 = vmul.f32 %v3084, %v4135
      %v4230 = vmul.f32 %v3086, %v4135
      %v4231 = vmul.f32 %v3089, %v4135
      %v4232 = vmul.f32 %v3091, %v4135
      %v4233 = vmul.f32 %v3094, %v4135
      %v4234 = vmul.f32 %v3096, %v4135
      %v4235 = vmul.f32 %v3099, %v4135
      %v4236 = vmul.f32 %v3101, %v4135
      %v4237 = vmul.f32 %v3104, %v4135
      %v4238 = vmul.f32 %v3106, %v4135
      %v4239 = vmul.f32 %v3109, %v4135
      %v4240 = vmul.f32 %v3111, %v4135
      %v4241 = vmul.f32 %v3114, %v4135
      %v4242 = vmul.f32 %v3116, %v4135
      %v4243 = vmul.f32 %v3119, %v4135
      %v4244 = vmul.f32 %v3121, %v4135
      %v4245 = vmul.f32 %v3124, %v4135
      %v4246 = vmul.f32 %v3126, %v4135
      %v4247 = vmul.f32 %v3129, %v4135
      %v4248 = vmul.f32 %v3131, %v4135
      %v4249 = vmul.f32 %v3134, %v4135
      %v4250 = vmul.f32 %v3136, %v4135
      %v4251 = vmul.f32 %v3139, %v4135
      %v4252 = vmul.f32 %v3141, %v4135
      %v4253 = vmul.f32 %v3144, %v4135
      %v4254 = vmul.f32 %v3146, %v4135
      %v4255 = vmul.f32 %v3149, %v4135
      %v4256 = vmul.f32 %v3151, %v4135
      %v4257 = vmul.f32 %v3154, %v4135
      %v4258 = vmul.f32 %v3156, %v4135
      %v4259 = vmul.f32 %v3159, %v4135
      %v4260 = vmul.f32 %v3161, %v4135
      %v4261 = vmul.f32 %v3164, %v4135
      %v4262 = vmul.f32 %v3166, %v4135
      %v4263 = vmul.f32 %v3169, %v4135
      %v4264 = vmul.f32 %v3171, %v4135
      %v4265 = vmul.f32 %v3174, %v4135
      %v4266 = vmul.f32 %v3176, %v4135
      %v4267 = vmul.f32 %v3179, %v4135
      %v4268 = vmul.f32 %v3181, %v4135
      %v4269 = vmul.f32 %v3184, %v4135
      %v4270 = vmul.f32 %v3186, %v4135
      %v4271 = vmul.f32 %v3189, %v4135
      %v4272 = vmul.f32 %v3191, %v4135
      %v4273 = vmul.f32 %v3194, %v4135
      %v4274 = vmul.f32 %v3196, %v4135
      %v4275 = vmul.f32 %v3199, %v4135
      %v4276 = vmul.f32 %v3201, %v4135
      %v4277 = vmul.f32 %v3204, %v4135
      %v4278 = vmul.f32 %v3206, %v4135
      %v4279 = vmul.f32 %v3209, %v4135
      %v4280 = vmul.f32 %v3211, %v4135
      %v4281 = vmul.f32 %v3214, %v4135
      %v4282 = vmul.f32 %v3216, %v4135
      %v4283 = vmul.f32 %v3219, %v4135
      %v4284 = vmul.f32 %v3221, %v4135
      %v4285 = vmul.f32 %v3224, %v4135
      %v4286 = vmul.f32 %v3226, %v4135
      %v4287 = vmul.f32 %v3229, %v4135
      %v4288 = vmul.f32 %v3231, %v4135
      %v4289 = vmul.f32 %v3234, %v4135
      %v4290 = vmul.f32 %v3236, %v4135
      %v4291 = vmul.f32 %v3239, %v4135
      %v4292 = vmul.f32 %v3241, %v4135
      %v4293 = vmul.f32 %v3244, %v4135
      %v4294 = vmul.f32 %v3246, %v4135
      %v4295 = vmul.f32 %v3249, %v4135
      %v4296 = vmul.f32 %v3251, %v4135
      %v4297 = vmul.f32 %v3254, %v4135
      %v4298 = vmul.f32 %v3256, %v4135
      %v4299 = vmul.f32 %v3259, %v4135
      %v4300 = vmul.f32 %v3261, %v4135
      %v4301 = vmul.f32 %v3264, %v4135
      %v4302 = vmul.f32 %v3266, %v4135
      %v4303 = vmul.f32 %v3269, %v4135
      %v4304 = vmul.f32 %v3271, %v4135
      %v4305 = vmul.f32 %v3274, %v4135
      %v4306 = vmul.f32 %v3276, %v4135
      %v4307 = vmul.f32 %v3279, %v4135
      %v4308 = vmul.f32 %v3281, %v4135
      %v4309 = vmul.f32 %v3284, %v4135
      %v4310 = vmul.f32 %v3286, %v4135
      %v4311 = vmul.f32 %v3289, %v4135
      %v4312 = vmul.f32 %v3291, %v4135
      %v4313 = vmul.f32 %v3294, %v4135
      %v4314 = vmul.f32 %v3296, %v4135
      %v4315 = vmul.f32 %v3299, %v4135
      %v4316 = vmul.f32 %v3301, %v4135
      %v4317 = vmul.f32 %v3304, %v4135
      %v4318 = vmul.f32 %v3306, %v4135
      %v4319 = vmul.f32 %v3309, %v4135
      %v4320 = vmul.f32 %v3311, %v4135
      %v4321 = vmul.f32 %v3314, %v4135
      %v4322 = vmul.f32 %v3316, %v4135
      %v4323 = vmul.f32 %v3319, %v4135
      %v4324 = vmul.f32 %v3321, %v4135
      %v4325 = vmul.f32 %v3324, %v4135
      %v4326 = vmul.f32 %v3326, %v4135
      %v4327 = vmul.f32 %v3329, %v4135
      %v4328 = vmul.f32 %v3331, %v4135
      %v4329 = vmul.f32 %v3334, %v4135
      %v4330 = vmul.f32 %v3336, %v4135
      %v4331 = vmul.f32 %v3339, %v4135
      %v4332 = vmul.f32 %v3341, %v4135
      %v4333 = vmul.f32 %v3344, %v4135
      %v4334 = vmul.f32 %v3346, %v4135
      %v4335 = vmul.f32 %v3349, %v4135
      %v4336 = vmul.f32 %v3351, %v4135
      %v4337 = vmul.f32 %v3354, %v4135
      %v4338 = vmul.f32 %v3356, %v4135
      %v4339 = vmul.f32 %v3359, %v4135
      %v4340 = vmul.f32 %v3361, %v4135
      %v4341 = vmul.f32 %v3364, %v4135
      %v4342 = vmul.f32 %v3366, %v4135
      %v4343 = vmul.f32 %v3369, %v4135
      %v4344 = vmul.f32 %v3371, %v4135
      %v4345 = vmul.f32 %v3374, %v4135
      %v4346 = vmul.f32 %v3376, %v4135
      %v4347 = vmul.f32 %v3379, %v4135
      %v4348 = vmul.f32 %v3381, %v4135
      %v4349 = vmul.f32 %v3384, %v4135
      %v4350 = vmul.f32 %v3386, %v4135
      %v4351 = vmul.f32 %v3389, %v4135
      %v4352 = vmul.f32 %v3391, %v4135
      %v4353 = vmul.f32 %v3394, %v4135
      %v4354 = vmul.f32 %v3396, %v4135
      %v4355 = vmul.f32 %v3399, %v4135
      %v4356 = vmul.f32 %v3401, %v4135
      %v4357 = vmul.f32 %v3404, %v4135
      %v4358 = vmul.f32 %v3406, %v4135
      %v4359 = vmul.f32 %v3409, %v4135
      %v4360 = vmul.f32 %v3411, %v4135
      %v4361 = vmul.f32 %v3414, %v4135
      %v4362 = vmul.f32 %v3416, %v4135
      %v4363 = vmul.f32 %v3419, %v4135
      %v4364 = vmul.f32 %v3421, %v4135
      %v4365 = vmul.f32 %v3424, %v4135
      %v4366 = vmul.f32 %v3426, %v4135
      %v4367 = vmul.f32 %v3429, %v4135
      %v4368 = vmul.f32 %v3431, %v4135
      %v4369 = vmul.f32 %v3434, %v4135
      %v4370 = vmul.f32 %v3436, %v4135
      %v4371 = vmul.f32 %v3439, %v4135
      %v4372 = vmul.f32 %v3441, %v4135
      %v4373 = vmul.f32 %v3444, %v4135
      %v4374 = vmul.f32 %v3446, %v4135
      %v4375 = vmul.f32 %v3449, %v4135
      %v4376 = vmul.f32 %v3451, %v4135
      %v4377 = vmul.f32 %v3454, %v4135
      %v4378 = vmul.f32 %v3456, %v4135
      %v4379 = vmul.f32 %v3459, %v4135
      %v4380 = vmul.f32 %v3461, %v4135
      %v4381 = vmul.f32 %v3464, %v4135
      %v4382 = vmul.f32 %v3466, %v4135
      %v4383 = vmul.f32 %v3469, %v4135
      %v4384 = vmul.f32 %v3471, %v4135
      %v4385 = vmul.f32 %v3474, %v4135
      %v4386 = vmul.f32 %v3476, %v4135
      %v4387 = vmul.f32 %v3479, %v4135
      %v4388 = vmul.f32 %v3481, %v4135
      %v4389 = vmul.f32 %v3484, %v4135
      %v4390 = vmul.f32 %v3486, %v4135
      %v4391 = vmul.f32 %v3489, %v4135
      %v4392 = vmul.f32 %v3491, %v4135
      %v4393 = vmul.f32 %v3494, %v4135
      %v4394 = vmul.f32 %v3496, %v4135
      %v4395 = vmul.f32 %v3499, %v4135
      %v4396 = vmul.f32 %v3501, %v4135
      %v4397 = vmul.f32 %v3504, %v4135
      %v4398 = vmul.f32 %v3506, %v4135
      %v4399 = vmul.f32 %v3509, %v4135
      %v4400 = vmul.f32 %v3511, %v4135
      %v4401 = vmul.f32 %v3514, %v4135
      %v4402 = vmul.f32 %v3516, %v4135
      %v4403 = vmul.f32 %v3519, %v4135
      %v4404 = vmul.f32 %v3521, %v4135
      %v4405 = vmul.f32 %v3524, %v4135
      %v4406 = vmul.f32 %v3526, %v4135
      %v4407 = vmul.f32 %v3529, %v4135
      %v4408 = vmul.f32 %v3531, %v4135
      %v4409 = vmul.f32 %v3534, %v4135
      %v4410 = vmul.f32 %v3536, %v4135
      %v4411 = vmul.f32 %v3539, %v4135
      %v4412 = vmul.f32 %v3541, %v4135
      %v4413 = vmul.f32 %v3544, %v4135
      %v4414 = vmul.f32 %v3546, %v4135
      %v4415 = vmul.f32 %v3549, %v4135
      %v4416 = vmul.f32 %v3551, %v4135
      %v4417 = vmul.f32 %v3554, %v4135
      %v4418 = vmul.f32 %v3556, %v4135
      %v4419 = vmul.f32 %v3559, %v4135
      %v4420 = vmul.f32 %v3561, %v4135
      %v4421 = vmul.f32 %v3564, %v4135
      %v4422 = vmul.f32 %v3566, %v4135
      %v4423 = vmul.f32 %v3569, %v4135
      %v4424 = vmul.f32 %v3571, %v4135
      %v4425 = vmul.f32 %v3574, %v4135
      %v4426 = vmul.f32 %v3576, %v4135
      %v4427 = vmul.f32 %v3579, %v4135
      %v4428 = vmul.f32 %v3581, %v4135
      %v4429 = vmul.f32 %v3584, %v4135
      %v4430 = vmul.f32 %v3586, %v4135
      %v4431 = vmul.f32 %v3589, %v4135
      %v4432 = vmul.f32 %v3591, %v4135
      %v4433 = vmul.f32 %v3594, %v4135
      %v4434 = vmul.f32 %v3596, %v4135
      %v4435 = vmul.f32 %v3599, %v4135
      %v4436 = vmul.f32 %v3601, %v4135
      %v4437 = vmul.f32 %v3604, %v4135
      %v4438 = vmul.f32 %v3606, %v4135
      %v4439 = vmul.f32 %v3609, %v4135
      %v4440 = vmul.f32 %v3611, %v4135
      %v4441 = vmul.f32 %v3614, %v4135
      %v4442 = vmul.f32 %v3616, %v4135
      %v4443 = vmul.f32 %v3619, %v4135
      %v4444 = vmul.f32 %v3621, %v4135
      %v4445 = vmul.f32 %v3624, %v4135
      %v4446 = vmul.f32 %v3626, %v4135
      %v4447 = vmul.f32 %v3629, %v4135
      %v4448 = vmul.f32 %v3631, %v4135
      %v4449 = vmul.f32 %v3634, %v4135
      %v4450 = vmul.f32 %v3636, %v4135
      %v4451 = vmul.f32 %v3639, %v4135
      %v4452 = vmul.f32 %v3641, %v4135
      %v4453 = vmul.f32 %v3644, %v4135
      %v4454 = vmul.f32 %v3646, %v4135
      %v4455 = vmul.f32 %v3649, %v4135
      %v4456 = vmul.f32 %v3651, %v4135
      %v4457 = vmul.f32 %v3654, %v4135
      %v4458 = vmul.f32 %v3656, %v4135
      %v4459 = vmul.f32 %v3659, %v4135
      %v4460 = vmul.f32 %v3661, %v4135
      %v4461 = vmul.f32 %v3664, %v4135
      %v4462 = vmul.f32 %v3666, %v4135
      %v4463 = vmul.f32 %v3669, %v4135
      %v4464 = vmul.f32 %v3671, %v4135
      %v4465 = vmul.f32 %v3674, %v4135
      %v4466 = vmul.f32 %v3676, %v4135
      %v4467 = vmul.f32 %v3679, %v4135
      %v4468 = vmul.f32 %v3681, %v4135
      %v4469 = vmul.f32 %v3684, %v4135
      %v4470 = vmul.f32 %v3686, %v4135
      %v4471 = vmul.f32 %v3689, %v4135
      %v4472 = vmul.f32 %v3691, %v4135
      %v4473 = vmul.f32 %v3694, %v4135
      %v4474 = vmul.f32 %v3696, %v4135
      %v4475 = vmul.f32 %v3699, %v4135
      %v4476 = vmul.f32 %v3701, %v4135
      %v4477 = vmul.f32 %v3704, %v4135
      %v4478 = vmul.f32 %v3706, %v4135
      %v4479 = vmul.f32 %v3709, %v4135
      %v4480 = vmul.f32 %v3711, %v4135
      %v4481 = vmul.f32 %v3714, %v4135
      %v4482 = vmul.f32 %v3716, %v4135
      %v4483 = vmul.f32 %v3719, %v4135
      %v4484 = vmul.f32 %v3721, %v4135
      %v4485 = vmul.f32 %v3724, %v4135
      %v4486 = vmul.f32 %v3726, %v4135
      %v4487 = vmul.f32 %v3729, %v4135
      %v4488 = vmul.f32 %v3731, %v4135
      %v4489 = vmul.f32 %v3734, %v4135
      %v4490 = vmul.f32 %v3736, %v4135
      %v4491 = vmul.f32 %v3739, %v4135
      %v4492 = vmul.f32 %v3741, %v4135
      %v4493 = vmul.f32 %v3744, %v4135
      %v4494 = vmul.f32 %v3746, %v4135
      %v4495 = vmul.f32 %v3749, %v4135
      %v4496 = vmul.f32 %v3751, %v4135
      %v4497 = vmul.f32 %v3754, %v4135
      %v4498 = vmul.f32 %v3756, %v4135
      %v4499 = vmul.f32 %v3759, %v4135
      %v4500 = vmul.f32 %v3761, %v4135
      %v4501 = vmul.f32 %v3764, %v4135
      %v4502 = vmul.f32 %v3766, %v4135
      %v4503 = vmul.f32 %v3769, %v4135
      %v4504 = vmul.f32 %v3771, %v4135
      %v4505 = vmul.f32 %v3774, %v4135
      %v4506 = vmul.f32 %v3776, %v4135
      %v4507 = vmul.f32 %v3779, %v4135
      %v4508 = vmul.f32 %v3781, %v4135
      %v4509 = vmul.f32 %v3784, %v4135
      %v4510 = vmul.f32 %v3786, %v4135
      %v4511 = vmul.f32 %v3789, %v4135
      %v4512 = vmul.f32 %v3791, %v4135
      %v4513 = vmul.f32 %v3794, %v4135
      %v4514 = vmul.f32 %v3796, %v4135
      %v4515 = vmul.f32 %v3799, %v4135
      %v4516 = vmul.f32 %v3801, %v4135
      %v4517 = vmul.f32 %v3804, %v4135
      %v4518 = vmul.f32 %v3806, %v4135
      %v4519 = vmul.f32 %v3809, %v4135
      %v4520 = vmul.f32 %v3811, %v4135
      %v4521 = vmul.f32 %v3814, %v4135
      %v4522 = vmul.f32 %v3816, %v4135
      %v4523 = vmul.f32 %v3819, %v4135
      %v4524 = vmul.f32 %v3821, %v4135
      %v4525 = vmul.f32 %v3824, %v4135
      %v4526 = vmul.f32 %v3826, %v4135
      %v4527 = vmul.f32 %v3829, %v4135
      %v4528 = vmul.f32 %v3831, %v4135
      %v4529 = vmul.f32 %v3834, %v4135
      %v4530 = vmul.f32 %v3836, %v4135
      %v4531 = vmul.f32 %v3839, %v4135
      %v4532 = vmul.f32 %v3841, %v4135
      %v4533 = vmul.f32 %v3844, %v4135
      %v4534 = vmul.f32 %v3846, %v4135
      %v4535 = vmul.f32 %v3849, %v4135
      %v4536 = vmul.f32 %v3851, %v4135
      %v4537 = vmul.f32 %v3854, %v4135
      %v4538 = vmul.f32 %v3856, %v4135
      %v4539 = vmul.f32 %v3859, %v4135
      %v4540 = vmul.f32 %v3861, %v4135
      %v4541 = vmul.f32 %v3864, %v4135
      %v4542 = vmul.f32 %v3866, %v4135
      %v4543 = vmul.f32 %v3869, %v4135
      %v4544 = vmul.f32 %v3871, %v4135
      %v4545 = vmul.f32 %v3874, %v4135
      %v4546 = vmul.f32 %v3876, %v4135
      %v4547 = vmul.f32 %v3879, %v4135
      %v4548 = vmul.f32 %v3881, %v4135
      %v4549 = vmul.f32 %v3884, %v4135
      %v4550 = vmul.f32 %v3886, %v4135
      %v4551 = vmul.f32 %v3889, %v4135
      %v4552 = vmul.f32 %v3891, %v4135
      %v4553 = vmul.f32 %v3894, %v4135
      %v4554 = vmul.f32 %v3896, %v4135
      %v4555 = vmul.f32 %v3899, %v4135
      %v4556 = vmul.f32 %v3901, %v4135
      %v4557 = vmul.f32 %v3904, %v4135
      %v4558 = vmul.f32 %v3906, %v4135
      %v4559 = vmul.f32 %v3909, %v4135
      %v4560 = vmul.f32 %v3911, %v4135
      %v4561 = vmul.f32 %v3914, %v4135
      %v4562 = vmul.f32 %v3916, %v4135
      %v4563 = vmul.f32 %v3919, %v4135
      %v4564 = vmul.f32 %v3921, %v4135
      %v4565 = vmul.f32 %v3924, %v4135
      %v4566 = vmul.f32 %v3926, %v4135
      %v4567 = vmul.f32 %v3929, %v4135
      %v4568 = vmul.f32 %v3931, %v4135
      %v4569 = vmul.f32 %v3934, %v4135
      %v4570 = vmul.f32 %v3936, %v4135
      %v4571 = vmul.f32 %v3939, %v4135
      %v4572 = vmul.f32 %v3941, %v4135
      %v4573 = vmul.f32 %v3944, %v4135
      %v4574 = vmul.f32 %v3946, %v4135
      %v4575 = vmul.f32 %v3949, %v4135
      %v4576 = vmul.f32 %v3951, %v4135
      %v4577 = vmul.f32 %v3954, %v4135
      %v4578 = vmul.f32 %v3956, %v4135
      %v4579 = vmul.f32 %v3959, %v4135
      %v4580 = vmul.f32 %v3961, %v4135
      %v4581 = vmul.f32 %v3964, %v4135
      %v4582 = vmul.f32 %v3966, %v4135
      %v4583 = vmul.f32 %v3969, %v4135
      %v4584 = vmul.f32 %v3971, %v4135
      %v4585 = vmul.f32 %v3974, %v4135
      %v4586 = vmul.f32 %v3976, %v4135
      %v4587 = vmul.f32 %v3979, %v4135
      %v4588 = vmul.f32 %v3981, %v4135
      %v4589 = vmul.f32 %v3984, %v4135
      %v4590 = vmul.f32 %v3986, %v4135
      %v4591 = vmul.f32 %v3989, %v4135
      %v4592 = vmul.f32 %v3991, %v4135
      %v4593 = vmul.f32 %v3994, %v4135
      %v4594 = vmul.f32 %v3996, %v4135
      %v4595 = vmul.f32 %v3999, %v4135
      %v4596 = vmul.f32 %v4001, %v4135
      %v4597 = vmul.f32 %v4004, %v4135
      %v4598 = vmul.f32 %v4006, %v4135
      %v4599 = vmul.f32 %v4009, %v4135
      %v4600 = vmul.f32 %v4011, %v4135
      %v4601 = vmul.f32 %v4014, %v4135
      %v4602 = vmul.f32 %v4016, %v4135
      %v4603 = vmul.f32 %v4019, %v4135
      %v4604 = vmul.f32 %v4021, %v4135
      %v4605 = vmul.f32 %v4024, %v4135
      %v4606 = vmul.f32 %v4026, %v4135
      %v4607 = vmul.f32 %v4029, %v4135
      %v4608 = vmul.f32 %v4031, %v4135
      %v4609 = vmul.f32 %v4034, %v4135
      %v4610 = vmul.f32 %v4036, %v4135
      %v4611 = vmul.f32 %v4039, %v4135
      %v4612 = vmul.f32 %v4041, %v4135
      %v4613 = vmul.f32 %v4044, %v4135
      %v4614 = vmul.f32 %v4046, %v4135
      %v4615 = vmul.f32 %v4049, %v4135
      %v4616 = vmul.f32 %v4051, %v4135
      %v4617 = vmul.f32 %v4054, %v4135
      %v4618 = vmul.f32 %v4056, %v4135
      %v4619 = vmul.f32 %v4059, %v4135
      %v4620 = vmul.f32 %v4061, %v4135
      %v4621 = vmul.f32 %v4064, %v4135
      %v4622 = vmul.f32 %v4066, %v4135
      %v4623 = vmul.f32 %v4069, %v4135
      %v4624 = vmul.f32 %v4071, %v4135
      %v4625 = vmul.f32 %v4074, %v4135
      %v4626 = vmul.f32 %v4076, %v4135
      %v4627 = vmul.f32 %v4079, %v4135
      %v4628 = vmul.f32 %v4081, %v4135
      %v4629 = vmul.f32 %v4084, %v4135
      %v4630 = vmul.f32 %v4086, %v4135
      %v4631 = vmul.f32 %v4089, %v4135
      %v4632 = vmul.f32 %v4091, %v4135
      %v4633 = vmul.f32 %v4094, %v4135
      %v4634 = vmul.f32 %v4096, %v4135
      %v4635 = vmul.f32 %v4099, %v4135
      %v4636 = vmul.f32 %v4101, %v4135
      %v4637 = vmul.f32 %v4104, %v4135
      %v4638 = vmul.f32 %v4106, %v4135
      %v4639 = vmul.f32 %v4109, %v4135
      %v4640 = vmul.f32 %v4111, %v4135
      %v4641 = vmul.f32 %v4114, %v4135
      %v4642 = vmul.f32 %v4116, %v4135
      %v4643 = vmul.f32 %v4119, %v4135
      %v4644 = vmul.f32 %v4121, %v4135
      %v4645 = vmul.f32 %v4124, %v4135
      %v4646 = vmul.f32 %v4126, %v4135
      %v4647 = vmul.f32 %v4129, %v4135
      %v4648 = vmul.f32 %v4131, %v4135
      %v4649 = vld [vmem:[%s256] sm:$0x1]
      %v4651 = vperm.slane %v4649, 0
      %v4653 = vadd.f32 %v4137, %v4651
      %v4654 = vadd.f32 %v4138, %v4651
      %v4655 = vadd.f32 %v4139, %v4651
      %v4656 = vadd.f32 %v4140, %v4651
      %v4657 = vadd.f32 %v4141, %v4651
      %v4658 = vadd.f32 %v4142, %v4651
      %v4659 = vadd.f32 %v4143, %v4651
      %v4660 = vadd.f32 %v4144, %v4651
      %v4661 = vadd.f32 %v4145, %v4651
      %v4662 = vadd.f32 %v4146, %v4651
      %v4663 = vadd.f32 %v4147, %v4651
      %v4664 = vadd.f32 %v4148, %v4651
      %v4665 = vadd.f32 %v4149, %v4651
      %v4666 = vadd.f32 %v4150, %v4651
      %v4667 = vadd.f32 %v4151, %v4651
      %v4668 = vadd.f32 %v4152, %v4651
      %v4669 = vadd.f32 %v4153, %v4651
      %v4670 = vadd.f32 %v4154, %v4651
      %v4671 = vadd.f32 %v4155, %v4651
      %v4672 = vadd.f32 %v4156, %v4651
      %v4673 = vadd.f32 %v4157, %v4651
      %v4674 = vadd.f32 %v4158, %v4651
      %v4675 = vadd.f32 %v4159, %v4651
      %v4676 = vadd.f32 %v4160, %v4651
      %v4677 = vadd.f32 %v4161, %v4651
      %v4678 = vadd.f32 %v4162, %v4651
      %v4679 = vadd.f32 %v4163, %v4651
      %v4680 = vadd.f32 %v4164, %v4651
      %v4681 = vadd.f32 %v4165, %v4651
      %v4682 = vadd.f32 %v4166, %v4651
      %v4683 = vadd.f32 %v4167, %v4651
      %v4684 = vadd.f32 %v4168, %v4651
      %v4685 = vadd.f32 %v4169, %v4651
      %v4686 = vadd.f32 %v4170, %v4651
      %v4687 = vadd.f32 %v4171, %v4651
      %v4688 = vadd.f32 %v4172, %v4651
      %v4689 = vadd.f32 %v4173, %v4651
      %v4690 = vadd.f32 %v4174, %v4651
      %v4691 = vadd.f32 %v4175, %v4651
      %v4692 = vadd.f32 %v4176, %v4651
      %v4693 = vadd.f32 %v4177, %v4651
      %v4694 = vadd.f32 %v4178, %v4651
      %v4695 = vadd.f32 %v4179, %v4651
      %v4696 = vadd.f32 %v4180, %v4651
      %v4697 = vadd.f32 %v4181, %v4651
      %v4698 = vadd.f32 %v4182, %v4651
      %v4699 = vadd.f32 %v4183, %v4651
      %v4700 = vadd.f32 %v4184, %v4651
      %v4701 = vadd.f32 %v4185, %v4651
      %v4702 = vadd.f32 %v4186, %v4651
      %v4703 = vadd.f32 %v4187, %v4651
      %v4704 = vadd.f32 %v4188, %v4651
      %v4705 = vadd.f32 %v4189, %v4651
      %v4706 = vadd.f32 %v4190, %v4651
      %v4707 = vadd.f32 %v4191, %v4651
      %v4708 = vadd.f32 %v4192, %v4651
      %v4709 = vadd.f32 %v4193, %v4651
      %v4710 = vadd.f32 %v4194, %v4651
      %v4711 = vadd.f32 %v4195, %v4651
      %v4712 = vadd.f32 %v4196, %v4651
      %v4713 = vadd.f32 %v4197, %v4651
      %v4714 = vadd.f32 %v4198, %v4651
      %v4715 = vadd.f32 %v4199, %v4651
      %v4716 = vadd.f32 %v4200, %v4651
      %v4717 = vadd.f32 %v4201, %v4651
      %v4718 = vadd.f32 %v4202, %v4651
      %v4719 = vadd.f32 %v4203, %v4651
      %v4720 = vadd.f32 %v4204, %v4651
      %v4721 = vadd.f32 %v4205, %v4651
      %v4722 = vadd.f32 %v4206, %v4651
      %v4723 = vadd.f32 %v4207, %v4651
      %v4724 = vadd.f32 %v4208, %v4651
      %v4725 = vadd.f32 %v4209, %v4651
      %v4726 = vadd.f32 %v4210, %v4651
      %v4727 = vadd.f32 %v4211, %v4651
      %v4728 = vadd.f32 %v4212, %v4651
      %v4729 = vadd.f32 %v4213, %v4651
      %v4730 = vadd.f32 %v4214, %v4651
      %v4731 = vadd.f32 %v4215, %v4651
      %v4732 = vadd.f32 %v4216, %v4651
      %v4733 = vadd.f32 %v4217, %v4651
      %v4734 = vadd.f32 %v4218, %v4651
      %v4735 = vadd.f32 %v4219, %v4651
      %v4736 = vadd.f32 %v4220, %v4651
      %v4737 = vadd.f32 %v4221, %v4651
      %v4738 = vadd.f32 %v4222, %v4651
      %v4739 = vadd.f32 %v4223, %v4651
      %v4740 = vadd.f32 %v4224, %v4651
      %v4741 = vadd.f32 %v4225, %v4651
      %v4742 = vadd.f32 %v4226, %v4651
      %v4743 = vadd.f32 %v4227, %v4651
      %v4744 = vadd.f32 %v4228, %v4651
      %v4745 = vadd.f32 %v4229, %v4651
      %v4746 = vadd.f32 %v4230, %v4651
      %v4747 = vadd.f32 %v4231, %v4651
      %v4748 = vadd.f32 %v4232, %v4651
      %v4749 = vadd.f32 %v4233, %v4651
      %v4750 = vadd.f32 %v4234, %v4651
      %v4751 = vadd.f32 %v4235, %v4651
      %v4752 = vadd.f32 %v4236, %v4651
      %v4753 = vadd.f32 %v4237, %v4651
      %v4754 = vadd.f32 %v4238, %v4651
      %v4755 = vadd.f32 %v4239, %v4651
      %v4756 = vadd.f32 %v4240, %v4651
      %v4757 = vadd.f32 %v4241, %v4651
      %v4758 = vadd.f32 %v4242, %v4651
      %v4759 = vadd.f32 %v4243, %v4651
      %v4760 = vadd.f32 %v4244, %v4651
      %v4761 = vadd.f32 %v4245, %v4651
      %v4762 = vadd.f32 %v4246, %v4651
      %v4763 = vadd.f32 %v4247, %v4651
      %v4764 = vadd.f32 %v4248, %v4651
      %v4765 = vadd.f32 %v4249, %v4651
      %v4766 = vadd.f32 %v4250, %v4651
      %v4767 = vadd.f32 %v4251, %v4651
      %v4768 = vadd.f32 %v4252, %v4651
      %v4769 = vadd.f32 %v4253, %v4651
      %v4770 = vadd.f32 %v4254, %v4651
      %v4771 = vadd.f32 %v4255, %v4651
      %v4772 = vadd.f32 %v4256, %v4651
      %v4773 = vadd.f32 %v4257, %v4651
      %v4774 = vadd.f32 %v4258, %v4651
      %v4775 = vadd.f32 %v4259, %v4651
      %v4776 = vadd.f32 %v4260, %v4651
      %v4777 = vadd.f32 %v4261, %v4651
      %v4778 = vadd.f32 %v4262, %v4651
      %v4779 = vadd.f32 %v4263, %v4651
      %v4780 = vadd.f32 %v4264, %v4651
      %v4781 = vadd.f32 %v4265, %v4651
      %v4782 = vadd.f32 %v4266, %v4651
      %v4783 = vadd.f32 %v4267, %v4651
      %v4784 = vadd.f32 %v4268, %v4651
      %v4785 = vadd.f32 %v4269, %v4651
      %v4786 = vadd.f32 %v4270, %v4651
      %v4787 = vadd.f32 %v4271, %v4651
      %v4788 = vadd.f32 %v4272, %v4651
      %v4789 = vadd.f32 %v4273, %v4651
      %v4790 = vadd.f32 %v4274, %v4651
      %v4791 = vadd.f32 %v4275, %v4651
      %v4792 = vadd.f32 %v4276, %v4651
      %v4793 = vadd.f32 %v4277, %v4651
      %v4794 = vadd.f32 %v4278, %v4651
      %v4795 = vadd.f32 %v4279, %v4651
      %v4796 = vadd.f32 %v4280, %v4651
      %v4797 = vadd.f32 %v4281, %v4651
      %v4798 = vadd.f32 %v4282, %v4651
      %v4799 = vadd.f32 %v4283, %v4651
      %v4800 = vadd.f32 %v4284, %v4651
      %v4801 = vadd.f32 %v4285, %v4651
      %v4802 = vadd.f32 %v4286, %v4651
      %v4803 = vadd.f32 %v4287, %v4651
      %v4804 = vadd.f32 %v4288, %v4651
      %v4805 = vadd.f32 %v4289, %v4651
      %v4806 = vadd.f32 %v4290, %v4651
      %v4807 = vadd.f32 %v4291, %v4651
      %v4808 = vadd.f32 %v4292, %v4651
      %v4809 = vadd.f32 %v4293, %v4651
      %v4810 = vadd.f32 %v4294, %v4651
      %v4811 = vadd.f32 %v4295, %v4651
      %v4812 = vadd.f32 %v4296, %v4651
      %v4813 = vadd.f32 %v4297, %v4651
      %v4814 = vadd.f32 %v4298, %v4651
      %v4815 = vadd.f32 %v4299, %v4651
      %v4816 = vadd.f32 %v4300, %v4651
      %v4817 = vadd.f32 %v4301, %v4651
      %v4818 = vadd.f32 %v4302, %v4651
      %v4819 = vadd.f32 %v4303, %v4651
      %v4820 = vadd.f32 %v4304, %v4651
      %v4821 = vadd.f32 %v4305, %v4651
      %v4822 = vadd.f32 %v4306, %v4651
      %v4823 = vadd.f32 %v4307, %v4651
      %v4824 = vadd.f32 %v4308, %v4651
      %v4825 = vadd.f32 %v4309, %v4651
      %v4826 = vadd.f32 %v4310, %v4651
      %v4827 = vadd.f32 %v4311, %v4651
      %v4828 = vadd.f32 %v4312, %v4651
      %v4829 = vadd.f32 %v4313, %v4651
      %v4830 = vadd.f32 %v4314, %v4651
      %v4831 = vadd.f32 %v4315, %v4651
      %v4832 = vadd.f32 %v4316, %v4651
      %v4833 = vadd.f32 %v4317, %v4651
      %v4834 = vadd.f32 %v4318, %v4651
      %v4835 = vadd.f32 %v4319, %v4651
      %v4836 = vadd.f32 %v4320, %v4651
      %v4837 = vadd.f32 %v4321, %v4651
      %v4838 = vadd.f32 %v4322, %v4651
      %v4839 = vadd.f32 %v4323, %v4651
      %v4840 = vadd.f32 %v4324, %v4651
      %v4841 = vadd.f32 %v4325, %v4651
      %v4842 = vadd.f32 %v4326, %v4651
      %v4843 = vadd.f32 %v4327, %v4651
      %v4844 = vadd.f32 %v4328, %v4651
      %v4845 = vadd.f32 %v4329, %v4651
      %v4846 = vadd.f32 %v4330, %v4651
      %v4847 = vadd.f32 %v4331, %v4651
      %v4848 = vadd.f32 %v4332, %v4651
      %v4849 = vadd.f32 %v4333, %v4651
      %v4850 = vadd.f32 %v4334, %v4651
      %v4851 = vadd.f32 %v4335, %v4651
      %v4852 = vadd.f32 %v4336, %v4651
      %v4853 = vadd.f32 %v4337, %v4651
      %v4854 = vadd.f32 %v4338, %v4651
      %v4855 = vadd.f32 %v4339, %v4651
      %v4856 = vadd.f32 %v4340, %v4651
      %v4857 = vadd.f32 %v4341, %v4651
      %v4858 = vadd.f32 %v4342, %v4651
      %v4859 = vadd.f32 %v4343, %v4651
      %v4860 = vadd.f32 %v4344, %v4651
      %v4861 = vadd.f32 %v4345, %v4651
      %v4862 = vadd.f32 %v4346, %v4651
      %v4863 = vadd.f32 %v4347, %v4651
      %v4864 = vadd.f32 %v4348, %v4651
      %v4865 = vadd.f32 %v4349, %v4651
      %v4866 = vadd.f32 %v4350, %v4651
      %v4867 = vadd.f32 %v4351, %v4651
      %v4868 = vadd.f32 %v4352, %v4651
      %v4869 = vadd.f32 %v4353, %v4651
      %v4870 = vadd.f32 %v4354, %v4651
      %v4871 = vadd.f32 %v4355, %v4651
      %v4872 = vadd.f32 %v4356, %v4651
      %v4873 = vadd.f32 %v4357, %v4651
      %v4874 = vadd.f32 %v4358, %v4651
      %v4875 = vadd.f32 %v4359, %v4651
      %v4876 = vadd.f32 %v4360, %v4651
      %v4877 = vadd.f32 %v4361, %v4651
      %v4878 = vadd.f32 %v4362, %v4651
      %v4879 = vadd.f32 %v4363, %v4651
      %v4880 = vadd.f32 %v4364, %v4651
      %v4881 = vadd.f32 %v4365, %v4651
      %v4882 = vadd.f32 %v4366, %v4651
      %v4883 = vadd.f32 %v4367, %v4651
      %v4884 = vadd.f32 %v4368, %v4651
      %v4885 = vadd.f32 %v4369, %v4651
      %v4886 = vadd.f32 %v4370, %v4651
      %v4887 = vadd.f32 %v4371, %v4651
      %v4888 = vadd.f32 %v4372, %v4651
      %v4889 = vadd.f32 %v4373, %v4651
      %v4890 = vadd.f32 %v4374, %v4651
      %v4891 = vadd.f32 %v4375, %v4651
      %v4892 = vadd.f32 %v4376, %v4651
      %v4893 = vadd.f32 %v4377, %v4651
      %v4894 = vadd.f32 %v4378, %v4651
      %v4895 = vadd.f32 %v4379, %v4651
      %v4896 = vadd.f32 %v4380, %v4651
      %v4897 = vadd.f32 %v4381, %v4651
      %v4898 = vadd.f32 %v4382, %v4651
      %v4899 = vadd.f32 %v4383, %v4651
      %v4900 = vadd.f32 %v4384, %v4651
      %v4901 = vadd.f32 %v4385, %v4651
      %v4902 = vadd.f32 %v4386, %v4651
      %v4903 = vadd.f32 %v4387, %v4651
      %v4904 = vadd.f32 %v4388, %v4651
      %v4905 = vadd.f32 %v4389, %v4651
      %v4906 = vadd.f32 %v4390, %v4651
      %v4907 = vadd.f32 %v4391, %v4651
      %v4908 = vadd.f32 %v4392, %v4651
      %v4909 = vadd.f32 %v4393, %v4651
      %v4910 = vadd.f32 %v4394, %v4651
      %v4911 = vadd.f32 %v4395, %v4651
      %v4912 = vadd.f32 %v4396, %v4651
      %v4913 = vadd.f32 %v4397, %v4651
      %v4914 = vadd.f32 %v4398, %v4651
      %v4915 = vadd.f32 %v4399, %v4651
      %v4916 = vadd.f32 %v4400, %v4651
      %v4917 = vadd.f32 %v4401, %v4651
      %v4918 = vadd.f32 %v4402, %v4651
      %v4919 = vadd.f32 %v4403, %v4651
      %v4920 = vadd.f32 %v4404, %v4651
      %v4921 = vadd.f32 %v4405, %v4651
      %v4922 = vadd.f32 %v4406, %v4651
      %v4923 = vadd.f32 %v4407, %v4651
      %v4924 = vadd.f32 %v4408, %v4651
      %v4925 = vadd.f32 %v4409, %v4651
      %v4926 = vadd.f32 %v4410, %v4651
      %v4927 = vadd.f32 %v4411, %v4651
      %v4928 = vadd.f32 %v4412, %v4651
      %v4929 = vadd.f32 %v4413, %v4651
      %v4930 = vadd.f32 %v4414, %v4651
      %v4931 = vadd.f32 %v4415, %v4651
      %v4932 = vadd.f32 %v4416, %v4651
      %v4933 = vadd.f32 %v4417, %v4651
      %v4934 = vadd.f32 %v4418, %v4651
      %v4935 = vadd.f32 %v4419, %v4651
      %v4936 = vadd.f32 %v4420, %v4651
      %v4937 = vadd.f32 %v4421, %v4651
      %v4938 = vadd.f32 %v4422, %v4651
      %v4939 = vadd.f32 %v4423, %v4651
      %v4940 = vadd.f32 %v4424, %v4651
      %v4941 = vadd.f32 %v4425, %v4651
      %v4942 = vadd.f32 %v4426, %v4651
      %v4943 = vadd.f32 %v4427, %v4651
      %v4944 = vadd.f32 %v4428, %v4651
      %v4945 = vadd.f32 %v4429, %v4651
      %v4946 = vadd.f32 %v4430, %v4651
      %v4947 = vadd.f32 %v4431, %v4651
      %v4948 = vadd.f32 %v4432, %v4651
      %v4949 = vadd.f32 %v4433, %v4651
      %v4950 = vadd.f32 %v4434, %v4651
      %v4951 = vadd.f32 %v4435, %v4651
      %v4952 = vadd.f32 %v4436, %v4651
      %v4953 = vadd.f32 %v4437, %v4651
      %v4954 = vadd.f32 %v4438, %v4651
      %v4955 = vadd.f32 %v4439, %v4651
      %v4956 = vadd.f32 %v4440, %v4651
      %v4957 = vadd.f32 %v4441, %v4651
      %v4958 = vadd.f32 %v4442, %v4651
      %v4959 = vadd.f32 %v4443, %v4651
      %v4960 = vadd.f32 %v4444, %v4651
      %v4961 = vadd.f32 %v4445, %v4651
      %v4962 = vadd.f32 %v4446, %v4651
      %v4963 = vadd.f32 %v4447, %v4651
      %v4964 = vadd.f32 %v4448, %v4651
      %v4965 = vadd.f32 %v4449, %v4651
      %v4966 = vadd.f32 %v4450, %v4651
      %v4967 = vadd.f32 %v4451, %v4651
      %v4968 = vadd.f32 %v4452, %v4651
      %v4969 = vadd.f32 %v4453, %v4651
      %v4970 = vadd.f32 %v4454, %v4651
      %v4971 = vadd.f32 %v4455, %v4651
      %v4972 = vadd.f32 %v4456, %v4651
      %v4973 = vadd.f32 %v4457, %v4651
      %v4974 = vadd.f32 %v4458, %v4651
      %v4975 = vadd.f32 %v4459, %v4651
      %v4976 = vadd.f32 %v4460, %v4651
      %v4977 = vadd.f32 %v4461, %v4651
      %v4978 = vadd.f32 %v4462, %v4651
      %v4979 = vadd.f32 %v4463, %v4651
      %v4980 = vadd.f32 %v4464, %v4651
      %v4981 = vadd.f32 %v4465, %v4651
      %v4982 = vadd.f32 %v4466, %v4651
      %v4983 = vadd.f32 %v4467, %v4651
      %v4984 = vadd.f32 %v4468, %v4651
      %v4985 = vadd.f32 %v4469, %v4651
      %v4986 = vadd.f32 %v4470, %v4651
      %v4987 = vadd.f32 %v4471, %v4651
      %v4988 = vadd.f32 %v4472, %v4651
      %v4989 = vadd.f32 %v4473, %v4651
      %v4990 = vadd.f32 %v4474, %v4651
      %v4991 = vadd.f32 %v4475, %v4651
      %v4992 = vadd.f32 %v4476, %v4651
      %v4993 = vadd.f32 %v4477, %v4651
      %v4994 = vadd.f32 %v4478, %v4651
      %v4995 = vadd.f32 %v4479, %v4651
      %v4996 = vadd.f32 %v4480, %v4651
      %v4997 = vadd.f32 %v4481, %v4651
      %v4998 = vadd.f32 %v4482, %v4651
      %v4999 = vadd.f32 %v4483, %v4651
      %v5000 = vadd.f32 %v4484, %v4651
      %v5001 = vadd.f32 %v4485, %v4651
      %v5002 = vadd.f32 %v4486, %v4651
      %v5003 = vadd.f32 %v4487, %v4651
      %v5004 = vadd.f32 %v4488, %v4651
      %v5005 = vadd.f32 %v4489, %v4651
      %v5006 = vadd.f32 %v4490, %v4651
      %v5007 = vadd.f32 %v4491, %v4651
      %v5008 = vadd.f32 %v4492, %v4651
      %v5009 = vadd.f32 %v4493, %v4651
      %v5010 = vadd.f32 %v4494, %v4651
      %v5011 = vadd.f32 %v4495, %v4651
      %v5012 = vadd.f32 %v4496, %v4651
      %v5013 = vadd.f32 %v4497, %v4651
      %v5014 = vadd.f32 %v4498, %v4651
      %v5015 = vadd.f32 %v4499, %v4651
      %v5016 = vadd.f32 %v4500, %v4651
      %v5017 = vadd.f32 %v4501, %v4651
      %v5018 = vadd.f32 %v4502, %v4651
      %v5019 = vadd.f32 %v4503, %v4651
      %v5020 = vadd.f32 %v4504, %v4651
      %v5021 = vadd.f32 %v4505, %v4651
      %v5022 = vadd.f32 %v4506, %v4651
      %v5023 = vadd.f32 %v4507, %v4651
      %v5024 = vadd.f32 %v4508, %v4651
      %v5025 = vadd.f32 %v4509, %v4651
      %v5026 = vadd.f32 %v4510, %v4651
      %v5027 = vadd.f32 %v4511, %v4651
      %v5028 = vadd.f32 %v4512, %v4651
      %v5029 = vadd.f32 %v4513, %v4651
      %v5030 = vadd.f32 %v4514, %v4651
      %v5031 = vadd.f32 %v4515, %v4651
      %v5032 = vadd.f32 %v4516, %v4651
      %v5033 = vadd.f32 %v4517, %v4651
      %v5034 = vadd.f32 %v4518, %v4651
      %v5035 = vadd.f32 %v4519, %v4651
      %v5036 = vadd.f32 %v4520, %v4651
      %v5037 = vadd.f32 %v4521, %v4651
      %v5038 = vadd.f32 %v4522, %v4651
      %v5039 = vadd.f32 %v4523, %v4651
      %v5040 = vadd.f32 %v4524, %v4651
      %v5041 = vadd.f32 %v4525, %v4651
      %v5042 = vadd.f32 %v4526, %v4651
      %v5043 = vadd.f32 %v4527, %v4651
      %v5044 = vadd.f32 %v4528, %v4651
      %v5045 = vadd.f32 %v4529, %v4651
      %v5046 = vadd.f32 %v4530, %v4651
      %v5047 = vadd.f32 %v4531, %v4651
      %v5048 = vadd.f32 %v4532, %v4651
      %v5049 = vadd.f32 %v4533, %v4651
      %v5050 = vadd.f32 %v4534, %v4651
      %v5051 = vadd.f32 %v4535, %v4651
      %v5052 = vadd.f32 %v4536, %v4651
      %v5053 = vadd.f32 %v4537, %v4651
      %v5054 = vadd.f32 %v4538, %v4651
      %v5055 = vadd.f32 %v4539, %v4651
      %v5056 = vadd.f32 %v4540, %v4651
      %v5057 = vadd.f32 %v4541, %v4651
      %v5058 = vadd.f32 %v4542, %v4651
      %v5059 = vadd.f32 %v4543, %v4651
      %v5060 = vadd.f32 %v4544, %v4651
      %v5061 = vadd.f32 %v4545, %v4651
      %v5062 = vadd.f32 %v4546, %v4651
      %v5063 = vadd.f32 %v4547, %v4651
      %v5064 = vadd.f32 %v4548, %v4651
      %v5065 = vadd.f32 %v4549, %v4651
      %v5066 = vadd.f32 %v4550, %v4651
      %v5067 = vadd.f32 %v4551, %v4651
      %v5068 = vadd.f32 %v4552, %v4651
      %v5069 = vadd.f32 %v4553, %v4651
      %v5070 = vadd.f32 %v4554, %v4651
      %v5071 = vadd.f32 %v4555, %v4651
      %v5072 = vadd.f32 %v4556, %v4651
      %v5073 = vadd.f32 %v4557, %v4651
      %v5074 = vadd.f32 %v4558, %v4651
      %v5075 = vadd.f32 %v4559, %v4651
      %v5076 = vadd.f32 %v4560, %v4651
      %v5077 = vadd.f32 %v4561, %v4651
      %v5078 = vadd.f32 %v4562, %v4651
      %v5079 = vadd.f32 %v4563, %v4651
      %v5080 = vadd.f32 %v4564, %v4651
      %v5081 = vadd.f32 %v4565, %v4651
      %v5082 = vadd.f32 %v4566, %v4651
      %v5083 = vadd.f32 %v4567, %v4651
      %v5084 = vadd.f32 %v4568, %v4651
      %v5085 = vadd.f32 %v4569, %v4651
      %v5086 = vadd.f32 %v4570, %v4651
      %v5087 = vadd.f32 %v4571, %v4651
      %v5088 = vadd.f32 %v4572, %v4651
      %v5089 = vadd.f32 %v4573, %v4651
      %v5090 = vadd.f32 %v4574, %v4651
      %v5091 = vadd.f32 %v4575, %v4651
      %v5092 = vadd.f32 %v4576, %v4651
      %v5093 = vadd.f32 %v4577, %v4651
      %v5094 = vadd.f32 %v4578, %v4651
      %v5095 = vadd.f32 %v4579, %v4651
      %v5096 = vadd.f32 %v4580, %v4651
      %v5097 = vadd.f32 %v4581, %v4651
      %v5098 = vadd.f32 %v4582, %v4651
      %v5099 = vadd.f32 %v4583, %v4651
      %v5100 = vadd.f32 %v4584, %v4651
      %v5101 = vadd.f32 %v4585, %v4651
      %v5102 = vadd.f32 %v4586, %v4651
      %v5103 = vadd.f32 %v4587, %v4651
      %v5104 = vadd.f32 %v4588, %v4651
      %v5105 = vadd.f32 %v4589, %v4651
      %v5106 = vadd.f32 %v4590, %v4651
      %v5107 = vadd.f32 %v4591, %v4651
      %v5108 = vadd.f32 %v4592, %v4651
      %v5109 = vadd.f32 %v4593, %v4651
      %v5110 = vadd.f32 %v4594, %v4651
      %v5111 = vadd.f32 %v4595, %v4651
      %v5112 = vadd.f32 %v4596, %v4651
      %v5113 = vadd.f32 %v4597, %v4651
      %v5114 = vadd.f32 %v4598, %v4651
      %v5115 = vadd.f32 %v4599, %v4651
      %v5116 = vadd.f32 %v4600, %v4651
      %v5117 = vadd.f32 %v4601, %v4651
      %v5118 = vadd.f32 %v4602, %v4651
      %v5119 = vadd.f32 %v4603, %v4651
      %v5120 = vadd.f32 %v4604, %v4651
      %v5121 = vadd.f32 %v4605, %v4651
      %v5122 = vadd.f32 %v4606, %v4651
      %v5123 = vadd.f32 %v4607, %v4651
      %v5124 = vadd.f32 %v4608, %v4651
      %v5125 = vadd.f32 %v4609, %v4651
      %v5126 = vadd.f32 %v4610, %v4651
      %v5127 = vadd.f32 %v4611, %v4651
      %v5128 = vadd.f32 %v4612, %v4651
      %v5129 = vadd.f32 %v4613, %v4651
      %v5130 = vadd.f32 %v4614, %v4651
      %v5131 = vadd.f32 %v4615, %v4651
      %v5132 = vadd.f32 %v4616, %v4651
      %v5133 = vadd.f32 %v4617, %v4651
      %v5134 = vadd.f32 %v4618, %v4651
      %v5135 = vadd.f32 %v4619, %v4651
      %v5136 = vadd.f32 %v4620, %v4651
      %v5137 = vadd.f32 %v4621, %v4651
      %v5138 = vadd.f32 %v4622, %v4651
      %v5139 = vadd.f32 %v4623, %v4651
      %v5140 = vadd.f32 %v4624, %v4651
      %v5141 = vadd.f32 %v4625, %v4651
      %v5142 = vadd.f32 %v4626, %v4651
      %v5143 = vadd.f32 %v4627, %v4651
      %v5144 = vadd.f32 %v4628, %v4651
      %v5145 = vadd.f32 %v4629, %v4651
      %v5146 = vadd.f32 %v4630, %v4651
      %v5147 = vadd.f32 %v4631, %v4651
      %v5148 = vadd.f32 %v4632, %v4651
      %v5149 = vadd.f32 %v4633, %v4651
      %v5150 = vadd.f32 %v4634, %v4651
      %v5151 = vadd.f32 %v4635, %v4651
      %v5152 = vadd.f32 %v4636, %v4651
      %v5153 = vadd.f32 %v4637, %v4651
      %v5154 = vadd.f32 %v4638, %v4651
      %v5155 = vadd.f32 %v4639, %v4651
      %v5156 = vadd.f32 %v4640, %v4651
      %v5157 = vadd.f32 %v4641, %v4651
      %v5158 = vadd.f32 %v4642, %v4651
      %v5159 = vadd.f32 %v4643, %v4651
      %v5160 = vadd.f32 %v4644, %v4651
      %v5161 = vadd.f32 %v4645, %v4651
      %v5162 = vadd.f32 %v4646, %v4651
      %v5163 = vadd.f32 %v4647, %v4651
      %v5164 = vadd.f32 %v4648, %v4651
      %v5165 = vmax.f32 %v4653, 0.0
      %v5166 = vmax.f32 %v4654, 0.0
      %v5167 = vmax.f32 %v4655, 0.0
      %v5168 = vmax.f32 %v4656, 0.0
      %v5169 = vmax.f32 %v4657, 0.0
      %v5170 = vmax.f32 %v4658, 0.0
      %v5171 = vmax.f32 %v4659, 0.0
      %v5172 = vmax.f32 %v4660, 0.0
      %v5173 = vmax.f32 %v4661, 0.0
      %v5174 = vmax.f32 %v4662, 0.0
      %v5175 = vmax.f32 %v4663, 0.0
      %v5176 = vmax.f32 %v4664, 0.0
      %v5177 = vmax.f32 %v4665, 0.0
      %v5178 = vmax.f32 %v4666, 0.0
      %v5179 = vmax.f32 %v4667, 0.0
      %v5180 = vmax.f32 %v4668, 0.0
      %v5181 = vmax.f32 %v4669, 0.0
      %v5182 = vmax.f32 %v4670, 0.0
      %v5183 = vmax.f32 %v4671, 0.0
      %v5184 = vmax.f32 %v4672, 0.0
      %v5185 = vmax.f32 %v4673, 0.0
      %v5186 = vmax.f32 %v4674, 0.0
      %v5187 = vmax.f32 %v4675, 0.0
      %v5188 = vmax.f32 %v4676, 0.0
      %v5189 = vmax.f32 %v4677, 0.0
      %v5190 = vmax.f32 %v4678, 0.0
      %v5191 = vmax.f32 %v4679, 0.0
      %v5192 = vmax.f32 %v4680, 0.0
      %v5193 = vmax.f32 %v4681, 0.0
      %v5194 = vmax.f32 %v4682, 0.0
      %v5195 = vmax.f32 %v4683, 0.0
      %v5196 = vmax.f32 %v4684, 0.0
      %v5197 = vmax.f32 %v4685, 0.0
      %v5198 = vmax.f32 %v4686, 0.0
      %v5199 = vmax.f32 %v4687, 0.0
      %v5200 = vmax.f32 %v4688, 0.0
      %v5201 = vmax.f32 %v4689, 0.0
      %v5202 = vmax.f32 %v4690, 0.0
      %v5203 = vmax.f32 %v4691, 0.0
      %v5204 = vmax.f32 %v4692, 0.0
      %v5205 = vmax.f32 %v4693, 0.0
      %v5206 = vmax.f32 %v4694, 0.0
      %v5207 = vmax.f32 %v4695, 0.0
      %v5208 = vmax.f32 %v4696, 0.0
      %v5209 = vmax.f32 %v4697, 0.0
      %v5210 = vmax.f32 %v4698, 0.0
      %v5211 = vmax.f32 %v4699, 0.0
      %v5212 = vmax.f32 %v4700, 0.0
      %v5213 = vmax.f32 %v4701, 0.0
      %v5214 = vmax.f32 %v4702, 0.0
      %v5215 = vmax.f32 %v4703, 0.0
      %v5216 = vmax.f32 %v4704, 0.0
      %v5217 = vmax.f32 %v4705, 0.0
      %v5218 = vmax.f32 %v4706, 0.0
      %v5219 = vmax.f32 %v4707, 0.0
      %v5220 = vmax.f32 %v4708, 0.0
      %v5221 = vmax.f32 %v4709, 0.0
      %v5222 = vmax.f32 %v4710, 0.0
      %v5223 = vmax.f32 %v4711, 0.0
      %v5224 = vmax.f32 %v4712, 0.0
      %v5225 = vmax.f32 %v4713, 0.0
      %v5226 = vmax.f32 %v4714, 0.0
      %v5227 = vmax.f32 %v4715, 0.0
      %v5228 = vmax.f32 %v4716, 0.0
      %v5229 = vmax.f32 %v4717, 0.0
      %v5230 = vmax.f32 %v4718, 0.0
      %v5231 = vmax.f32 %v4719, 0.0
      %v5232 = vmax.f32 %v4720, 0.0
      %v5233 = vmax.f32 %v4721, 0.0
      %v5234 = vmax.f32 %v4722, 0.0
      %v5235 = vmax.f32 %v4723, 0.0
      %v5236 = vmax.f32 %v4724, 0.0
      %v5237 = vmax.f32 %v4725, 0.0
      %v5238 = vmax.f32 %v4726, 0.0
      %v5239 = vmax.f32 %v4727, 0.0
      %v5240 = vmax.f32 %v4728, 0.0
      %v5241 = vmax.f32 %v4729, 0.0
      %v5242 = vmax.f32 %v4730, 0.0
      %v5243 = vmax.f32 %v4731, 0.0
      %v5244 = vmax.f32 %v4732, 0.0
      %v5245 = vmax.f32 %v4733, 0.0
      %v5246 = vmax.f32 %v4734, 0.0
      %v5247 = vmax.f32 %v4735, 0.0
      %v5248 = vmax.f32 %v4736, 0.0
      %v5249 = vmax.f32 %v4737, 0.0
      %v5250 = vmax.f32 %v4738, 0.0
      %v5251 = vmax.f32 %v4739, 0.0
      %v5252 = vmax.f32 %v4740, 0.0
      %v5253 = vmax.f32 %v4741, 0.0
      %v5254 = vmax.f32 %v4742, 0.0
      %v5255 = vmax.f32 %v4743, 0.0
      %v5256 = vmax.f32 %v4744, 0.0
      %v5257 = vmax.f32 %v4745, 0.0
      %v5258 = vmax.f32 %v4746, 0.0
      %v5259 = vmax.f32 %v4747, 0.0
      %v5260 = vmax.f32 %v4748, 0.0
      %v5261 = vmax.f32 %v4749, 0.0
      %v5262 = vmax.f32 %v4750, 0.0
      %v5263 = vmax.f32 %v4751, 0.0
      %v5264 = vmax.f32 %v4752, 0.0
      %v5265 = vmax.f32 %v4753, 0.0
      %v5266 = vmax.f32 %v4754, 0.0
      %v5267 = vmax.f32 %v4755, 0.0
      %v5268 = vmax.f32 %v4756, 0.0
      %v5269 = vmax.f32 %v4757, 0.0
      %v5270 = vmax.f32 %v4758, 0.0
      %v5271 = vmax.f32 %v4759, 0.0
      %v5272 = vmax.f32 %v4760, 0.0
      %v5273 = vmax.f32 %v4761, 0.0
      %v5274 = vmax.f32 %v4762, 0.0
      %v5275 = vmax.f32 %v4763, 0.0
      %v5276 = vmax.f32 %v4764, 0.0
      %v5277 = vmax.f32 %v4765, 0.0
      %v5278 = vmax.f32 %v4766, 0.0
      %v5279 = vmax.f32 %v4767, 0.0
      %v5280 = vmax.f32 %v4768, 0.0
      %v5281 = vmax.f32 %v4769, 0.0
      %v5282 = vmax.f32 %v4770, 0.0
      %v5283 = vmax.f32 %v4771, 0.0
      %v5284 = vmax.f32 %v4772, 0.0
      %v5285 = vmax.f32 %v4773, 0.0
      %v5286 = vmax.f32 %v4774, 0.0
      %v5287 = vmax.f32 %v4775, 0.0
      %v5288 = vmax.f32 %v4776, 0.0
      %v5289 = vmax.f32 %v4777, 0.0
      %v5290 = vmax.f32 %v4778, 0.0
      %v5291 = vmax.f32 %v4779, 0.0
      %v5292 = vmax.f32 %v4780, 0.0
      %v5293 = vmax.f32 %v4781, 0.0
      %v5294 = vmax.f32 %v4782, 0.0
      %v5295 = vmax.f32 %v4783, 0.0
      %v5296 = vmax.f32 %v4784, 0.0
      %v5297 = vmax.f32 %v4785, 0.0
      %v5298 = vmax.f32 %v4786, 0.0
      %v5299 = vmax.f32 %v4787, 0.0
      %v5300 = vmax.f32 %v4788, 0.0
      %v5301 = vmax.f32 %v4789, 0.0
      %v5302 = vmax.f32 %v4790, 0.0
      %v5303 = vmax.f32 %v4791, 0.0
      %v5304 = vmax.f32 %v4792, 0.0
      %v5305 = vmax.f32 %v4793, 0.0
      %v5306 = vmax.f32 %v4794, 0.0
      %v5307 = vmax.f32 %v4795, 0.0
      %v5308 = vmax.f32 %v4796, 0.0
      %v5309 = vmax.f32 %v4797, 0.0
      %v5310 = vmax.f32 %v4798, 0.0
      %v5311 = vmax.f32 %v4799, 0.0
      %v5312 = vmax.f32 %v4800, 0.0
      %v5313 = vmax.f32 %v4801, 0.0
      %v5314 = vmax.f32 %v4802, 0.0
      %v5315 = vmax.f32 %v4803, 0.0
      %v5316 = vmax.f32 %v4804, 0.0
      %v5317 = vmax.f32 %v4805, 0.0
      %v5318 = vmax.f32 %v4806, 0.0
      %v5319 = vmax.f32 %v4807, 0.0
      %v5320 = vmax.f32 %v4808, 0.0
      %v5321 = vmax.f32 %v4809, 0.0
      %v5322 = vmax.f32 %v4810, 0.0
      %v5323 = vmax.f32 %v4811, 0.0
      %v5324 = vmax.f32 %v4812, 0.0
      %v5325 = vmax.f32 %v4813, 0.0
      %v5326 = vmax.f32 %v4814, 0.0
      %v5327 = vmax.f32 %v4815, 0.0
      %v5328 = vmax.f32 %v4816, 0.0
      %v5329 = vmax.f32 %v4817, 0.0
      %v5330 = vmax.f32 %v4818, 0.0
      %v5331 = vmax.f32 %v4819, 0.0
      %v5332 = vmax.f32 %v4820, 0.0
      %v5333 = vmax.f32 %v4821, 0.0
      %v5334 = vmax.f32 %v4822, 0.0
      %v5335 = vmax.f32 %v4823, 0.0
      %v5336 = vmax.f32 %v4824, 0.0
      %v5337 = vmax.f32 %v4825, 0.0
      %v5338 = vmax.f32 %v4826, 0.0
      %v5339 = vmax.f32 %v4827, 0.0
      %v5340 = vmax.f32 %v4828, 0.0
      %v5341 = vmax.f32 %v4829, 0.0
      %v5342 = vmax.f32 %v4830, 0.0
      %v5343 = vmax.f32 %v4831, 0.0
      %v5344 = vmax.f32 %v4832, 0.0
      %v5345 = vmax.f32 %v4833, 0.0
      %v5346 = vmax.f32 %v4834, 0.0
      %v5347 = vmax.f32 %v4835, 0.0
      %v5348 = vmax.f32 %v4836, 0.0
      %v5349 = vmax.f32 %v4837, 0.0
      %v5350 = vmax.f32 %v4838, 0.0
      %v5351 = vmax.f32 %v4839, 0.0
      %v5352 = vmax.f32 %v4840, 0.0
      %v5353 = vmax.f32 %v4841, 0.0
      %v5354 = vmax.f32 %v4842, 0.0
      %v5355 = vmax.f32 %v4843, 0.0
      %v5356 = vmax.f32 %v4844, 0.0
      %v5357 = vmax.f32 %v4845, 0.0
      %v5358 = vmax.f32 %v4846, 0.0
      %v5359 = vmax.f32 %v4847, 0.0
      %v5360 = vmax.f32 %v4848, 0.0
      %v5361 = vmax.f32 %v4849, 0.0
      %v5362 = vmax.f32 %v4850, 0.0
      %v5363 = vmax.f32 %v4851, 0.0
      %v5364 = vmax.f32 %v4852, 0.0
      %v5365 = vmax.f32 %v4853, 0.0
      %v5366 = vmax.f32 %v4854, 0.0
      %v5367 = vmax.f32 %v4855, 0.0
      %v5368 = vmax.f32 %v4856, 0.0
      %v5369 = vmax.f32 %v4857, 0.0
      %v5370 = vmax.f32 %v4858, 0.0
      %v5371 = vmax.f32 %v4859, 0.0
      %v5372 = vmax.f32 %v4860, 0.0
      %v5373 = vmax.f32 %v4861, 0.0
      %v5374 = vmax.f32 %v4862, 0.0
      %v5375 = vmax.f32 %v4863, 0.0
      %v5376 = vmax.f32 %v4864, 0.0
      %v5377 = vmax.f32 %v4865, 0.0
      %v5378 = vmax.f32 %v4866, 0.0
      %v5379 = vmax.f32 %v4867, 0.0
      %v5380 = vmax.f32 %v4868, 0.0
      %v5381 = vmax.f32 %v4869, 0.0
      %v5382 = vmax.f32 %v4870, 0.0
      %v5383 = vmax.f32 %v4871, 0.0
      %v5384 = vmax.f32 %v4872, 0.0
      %v5385 = vmax.f32 %v4873, 0.0
      %v5386 = vmax.f32 %v4874, 0.0
      %v5387 = vmax.f32 %v4875, 0.0
      %v5388 = vmax.f32 %v4876, 0.0
      %v5389 = vmax.f32 %v4877, 0.0
      %v5390 = vmax.f32 %v4878, 0.0
      %v5391 = vmax.f32 %v4879, 0.0
      %v5392 = vmax.f32 %v4880, 0.0
      %v5393 = vmax.f32 %v4881, 0.0
      %v5394 = vmax.f32 %v4882, 0.0
      %v5395 = vmax.f32 %v4883, 0.0
      %v5396 = vmax.f32 %v4884, 0.0
      %v5397 = vmax.f32 %v4885, 0.0
      %v5398 = vmax.f32 %v4886, 0.0
      %v5399 = vmax.f32 %v4887, 0.0
      %v5400 = vmax.f32 %v4888, 0.0
      %v5401 = vmax.f32 %v4889, 0.0
      %v5402 = vmax.f32 %v4890, 0.0
      %v5403 = vmax.f32 %v4891, 0.0
      %v5404 = vmax.f32 %v4892, 0.0
      %v5405 = vmax.f32 %v4893, 0.0
      %v5406 = vmax.f32 %v4894, 0.0
      %v5407 = vmax.f32 %v4895, 0.0
      %v5408 = vmax.f32 %v4896, 0.0
      %v5409 = vmax.f32 %v4897, 0.0
      %v5410 = vmax.f32 %v4898, 0.0
      %v5411 = vmax.f32 %v4899, 0.0
      %v5412 = vmax.f32 %v4900, 0.0
      %v5413 = vmax.f32 %v4901, 0.0
      %v5414 = vmax.f32 %v4902, 0.0
      %v5415 = vmax.f32 %v4903, 0.0
      %v5416 = vmax.f32 %v4904, 0.0
      %v5417 = vmax.f32 %v4905, 0.0
      %v5418 = vmax.f32 %v4906, 0.0
      %v5419 = vmax.f32 %v4907, 0.0
      %v5420 = vmax.f32 %v4908, 0.0
      %v5421 = vmax.f32 %v4909, 0.0
      %v5422 = vmax.f32 %v4910, 0.0
      %v5423 = vmax.f32 %v4911, 0.0
      %v5424 = vmax.f32 %v4912, 0.0
      %v5425 = vmax.f32 %v4913, 0.0
      %v5426 = vmax.f32 %v4914, 0.0
      %v5427 = vmax.f32 %v4915, 0.0
      %v5428 = vmax.f32 %v4916, 0.0
      %v5429 = vmax.f32 %v4917, 0.0
      %v5430 = vmax.f32 %v4918, 0.0
      %v5431 = vmax.f32 %v4919, 0.0
      %v5432 = vmax.f32 %v4920, 0.0
      %v5433 = vmax.f32 %v4921, 0.0
      %v5434 = vmax.f32 %v4922, 0.0
      %v5435 = vmax.f32 %v4923, 0.0
      %v5436 = vmax.f32 %v4924, 0.0
      %v5437 = vmax.f32 %v4925, 0.0
      %v5438 = vmax.f32 %v4926, 0.0
      %v5439 = vmax.f32 %v4927, 0.0
      %v5440 = vmax.f32 %v4928, 0.0
      %v5441 = vmax.f32 %v4929, 0.0
      %v5442 = vmax.f32 %v4930, 0.0
      %v5443 = vmax.f32 %v4931, 0.0
      %v5444 = vmax.f32 %v4932, 0.0
      %v5445 = vmax.f32 %v4933, 0.0
      %v5446 = vmax.f32 %v4934, 0.0
      %v5447 = vmax.f32 %v4935, 0.0
      %v5448 = vmax.f32 %v4936, 0.0
      %v5449 = vmax.f32 %v4937, 0.0
      %v5450 = vmax.f32 %v4938, 0.0
      %v5451 = vmax.f32 %v4939, 0.0
      %v5452 = vmax.f32 %v4940, 0.0
      %v5453 = vmax.f32 %v4941, 0.0
      %v5454 = vmax.f32 %v4942, 0.0
      %v5455 = vmax.f32 %v4943, 0.0
      %v5456 = vmax.f32 %v4944, 0.0
      %v5457 = vmax.f32 %v4945, 0.0
      %v5458 = vmax.f32 %v4946, 0.0
      %v5459 = vmax.f32 %v4947, 0.0
      %v5460 = vmax.f32 %v4948, 0.0
      %v5461 = vmax.f32 %v4949, 0.0
      %v5462 = vmax.f32 %v4950, 0.0
      %v5463 = vmax.f32 %v4951, 0.0
      %v5464 = vmax.f32 %v4952, 0.0
      %v5465 = vmax.f32 %v4953, 0.0
      %v5466 = vmax.f32 %v4954, 0.0
      %v5467 = vmax.f32 %v4955, 0.0
      %v5468 = vmax.f32 %v4956, 0.0
      %v5469 = vmax.f32 %v4957, 0.0
      %v5470 = vmax.f32 %v4958, 0.0
      %v5471 = vmax.f32 %v4959, 0.0
      %v5472 = vmax.f32 %v4960, 0.0
      %v5473 = vmax.f32 %v4961, 0.0
      %v5474 = vmax.f32 %v4962, 0.0
      %v5475 = vmax.f32 %v4963, 0.0
      %v5476 = vmax.f32 %v4964, 0.0
      %v5477 = vmax.f32 %v4965, 0.0
      %v5478 = vmax.f32 %v4966, 0.0
      %v5479 = vmax.f32 %v4967, 0.0
      %v5480 = vmax.f32 %v4968, 0.0
      %v5481 = vmax.f32 %v4969, 0.0
      %v5482 = vmax.f32 %v4970, 0.0
      %v5483 = vmax.f32 %v4971, 0.0
      %v5484 = vmax.f32 %v4972, 0.0
      %v5485 = vmax.f32 %v4973, 0.0
      %v5486 = vmax.f32 %v4974, 0.0
      %v5487 = vmax.f32 %v4975, 0.0
      %v5488 = vmax.f32 %v4976, 0.0
      %v5489 = vmax.f32 %v4977, 0.0
      %v5490 = vmax.f32 %v4978, 0.0
      %v5491 = vmax.f32 %v4979, 0.0
      %v5492 = vmax.f32 %v4980, 0.0
      %v5493 = vmax.f32 %v4981, 0.0
      %v5494 = vmax.f32 %v4982, 0.0
      %v5495 = vmax.f32 %v4983, 0.0
      %v5496 = vmax.f32 %v4984, 0.0
      %v5497 = vmax.f32 %v4985, 0.0
      %v5498 = vmax.f32 %v4986, 0.0
      %v5499 = vmax.f32 %v4987, 0.0
      %v5500 = vmax.f32 %v4988, 0.0
      %v5501 = vmax.f32 %v4989, 0.0
      %v5502 = vmax.f32 %v4990, 0.0
      %v5503 = vmax.f32 %v4991, 0.0
      %v5504 = vmax.f32 %v4992, 0.0
      %v5505 = vmax.f32 %v4993, 0.0
      %v5506 = vmax.f32 %v4994, 0.0
      %v5507 = vmax.f32 %v4995, 0.0
      %v5508 = vmax.f32 %v4996, 0.0
      %v5509 = vmax.f32 %v4997, 0.0
      %v5510 = vmax.f32 %v4998, 0.0
      %v5511 = vmax.f32 %v4999, 0.0
      %v5512 = vmax.f32 %v5000, 0.0
      %v5513 = vmax.f32 %v5001, 0.0
      %v5514 = vmax.f32 %v5002, 0.0
      %v5515 = vmax.f32 %v5003, 0.0
      %v5516 = vmax.f32 %v5004, 0.0
      %v5517 = vmax.f32 %v5005, 0.0
      %v5518 = vmax.f32 %v5006, 0.0
      %v5519 = vmax.f32 %v5007, 0.0
      %v5520 = vmax.f32 %v5008, 0.0
      %v5521 = vmax.f32 %v5009, 0.0
      %v5522 = vmax.f32 %v5010, 0.0
      %v5523 = vmax.f32 %v5011, 0.0
      %v5524 = vmax.f32 %v5012, 0.0
      %v5525 = vmax.f32 %v5013, 0.0
      %v5526 = vmax.f32 %v5014, 0.0
      %v5527 = vmax.f32 %v5015, 0.0
      %v5528 = vmax.f32 %v5016, 0.0
      %v5529 = vmax.f32 %v5017, 0.0
      %v5530 = vmax.f32 %v5018, 0.0
      %v5531 = vmax.f32 %v5019, 0.0
      %v5532 = vmax.f32 %v5020, 0.0
      %v5533 = vmax.f32 %v5021, 0.0
      %v5534 = vmax.f32 %v5022, 0.0
      %v5535 = vmax.f32 %v5023, 0.0
      %v5536 = vmax.f32 %v5024, 0.0
      %v5537 = vmax.f32 %v5025, 0.0
      %v5538 = vmax.f32 %v5026, 0.0
      %v5539 = vmax.f32 %v5027, 0.0
      %v5540 = vmax.f32 %v5028, 0.0
      %v5541 = vmax.f32 %v5029, 0.0
      %v5542 = vmax.f32 %v5030, 0.0
      %v5543 = vmax.f32 %v5031, 0.0
      %v5544 = vmax.f32 %v5032, 0.0
      %v5545 = vmax.f32 %v5033, 0.0
      %v5546 = vmax.f32 %v5034, 0.0
      %v5547 = vmax.f32 %v5035, 0.0
      %v5548 = vmax.f32 %v5036, 0.0
      %v5549 = vmax.f32 %v5037, 0.0
      %v5550 = vmax.f32 %v5038, 0.0
      %v5551 = vmax.f32 %v5039, 0.0
      %v5552 = vmax.f32 %v5040, 0.0
      %v5553 = vmax.f32 %v5041, 0.0
      %v5554 = vmax.f32 %v5042, 0.0
      %v5555 = vmax.f32 %v5043, 0.0
      %v5556 = vmax.f32 %v5044, 0.0
      %v5557 = vmax.f32 %v5045, 0.0
      %v5558 = vmax.f32 %v5046, 0.0
      %v5559 = vmax.f32 %v5047, 0.0
      %v5560 = vmax.f32 %v5048, 0.0
      %v5561 = vmax.f32 %v5049, 0.0
      %v5562 = vmax.f32 %v5050, 0.0
      %v5563 = vmax.f32 %v5051, 0.0
      %v5564 = vmax.f32 %v5052, 0.0
      %v5565 = vmax.f32 %v5053, 0.0
      %v5566 = vmax.f32 %v5054, 0.0
      %v5567 = vmax.f32 %v5055, 0.0
      %v5568 = vmax.f32 %v5056, 0.0
      %v5569 = vmax.f32 %v5057, 0.0
      %v5570 = vmax.f32 %v5058, 0.0
      %v5571 = vmax.f32 %v5059, 0.0
      %v5572 = vmax.f32 %v5060, 0.0
      %v5573 = vmax.f32 %v5061, 0.0
      %v5574 = vmax.f32 %v5062, 0.0
      %v5575 = vmax.f32 %v5063, 0.0
      %v5576 = vmax.f32 %v5064, 0.0
      %v5577 = vmax.f32 %v5065, 0.0
      %v5578 = vmax.f32 %v5066, 0.0
      %v5579 = vmax.f32 %v5067, 0.0
      %v5580 = vmax.f32 %v5068, 0.0
      %v5581 = vmax.f32 %v5069, 0.0
      %v5582 = vmax.f32 %v5070, 0.0
      %v5583 = vmax.f32 %v5071, 0.0
      %v5584 = vmax.f32 %v5072, 0.0
      %v5585 = vmax.f32 %v5073, 0.0
      %v5586 = vmax.f32 %v5074, 0.0
      %v5587 = vmax.f32 %v5075, 0.0
      %v5588 = vmax.f32 %v5076, 0.0
      %v5589 = vmax.f32 %v5077, 0.0
      %v5590 = vmax.f32 %v5078, 0.0
      %v5591 = vmax.f32 %v5079, 0.0
      %v5592 = vmax.f32 %v5080, 0.0
      %v5593 = vmax.f32 %v5081, 0.0
      %v5594 = vmax.f32 %v5082, 0.0
      %v5595 = vmax.f32 %v5083, 0.0
      %v5596 = vmax.f32 %v5084, 0.0
      %v5597 = vmax.f32 %v5085, 0.0
      %v5598 = vmax.f32 %v5086, 0.0
      %v5599 = vmax.f32 %v5087, 0.0
      %v5600 = vmax.f32 %v5088, 0.0
      %v5601 = vmax.f32 %v5089, 0.0
      %v5602 = vmax.f32 %v5090, 0.0
      %v5603 = vmax.f32 %v5091, 0.0
      %v5604 = vmax.f32 %v5092, 0.0
      %v5605 = vmax.f32 %v5093, 0.0
      %v5606 = vmax.f32 %v5094, 0.0
      %v5607 = vmax.f32 %v5095, 0.0
      %v5608 = vmax.f32 %v5096, 0.0
      %v5609 = vmax.f32 %v5097, 0.0
      %v5610 = vmax.f32 %v5098, 0.0
      %v5611 = vmax.f32 %v5099, 0.0
      %v5612 = vmax.f32 %v5100, 0.0
      %v5613 = vmax.f32 %v5101, 0.0
      %v5614 = vmax.f32 %v5102, 0.0
      %v5615 = vmax.f32 %v5103, 0.0
      %v5616 = vmax.f32 %v5104, 0.0
      %v5617 = vmax.f32 %v5105, 0.0
      %v5618 = vmax.f32 %v5106, 0.0
      %v5619 = vmax.f32 %v5107, 0.0
      %v5620 = vmax.f32 %v5108, 0.0
      %v5621 = vmax.f32 %v5109, 0.0
      %v5622 = vmax.f32 %v5110, 0.0
      %v5623 = vmax.f32 %v5111, 0.0
      %v5624 = vmax.f32 %v5112, 0.0
      %v5625 = vmax.f32 %v5113, 0.0
      %v5626 = vmax.f32 %v5114, 0.0
      %v5627 = vmax.f32 %v5115, 0.0
      %v5628 = vmax.f32 %v5116, 0.0
      %v5629 = vmax.f32 %v5117, 0.0
      %v5630 = vmax.f32 %v5118, 0.0
      %v5631 = vmax.f32 %v5119, 0.0
      %v5632 = vmax.f32 %v5120, 0.0
      %v5633 = vmax.f32 %v5121, 0.0
      %v5634 = vmax.f32 %v5122, 0.0
      %v5635 = vmax.f32 %v5123, 0.0
      %v5636 = vmax.f32 %v5124, 0.0
      %v5637 = vmax.f32 %v5125, 0.0
      %v5638 = vmax.f32 %v5126, 0.0
      %v5639 = vmax.f32 %v5127, 0.0
      %v5640 = vmax.f32 %v5128, 0.0
      %v5641 = vmax.f32 %v5129, 0.0
      %v5642 = vmax.f32 %v5130, 0.0
      %v5643 = vmax.f32 %v5131, 0.0
      %v5644 = vmax.f32 %v5132, 0.0
      %v5645 = vmax.f32 %v5133, 0.0
      %v5646 = vmax.f32 %v5134, 0.0
      %v5647 = vmax.f32 %v5135, 0.0
      %v5648 = vmax.f32 %v5136, 0.0
      %v5649 = vmax.f32 %v5137, 0.0
      %v5650 = vmax.f32 %v5138, 0.0
      %v5651 = vmax.f32 %v5139, 0.0
      %v5652 = vmax.f32 %v5140, 0.0
      %v5653 = vmax.f32 %v5141, 0.0
      %v5654 = vmax.f32 %v5142, 0.0
      %v5655 = vmax.f32 %v5143, 0.0
      %v5656 = vmax.f32 %v5144, 0.0
      %v5657 = vmax.f32 %v5145, 0.0
      %v5658 = vmax.f32 %v5146, 0.0
      %v5659 = vmax.f32 %v5147, 0.0
      %v5660 = vmax.f32 %v5148, 0.0
      %v5661 = vmax.f32 %v5149, 0.0
      %v5662 = vmax.f32 %v5150, 0.0
      %v5663 = vmax.f32 %v5151, 0.0
      %v5664 = vmax.f32 %v5152, 0.0
      %v5665 = vmax.f32 %v5153, 0.0
      %v5666 = vmax.f32 %v5154, 0.0
      %v5667 = vmax.f32 %v5155, 0.0
      %v5668 = vmax.f32 %v5156, 0.0
      %v5669 = vmax.f32 %v5157, 0.0
      %v5670 = vmax.f32 %v5158, 0.0
      %v5671 = vmax.f32 %v5159, 0.0
      %v5672 = vmax.f32 %v5160, 0.0
      %v5673 = vmax.f32 %v5161, 0.0
      %v5674 = vmax.f32 %v5162, 0.0
      %v5675 = vmax.f32 %v5163, 0.0
      %v5676 = vmax.f32 %v5164, 0.0
      %v5677 = vpack.c.bf16 %v5165, %v5165
      %v5678 = vpack.c.bf16 %v5166, %v5166
      %v5679 = vpack.c.bf16 %v5167, %v5167
      %v5680 = vpack.c.bf16 %v5168, %v5168
      %v5681 = vpack.c.bf16 %v5169, %v5169
      %v5682 = vpack.c.bf16 %v5170, %v5170
      %v5683 = vpack.c.bf16 %v5171, %v5171
      %v5684 = vpack.c.bf16 %v5172, %v5172
      %v5685 = vpack.c.bf16 %v5173, %v5173
      %v5686 = vpack.c.bf16 %v5174, %v5174
      %v5687 = vpack.c.bf16 %v5175, %v5175
      %v5688 = vpack.c.bf16 %v5176, %v5176
      %v5689 = vpack.c.bf16 %v5177, %v5177
      %v5690 = vpack.c.bf16 %v5178, %v5178
      %v5691 = vpack.c.bf16 %v5179, %v5179
      %v5692 = vpack.c.bf16 %v5180, %v5180
      %v5693 = vpack.c.bf16 %v5181, %v5181
      %v5694 = vpack.c.bf16 %v5182, %v5182
      %v5695 = vpack.c.bf16 %v5183, %v5183
      %v5696 = vpack.c.bf16 %v5184, %v5184
      %v5697 = vpack.c.bf16 %v5185, %v5185
      %v5698 = vpack.c.bf16 %v5186, %v5186
      %v5699 = vpack.c.bf16 %v5187, %v5187
      %v5700 = vpack.c.bf16 %v5188, %v5188
      %v5701 = vpack.c.bf16 %v5189, %v5189
      %v5702 = vpack.c.bf16 %v5190, %v5190
      %v5703 = vpack.c.bf16 %v5191, %v5191
      %v5704 = vpack.c.bf16 %v5192, %v5192
      %v5705 = vpack.c.bf16 %v5193, %v5193
      %v5706 = vpack.c.bf16 %v5194, %v5194
      %v5707 = vpack.c.bf16 %v5195, %v5195
      %v5708 = vpack.c.bf16 %v5196, %v5196
      %v5709 = vpack.c.bf16 %v5197, %v5197
      %v5710 = vpack.c.bf16 %v5198, %v5198
      %v5711 = vpack.c.bf16 %v5199, %v5199
      %v5712 = vpack.c.bf16 %v5200, %v5200
      %v5713 = vpack.c.bf16 %v5201, %v5201
      %v5714 = vpack.c.bf16 %v5202, %v5202
      %v5715 = vpack.c.bf16 %v5203, %v5203
      %v5716 = vpack.c.bf16 %v5204, %v5204
      %v5717 = vpack.c.bf16 %v5205, %v5205
      %v5718 = vpack.c.bf16 %v5206, %v5206
      %v5719 = vpack.c.bf16 %v5207, %v5207
      %v5720 = vpack.c.bf16 %v5208, %v5208
      %v5721 = vpack.c.bf16 %v5209, %v5209
      %v5722 = vpack.c.bf16 %v5210, %v5210
      %v5723 = vpack.c.bf16 %v5211, %v5211
      %v5724 = vpack.c.bf16 %v5212, %v5212
      %v5725 = vpack.c.bf16 %v5213, %v5213
      %v5726 = vpack.c.bf16 %v5214, %v5214
      %v5727 = vpack.c.bf16 %v5215, %v5215
      %v5728 = vpack.c.bf16 %v5216, %v5216
      %v5729 = vpack.c.bf16 %v5217, %v5217
      %v5730 = vpack.c.bf16 %v5218, %v5218
      %v5731 = vpack.c.bf16 %v5219, %v5219
      %v5732 = vpack.c.bf16 %v5220, %v5220
      %v5733 = vpack.c.bf16 %v5221, %v5221
      %v5734 = vpack.c.bf16 %v5222, %v5222
      %v5735 = vpack.c.bf16 %v5223, %v5223
      %v5736 = vpack.c.bf16 %v5224, %v5224
      %v5737 = vpack.c.bf16 %v5225, %v5225
      %v5738 = vpack.c.bf16 %v5226, %v5226
      %v5739 = vpack.c.bf16 %v5227, %v5227
      %v5740 = vpack.c.bf16 %v5228, %v5228
      %v5741 = vpack.c.bf16 %v5229, %v5229
      %v5742 = vpack.c.bf16 %v5230, %v5230
      %v5743 = vpack.c.bf16 %v5231, %v5231
      %v5744 = vpack.c.bf16 %v5232, %v5232
      %v5745 = vpack.c.bf16 %v5233, %v5233
      %v5746 = vpack.c.bf16 %v5234, %v5234
      %v5747 = vpack.c.bf16 %v5235, %v5235
      %v5748 = vpack.c.bf16 %v5236, %v5236
      %v5749 = vpack.c.bf16 %v5237, %v5237
      %v5750 = vpack.c.bf16 %v5238, %v5238
      %v5751 = vpack.c.bf16 %v5239, %v5239
      %v5752 = vpack.c.bf16 %v5240, %v5240
      %v5753 = vpack.c.bf16 %v5241, %v5241
      %v5754 = vpack.c.bf16 %v5242, %v5242
      %v5755 = vpack.c.bf16 %v5243, %v5243
      %v5756 = vpack.c.bf16 %v5244, %v5244
      %v5757 = vpack.c.bf16 %v5245, %v5245
      %v5758 = vpack.c.bf16 %v5246, %v5246
      %v5759 = vpack.c.bf16 %v5247, %v5247
      %v5760 = vpack.c.bf16 %v5248, %v5248
      %v5761 = vpack.c.bf16 %v5249, %v5249
      %v5762 = vpack.c.bf16 %v5250, %v5250
      %v5763 = vpack.c.bf16 %v5251, %v5251
      %v5764 = vpack.c.bf16 %v5252, %v5252
      %v5765 = vpack.c.bf16 %v5253, %v5253
      %v5766 = vpack.c.bf16 %v5254, %v5254
      %v5767 = vpack.c.bf16 %v5255, %v5255
      %v5768 = vpack.c.bf16 %v5256, %v5256
      %v5769 = vpack.c.bf16 %v5257, %v5257
      %v5770 = vpack.c.bf16 %v5258, %v5258
      %v5771 = vpack.c.bf16 %v5259, %v5259
      %v5772 = vpack.c.bf16 %v5260, %v5260
      %v5773 = vpack.c.bf16 %v5261, %v5261
      %v5774 = vpack.c.bf16 %v5262, %v5262
      %v5775 = vpack.c.bf16 %v5263, %v5263
      %v5776 = vpack.c.bf16 %v5264, %v5264
      %v5777 = vpack.c.bf16 %v5265, %v5265
      %v5778 = vpack.c.bf16 %v5266, %v5266
      %v5779 = vpack.c.bf16 %v5267, %v5267
      %v5780 = vpack.c.bf16 %v5268, %v5268
      %v5781 = vpack.c.bf16 %v5269, %v5269
      %v5782 = vpack.c.bf16 %v5270, %v5270
      %v5783 = vpack.c.bf16 %v5271, %v5271
      %v5784 = vpack.c.bf16 %v5272, %v5272
      %v5785 = vpack.c.bf16 %v5273, %v5273
      %v5786 = vpack.c.bf16 %v5274, %v5274
      %v5787 = vpack.c.bf16 %v5275, %v5275
      %v5788 = vpack.c.bf16 %v5276, %v5276
      %v5789 = vpack.c.bf16 %v5277, %v5277
      %v5790 = vpack.c.bf16 %v5278, %v5278
      %v5791 = vpack.c.bf16 %v5279, %v5279
      %v5792 = vpack.c.bf16 %v5280, %v5280
      %v5793 = vpack.c.bf16 %v5281, %v5281
      %v5794 = vpack.c.bf16 %v5282, %v5282
      %v5795 = vpack.c.bf16 %v5283, %v5283
      %v5796 = vpack.c.bf16 %v5284, %v5284
      %v5797 = vpack.c.bf16 %v5285, %v5285
      %v5798 = vpack.c.bf16 %v5286, %v5286
      %v5799 = vpack.c.bf16 %v5287, %v5287
      %v5800 = vpack.c.bf16 %v5288, %v5288
      %v5801 = vpack.c.bf16 %v5289, %v5289
      %v5802 = vpack.c.bf16 %v5290, %v5290
      %v5803 = vpack.c.bf16 %v5291, %v5291
      %v5804 = vpack.c.bf16 %v5292, %v5292
      %v5805 = vpack.c.bf16 %v5293, %v5293
      %v5806 = vpack.c.bf16 %v5294, %v5294
      %v5807 = vpack.c.bf16 %v5295, %v5295
      %v5808 = vpack.c.bf16 %v5296, %v5296
      %v5809 = vpack.c.bf16 %v5297, %v5297
      %v5810 = vpack.c.bf16 %v5298, %v5298
      %v5811 = vpack.c.bf16 %v5299, %v5299
      %v5812 = vpack.c.bf16 %v5300, %v5300
      %v5813 = vpack.c.bf16 %v5301, %v5301
      %v5814 = vpack.c.bf16 %v5302, %v5302
      %v5815 = vpack.c.bf16 %v5303, %v5303
      %v5816 = vpack.c.bf16 %v5304, %v5304
      %v5817 = vpack.c.bf16 %v5305, %v5305
      %v5818 = vpack.c.bf16 %v5306, %v5306
      %v5819 = vpack.c.bf16 %v5307, %v5307
      %v5820 = vpack.c.bf16 %v5308, %v5308
      %v5821 = vpack.c.bf16 %v5309, %v5309
      %v5822 = vpack.c.bf16 %v5310, %v5310
      %v5823 = vpack.c.bf16 %v5311, %v5311
      %v5824 = vpack.c.bf16 %v5312, %v5312
      %v5825 = vpack.c.bf16 %v5313, %v5313
      %v5826 = vpack.c.bf16 %v5314, %v5314
      %v5827 = vpack.c.bf16 %v5315, %v5315
      %v5828 = vpack.c.bf16 %v5316, %v5316
      %v5829 = vpack.c.bf16 %v5317, %v5317
      %v5830 = vpack.c.bf16 %v5318, %v5318
      %v5831 = vpack.c.bf16 %v5319, %v5319
      %v5832 = vpack.c.bf16 %v5320, %v5320
      %v5833 = vpack.c.bf16 %v5321, %v5321
      %v5834 = vpack.c.bf16 %v5322, %v5322
      %v5835 = vpack.c.bf16 %v5323, %v5323
      %v5836 = vpack.c.bf16 %v5324, %v5324
      %v5837 = vpack.c.bf16 %v5325, %v5325
      %v5838 = vpack.c.bf16 %v5326, %v5326
      %v5839 = vpack.c.bf16 %v5327, %v5327
      %v5840 = vpack.c.bf16 %v5328, %v5328
      %v5841 = vpack.c.bf16 %v5329, %v5329
      %v5842 = vpack.c.bf16 %v5330, %v5330
      %v5843 = vpack.c.bf16 %v5331, %v5331
      %v5844 = vpack.c.bf16 %v5332, %v5332
      %v5845 = vpack.c.bf16 %v5333, %v5333
      %v5846 = vpack.c.bf16 %v5334, %v5334
      %v5847 = vpack.c.bf16 %v5335, %v5335
      %v5848 = vpack.c.bf16 %v5336, %v5336
      %v5849 = vpack.c.bf16 %v5337, %v5337
      %v5850 = vpack.c.bf16 %v5338, %v5338
      %v5851 = vpack.c.bf16 %v5339, %v5339
      %v5852 = vpack.c.bf16 %v5340, %v5340
      %v5853 = vpack.c.bf16 %v5341, %v5341
      %v5854 = vpack.c.bf16 %v5342, %v5342
      %v5855 = vpack.c.bf16 %v5343, %v5343
      %v5856 = vpack.c.bf16 %v5344, %v5344
      %v5857 = vpack.c.bf16 %v5345, %v5345
      %v5858 = vpack.c.bf16 %v5346, %v5346
      %v5859 = vpack.c.bf16 %v5347, %v5347
      %v5860 = vpack.c.bf16 %v5348, %v5348
      %v5861 = vpack.c.bf16 %v5349, %v5349
      %v5862 = vpack.c.bf16 %v5350, %v5350
      %v5863 = vpack.c.bf16 %v5351, %v5351
      %v5864 = vpack.c.bf16 %v5352, %v5352
      %v5865 = vpack.c.bf16 %v5353, %v5353
      %v5866 = vpack.c.bf16 %v5354, %v5354
      %v5867 = vpack.c.bf16 %v5355, %v5355
      %v5868 = vpack.c.bf16 %v5356, %v5356
      %v5869 = vpack.c.bf16 %v5357, %v5357
      %v5870 = vpack.c.bf16 %v5358, %v5358
      %v5871 = vpack.c.bf16 %v5359, %v5359
      %v5872 = vpack.c.bf16 %v5360, %v5360
      %v5873 = vpack.c.bf16 %v5361, %v5361
      %v5874 = vpack.c.bf16 %v5362, %v5362
      %v5875 = vpack.c.bf16 %v5363, %v5363
      %v5876 = vpack.c.bf16 %v5364, %v5364
      %v5877 = vpack.c.bf16 %v5365, %v5365
      %v5878 = vpack.c.bf16 %v5366, %v5366
      %v5879 = vpack.c.bf16 %v5367, %v5367
      %v5880 = vpack.c.bf16 %v5368, %v5368
      %v5881 = vpack.c.bf16 %v5369, %v5369
      %v5882 = vpack.c.bf16 %v5370, %v5370
      %v5883 = vpack.c.bf16 %v5371, %v5371
      %v5884 = vpack.c.bf16 %v5372, %v5372
      %v5885 = vpack.c.bf16 %v5373, %v5373
      %v5886 = vpack.c.bf16 %v5374, %v5374
      %v5887 = vpack.c.bf16 %v5375, %v5375
      %v5888 = vpack.c.bf16 %v5376, %v5376
      %v5889 = vpack.c.bf16 %v5377, %v5377
      %v5890 = vpack.c.bf16 %v5378, %v5378
      %v5891 = vpack.c.bf16 %v5379, %v5379
      %v5892 = vpack.c.bf16 %v5380, %v5380
      %v5893 = vpack.c.bf16 %v5381, %v5381
      %v5894 = vpack.c.bf16 %v5382, %v5382
      %v5895 = vpack.c.bf16 %v5383, %v5383
      %v5896 = vpack.c.bf16 %v5384, %v5384
      %v5897 = vpack.c.bf16 %v5385, %v5385
      %v5898 = vpack.c.bf16 %v5386, %v5386
      %v5899 = vpack.c.bf16 %v5387, %v5387
      %v5900 = vpack.c.bf16 %v5388, %v5388
      %v5901 = vpack.c.bf16 %v5389, %v5389
      %v5902 = vpack.c.bf16 %v5390, %v5390
      %v5903 = vpack.c.bf16 %v5391, %v5391
      %v5904 = vpack.c.bf16 %v5392, %v5392
      %v5905 = vpack.c.bf16 %v5393, %v5393
      %v5906 = vpack.c.bf16 %v5394, %v5394
      %v5907 = vpack.c.bf16 %v5395, %v5395
      %v5908 = vpack.c.bf16 %v5396, %v5396
      %v5909 = vpack.c.bf16 %v5397, %v5397
      %v5910 = vpack.c.bf16 %v5398, %v5398
      %v5911 = vpack.c.bf16 %v5399, %v5399
      %v5912 = vpack.c.bf16 %v5400, %v5400
      %v5913 = vpack.c.bf16 %v5401, %v5401
      %v5914 = vpack.c.bf16 %v5402, %v5402
      %v5915 = vpack.c.bf16 %v5403, %v5403
      %v5916 = vpack.c.bf16 %v5404, %v5404
      %v5917 = vpack.c.bf16 %v5405, %v5405
      %v5918 = vpack.c.bf16 %v5406, %v5406
      %v5919 = vpack.c.bf16 %v5407, %v5407
      %v5920 = vpack.c.bf16 %v5408, %v5408
      %v5921 = vpack.c.bf16 %v5409, %v5409
      %v5922 = vpack.c.bf16 %v5410, %v5410
      %v5923 = vpack.c.bf16 %v5411, %v5411
      %v5924 = vpack.c.bf16 %v5412, %v5412
      %v5925 = vpack.c.bf16 %v5413, %v5413
      %v5926 = vpack.c.bf16 %v5414, %v5414
      %v5927 = vpack.c.bf16 %v5415, %v5415
      %v5928 = vpack.c.bf16 %v5416, %v5416
      %v5929 = vpack.c.bf16 %v5417, %v5417
      %v5930 = vpack.c.bf16 %v5418, %v5418
      %v5931 = vpack.c.bf16 %v5419, %v5419
      %v5932 = vpack.c.bf16 %v5420, %v5420
      %v5933 = vpack.c.bf16 %v5421, %v5421
      %v5934 = vpack.c.bf16 %v5422, %v5422
      %v5935 = vpack.c.bf16 %v5423, %v5423
      %v5936 = vpack.c.bf16 %v5424, %v5424
      %v5937 = vpack.c.bf16 %v5425, %v5425
      %v5938 = vpack.c.bf16 %v5426, %v5426
      %v5939 = vpack.c.bf16 %v5427, %v5427
      %v5940 = vpack.c.bf16 %v5428, %v5428
      %v5941 = vpack.c.bf16 %v5429, %v5429
      %v5942 = vpack.c.bf16 %v5430, %v5430
      %v5943 = vpack.c.bf16 %v5431, %v5431
      %v5944 = vpack.c.bf16 %v5432, %v5432
      %v5945 = vpack.c.bf16 %v5433, %v5433
      %v5946 = vpack.c.bf16 %v5434, %v5434
      %v5947 = vpack.c.bf16 %v5435, %v5435
      %v5948 = vpack.c.bf16 %v5436, %v5436
      %v5949 = vpack.c.bf16 %v5437, %v5437
      %v5950 = vpack.c.bf16 %v5438, %v5438
      %v5951 = vpack.c.bf16 %v5439, %v5439
      %v5952 = vpack.c.bf16 %v5440, %v5440
      %v5953 = vpack.c.bf16 %v5441, %v5441
      %v5954 = vpack.c.bf16 %v5442, %v5442
      %v5955 = vpack.c.bf16 %v5443, %v5443
      %v5956 = vpack.c.bf16 %v5444, %v5444
      %v5957 = vpack.c.bf16 %v5445, %v5445
      %v5958 = vpack.c.bf16 %v5446, %v5446
      %v5959 = vpack.c.bf16 %v5447, %v5447
      %v5960 = vpack.c.bf16 %v5448, %v5448
      %v5961 = vpack.c.bf16 %v5449, %v5449
      %v5962 = vpack.c.bf16 %v5450, %v5450
      %v5963 = vpack.c.bf16 %v5451, %v5451
      %v5964 = vpack.c.bf16 %v5452, %v5452
      %v5965 = vpack.c.bf16 %v5453, %v5453
      %v5966 = vpack.c.bf16 %v5454, %v5454
      %v5967 = vpack.c.bf16 %v5455, %v5455
      %v5968 = vpack.c.bf16 %v5456, %v5456
      %v5969 = vpack.c.bf16 %v5457, %v5457
      %v5970 = vpack.c.bf16 %v5458, %v5458
      %v5971 = vpack.c.bf16 %v5459, %v5459
      %v5972 = vpack.c.bf16 %v5460, %v5460
      %v5973 = vpack.c.bf16 %v5461, %v5461
      %v5974 = vpack.c.bf16 %v5462, %v5462
      %v5975 = vpack.c.bf16 %v5463, %v5463
      %v5976 = vpack.c.bf16 %v5464, %v5464
      %v5977 = vpack.c.bf16 %v5465, %v5465
      %v5978 = vpack.c.bf16 %v5466, %v5466
      %v5979 = vpack.c.bf16 %v5467, %v5467
      %v5980 = vpack.c.bf16 %v5468, %v5468
      %v5981 = vpack.c.bf16 %v5469, %v5469
      %v5982 = vpack.c.bf16 %v5470, %v5470
      %v5983 = vpack.c.bf16 %v5471, %v5471
      %v5984 = vpack.c.bf16 %v5472, %v5472
      %v5985 = vpack.c.bf16 %v5473, %v5473
      %v5986 = vpack.c.bf16 %v5474, %v5474
      %v5987 = vpack.c.bf16 %v5475, %v5475
      %v5988 = vpack.c.bf16 %v5476, %v5476
      %v5989 = vpack.c.bf16 %v5477, %v5477
      %v5990 = vpack.c.bf16 %v5478, %v5478
      %v5991 = vpack.c.bf16 %v5479, %v5479
      %v5992 = vpack.c.bf16 %v5480, %v5480
      %v5993 = vpack.c.bf16 %v5481, %v5481
      %v5994 = vpack.c.bf16 %v5482, %v5482
      %v5995 = vpack.c.bf16 %v5483, %v5483
      %v5996 = vpack.c.bf16 %v5484, %v5484
      %v5997 = vpack.c.bf16 %v5485, %v5485
      %v5998 = vpack.c.bf16 %v5486, %v5486
      %v5999 = vpack.c.bf16 %v5487, %v5487
      %v6000 = vpack.c.bf16 %v5488, %v5488
      %v6001 = vpack.c.bf16 %v5489, %v5489
      %v6002 = vpack.c.bf16 %v5490, %v5490
      %v6003 = vpack.c.bf16 %v5491, %v5491
      %v6004 = vpack.c.bf16 %v5492, %v5492
      %v6005 = vpack.c.bf16 %v5493, %v5493
      %v6006 = vpack.c.bf16 %v5494, %v5494
      %v6007 = vpack.c.bf16 %v5495, %v5495
      %v6008 = vpack.c.bf16 %v5496, %v5496
      %v6009 = vpack.c.bf16 %v5497, %v5497
      %v6010 = vpack.c.bf16 %v5498, %v5498
      %v6011 = vpack.c.bf16 %v5499, %v5499
      %v6012 = vpack.c.bf16 %v5500, %v5500
      %v6013 = vpack.c.bf16 %v5501, %v5501
      %v6014 = vpack.c.bf16 %v5502, %v5502
      %v6015 = vpack.c.bf16 %v5503, %v5503
      %v6016 = vpack.c.bf16 %v5504, %v5504
      %v6017 = vpack.c.bf16 %v5505, %v5505
      %v6018 = vpack.c.bf16 %v5506, %v5506
      %v6019 = vpack.c.bf16 %v5507, %v5507
      %v6020 = vpack.c.bf16 %v5508, %v5508
      %v6021 = vpack.c.bf16 %v5509, %v5509
      %v6022 = vpack.c.bf16 %v5510, %v5510
      %v6023 = vpack.c.bf16 %v5511, %v5511
      %v6024 = vpack.c.bf16 %v5512, %v5512
      %v6025 = vpack.c.bf16 %v5513, %v5513
      %v6026 = vpack.c.bf16 %v5514, %v5514
      %v6027 = vpack.c.bf16 %v5515, %v5515
      %v6028 = vpack.c.bf16 %v5516, %v5516
      %v6029 = vpack.c.bf16 %v5517, %v5517
      %v6030 = vpack.c.bf16 %v5518, %v5518
      %v6031 = vpack.c.bf16 %v5519, %v5519
      %v6032 = vpack.c.bf16 %v5520, %v5520
      %v6033 = vpack.c.bf16 %v5521, %v5521
      %v6034 = vpack.c.bf16 %v5522, %v5522
      %v6035 = vpack.c.bf16 %v5523, %v5523
      %v6036 = vpack.c.bf16 %v5524, %v5524
      %v6037 = vpack.c.bf16 %v5525, %v5525
      %v6038 = vpack.c.bf16 %v5526, %v5526
      %v6039 = vpack.c.bf16 %v5527, %v5527
      %v6040 = vpack.c.bf16 %v5528, %v5528
      %v6041 = vpack.c.bf16 %v5529, %v5529
      %v6042 = vpack.c.bf16 %v5530, %v5530
      %v6043 = vpack.c.bf16 %v5531, %v5531
      %v6044 = vpack.c.bf16 %v5532, %v5532
      %v6045 = vpack.c.bf16 %v5533, %v5533
      %v6046 = vpack.c.bf16 %v5534, %v5534
      %v6047 = vpack.c.bf16 %v5535, %v5535
      %v6048 = vpack.c.bf16 %v5536, %v5536
      %v6049 = vpack.c.bf16 %v5537, %v5537
      %v6050 = vpack.c.bf16 %v5538, %v5538
      %v6051 = vpack.c.bf16 %v5539, %v5539
      %v6052 = vpack.c.bf16 %v5540, %v5540
      %v6053 = vpack.c.bf16 %v5541, %v5541
      %v6054 = vpack.c.bf16 %v5542, %v5542
      %v6055 = vpack.c.bf16 %v5543, %v5543
      %v6056 = vpack.c.bf16 %v5544, %v5544
      %v6057 = vpack.c.bf16 %v5545, %v5545
      %v6058 = vpack.c.bf16 %v5546, %v5546
      %v6059 = vpack.c.bf16 %v5547, %v5547
      %v6060 = vpack.c.bf16 %v5548, %v5548
      %v6061 = vpack.c.bf16 %v5549, %v5549
      %v6062 = vpack.c.bf16 %v5550, %v5550
      %v6063 = vpack.c.bf16 %v5551, %v5551
      %v6064 = vpack.c.bf16 %v5552, %v5552
      %v6065 = vpack.c.bf16 %v5553, %v5553
      %v6066 = vpack.c.bf16 %v5554, %v5554
      %v6067 = vpack.c.bf16 %v5555, %v5555
      %v6068 = vpack.c.bf16 %v5556, %v5556
      %v6069 = vpack.c.bf16 %v5557, %v5557
      %v6070 = vpack.c.bf16 %v5558, %v5558
      %v6071 = vpack.c.bf16 %v5559, %v5559
      %v6072 = vpack.c.bf16 %v5560, %v5560
      %v6073 = vpack.c.bf16 %v5561, %v5561
      %v6074 = vpack.c.bf16 %v5562, %v5562
      %v6075 = vpack.c.bf16 %v5563, %v5563
      %v6076 = vpack.c.bf16 %v5564, %v5564
      %v6077 = vpack.c.bf16 %v5565, %v5565
      %v6078 = vpack.c.bf16 %v5566, %v5566
      %v6079 = vpack.c.bf16 %v5567, %v5567
      %v6080 = vpack.c.bf16 %v5568, %v5568
      %v6081 = vpack.c.bf16 %v5569, %v5569
      %v6082 = vpack.c.bf16 %v5570, %v5570
      %v6083 = vpack.c.bf16 %v5571, %v5571
      %v6084 = vpack.c.bf16 %v5572, %v5572
      %v6085 = vpack.c.bf16 %v5573, %v5573
      %v6086 = vpack.c.bf16 %v5574, %v5574
      %v6087 = vpack.c.bf16 %v5575, %v5575
      %v6088 = vpack.c.bf16 %v5576, %v5576
      %v6089 = vpack.c.bf16 %v5577, %v5577
      %v6090 = vpack.c.bf16 %v5578, %v5578
      %v6091 = vpack.c.bf16 %v5579, %v5579
      %v6092 = vpack.c.bf16 %v5580, %v5580
      %v6093 = vpack.c.bf16 %v5581, %v5581
      %v6094 = vpack.c.bf16 %v5582, %v5582
      %v6095 = vpack.c.bf16 %v5583, %v5583
      %v6096 = vpack.c.bf16 %v5584, %v5584
      %v6097 = vpack.c.bf16 %v5585, %v5585
      %v6098 = vpack.c.bf16 %v5586, %v5586
      %v6099 = vpack.c.bf16 %v5587, %v5587
      %v6100 = vpack.c.bf16 %v5588, %v5588
      %v6101 = vpack.c.bf16 %v5589, %v5589
      %v6102 = vpack.c.bf16 %v5590, %v5590
      %v6103 = vpack.c.bf16 %v5591, %v5591
      %v6104 = vpack.c.bf16 %v5592, %v5592
      %v6105 = vpack.c.bf16 %v5593, %v5593
      %v6106 = vpack.c.bf16 %v5594, %v5594
      %v6107 = vpack.c.bf16 %v5595, %v5595
      %v6108 = vpack.c.bf16 %v5596, %v5596
      %v6109 = vpack.c.bf16 %v5597, %v5597
      %v6110 = vpack.c.bf16 %v5598, %v5598
      %v6111 = vpack.c.bf16 %v5599, %v5599
      %v6112 = vpack.c.bf16 %v5600, %v5600
      %v6113 = vpack.c.bf16 %v5601, %v5601
      %v6114 = vpack.c.bf16 %v5602, %v5602
      %v6115 = vpack.c.bf16 %v5603, %v5603
      %v6116 = vpack.c.bf16 %v5604, %v5604
      %v6117 = vpack.c.bf16 %v5605, %v5605
      %v6118 = vpack.c.bf16 %v5606, %v5606
      %v6119 = vpack.c.bf16 %v5607, %v5607
      %v6120 = vpack.c.bf16 %v5608, %v5608
      %v6121 = vpack.c.bf16 %v5609, %v5609
      %v6122 = vpack.c.bf16 %v5610, %v5610
      %v6123 = vpack.c.bf16 %v5611, %v5611
      %v6124 = vpack.c.bf16 %v5612, %v5612
      %v6125 = vpack.c.bf16 %v5613, %v5613
      %v6126 = vpack.c.bf16 %v5614, %v5614
      %v6127 = vpack.c.bf16 %v5615, %v5615
      %v6128 = vpack.c.bf16 %v5616, %v5616
      %v6129 = vpack.c.bf16 %v5617, %v5617
      %v6130 = vpack.c.bf16 %v5618, %v5618
      %v6131 = vpack.c.bf16 %v5619, %v5619
      %v6132 = vpack.c.bf16 %v5620, %v5620
      %v6133 = vpack.c.bf16 %v5621, %v5621
      %v6134 = vpack.c.bf16 %v5622, %v5622
      %v6135 = vpack.c.bf16 %v5623, %v5623
      %v6136 = vpack.c.bf16 %v5624, %v5624
      %v6137 = vpack.c.bf16 %v5625, %v5625
      %v6138 = vpack.c.bf16 %v5626, %v5626
      %v6139 = vpack.c.bf16 %v5627, %v5627
      %v6140 = vpack.c.bf16 %v5628, %v5628
      %v6141 = vpack.c.bf16 %v5629, %v5629
      %v6142 = vpack.c.bf16 %v5630, %v5630
      %v6143 = vpack.c.bf16 %v5631, %v5631
      %v6144 = vpack.c.bf16 %v5632, %v5632
      %v6145 = vpack.c.bf16 %v5633, %v5633
      %v6146 = vpack.c.bf16 %v5634, %v5634
      %v6147 = vpack.c.bf16 %v5635, %v5635
      %v6148 = vpack.c.bf16 %v5636, %v5636
      %v6149 = vpack.c.bf16 %v5637, %v5637
      %v6150 = vpack.c.bf16 %v5638, %v5638
      %v6151 = vpack.c.bf16 %v5639, %v5639
      %v6152 = vpack.c.bf16 %v5640, %v5640
      %v6153 = vpack.c.bf16 %v5641, %v5641
      %v6154 = vpack.c.bf16 %v5642, %v5642
      %v6155 = vpack.c.bf16 %v5643, %v5643
      %v6156 = vpack.c.bf16 %v5644, %v5644
      %v6157 = vpack.c.bf16 %v5645, %v5645
      %v6158 = vpack.c.bf16 %v5646, %v5646
      %v6159 = vpack.c.bf16 %v5647, %v5647
      %v6160 = vpack.c.bf16 %v5648, %v5648
      %v6161 = vpack.c.bf16 %v5649, %v5649
      %v6162 = vpack.c.bf16 %v5650, %v5650
      %v6163 = vpack.c.bf16 %v5651, %v5651
      %v6164 = vpack.c.bf16 %v5652, %v5652
      %v6165 = vpack.c.bf16 %v5653, %v5653
      %v6166 = vpack.c.bf16 %v5654, %v5654
      %v6167 = vpack.c.bf16 %v5655, %v5655
      %v6168 = vpack.c.bf16 %v5656, %v5656
      %v6169 = vpack.c.bf16 %v5657, %v5657
      %v6170 = vpack.c.bf16 %v5658, %v5658
      %v6171 = vpack.c.bf16 %v5659, %v5659
      %v6172 = vpack.c.bf16 %v5660, %v5660
      %v6173 = vpack.c.bf16 %v5661, %v5661
      %v6174 = vpack.c.bf16 %v5662, %v5662
      %v6175 = vpack.c.bf16 %v5663, %v5663
      %v6176 = vpack.c.bf16 %v5664, %v5664
      %v6177 = vpack.c.bf16 %v5665, %v5665
      %v6178 = vpack.c.bf16 %v5666, %v5666
      %v6179 = vpack.c.bf16 %v5667, %v5667
      %v6180 = vpack.c.bf16 %v5668, %v5668
      %v6181 = vpack.c.bf16 %v5669, %v5669
      %v6182 = vpack.c.bf16 %v5670, %v5670
      %v6183 = vpack.c.bf16 %v5671, %v5671
      %v6184 = vpack.c.bf16 %v5672, %v5672
      %v6185 = vpack.c.bf16 %v5673, %v5673
      %v6186 = vpack.c.bf16 %v5674, %v5674
      %v6187 = vpack.c.bf16 %v5675, %v5675
      %v6188 = vpack.c.bf16 %v5676, %v5676
      %vm6189 = vcmask 519168
      %6190 = vst.msk [vmem:[%s264] sm:$0xf] %vm6189, %v5677
      %6191 = vst.msk [vmem:[%s264 + $0x4] sm:$0xf] %vm6189, %v5678
      %6192 = vst.msk [vmem:[%s264 + $0x8] sm:$0xf] %vm6189, %v5679
      %6193 = vst.msk [vmem:[%s264 + $0xc] sm:$0xf] %vm6189, %v5680
      %6194 = vst.msk [vmem:[%s264 + $0x10] sm:$0xf] %vm6189, %v5681
      %6195 = vst.msk [vmem:[%s264 + $0x14] sm:$0xf] %vm6189, %v5682
      %6196 = vst.msk [vmem:[%s264 + $0x18] sm:$0xf] %vm6189, %v5683
      %6197 = vst.msk [vmem:[%s264 + $0x1c] sm:$0xf] %vm6189, %v5684
      %6198 = vst.msk [vmem:[%s264 + $0x20] sm:$0xf] %vm6189, %v5685
      %6199 = vst.msk [vmem:[%s264 + $0x24] sm:$0xf] %vm6189, %v5686
      %6200 = vst.msk [vmem:[%s264 + $0x28] sm:$0xf] %vm6189, %v5687
      %6201 = vst.msk [vmem:[%s264 + $0x2c] sm:$0xf] %vm6189, %v5688
      %6202 = vst.msk [vmem:[%s264 + $0x30] sm:$0xf] %vm6189, %v5689
      %6203 = vst.msk [vmem:[%s264 + $0x34] sm:$0xf] %vm6189, %v5690
      %6204 = vst.msk [vmem:[%s264 + $0x38] sm:$0xf] %vm6189, %v5691
      %6205 = vst.msk [vmem:[%s264 + $0x3c] sm:$0xf] %vm6189, %v5692
      %6206 = vst.msk [vmem:[%s264 + $0x40] sm:$0xf] %vm6189, %v5693
      %6207 = vst.msk [vmem:[%s264 + $0x44] sm:$0xf] %vm6189, %v5694
      %6208 = vst.msk [vmem:[%s264 + $0x48] sm:$0xf] %vm6189, %v5695
      %6209 = vst.msk [vmem:[%s264 + $0x4c] sm:$0xf] %vm6189, %v5696
      %6210 = vst.msk [vmem:[%s264 + $0x50] sm:$0xf] %vm6189, %v5697
      %6211 = vst.msk [vmem:[%s264 + $0x54] sm:$0xf] %vm6189, %v5698
      %6212 = vst.msk [vmem:[%s264 + $0x58] sm:$0xf] %vm6189, %v5699
      %6213 = vst.msk [vmem:[%s264 + $0x5c] sm:$0xf] %vm6189, %v5700
      %6214 = vst.msk [vmem:[%s264 + $0x60] sm:$0xf] %vm6189, %v5701
      %6215 = vst.msk [vmem:[%s264 + $0x64] sm:$0xf] %vm6189, %v5702
      %6216 = vst.msk [vmem:[%s264 + $0x68] sm:$0xf] %vm6189, %v5703
      %6217 = vst.msk [vmem:[%s264 + $0x6c] sm:$0xf] %vm6189, %v5704
      %6218 = vst.msk [vmem:[%s264 + $0x70] sm:$0xf] %vm6189, %v5705
      %6219 = vst.msk [vmem:[%s264 + $0x74] sm:$0xf] %vm6189, %v5706
      %6220 = vst.msk [vmem:[%s264 + $0x78] sm:$0xf] %vm6189, %v5707
      %6221 = vst.msk [vmem:[%s264 + $0x7c] sm:$0xf] %vm6189, %v5708
      %6222 = vst.msk [vmem:[%s264 + $0x80] sm:$0xf] %vm6189, %v5709
      %6223 = vst.msk [vmem:[%s264 + $0x84] sm:$0xf] %vm6189, %v5710
      %6224 = vst.msk [vmem:[%s264 + $0x88] sm:$0xf] %vm6189, %v5711
      %6225 = vst.msk [vmem:[%s264 + $0x8c] sm:$0xf] %vm6189, %v5712
      %6226 = vst.msk [vmem:[%s264 + $0x90] sm:$0xf] %vm6189, %v5713
      %6227 = vst.msk [vmem:[%s264 + $0x94] sm:$0xf] %vm6189, %v5714
      %6228 = vst.msk [vmem:[%s264 + $0x98] sm:$0xf] %vm6189, %v5715
      %6229 = vst.msk [vmem:[%s264 + $0x9c] sm:$0xf] %vm6189, %v5716
      %6230 = vst.msk [vmem:[%s264 + $0xa0] sm:$0xf] %vm6189, %v5717
      %6231 = vst.msk [vmem:[%s264 + $0xa4] sm:$0xf] %vm6189, %v5718
      %6232 = vst.msk [vmem:[%s264 + $0xa8] sm:$0xf] %vm6189, %v5719
      %6233 = vst.msk [vmem:[%s264 + $0xac] sm:$0xf] %vm6189, %v5720
      %6234 = vst.msk [vmem:[%s264 + $0xb0] sm:$0xf] %vm6189, %v5721
      %6235 = vst.msk [vmem:[%s264 + $0xb4] sm:$0xf] %vm6189, %v5722
      %6236 = vst.msk [vmem:[%s264 + $0xb8] sm:$0xf] %vm6189, %v5723
      %6237 = vst.msk [vmem:[%s264 + $0xbc] sm:$0xf] %vm6189, %v5724
      %6238 = vst.msk [vmem:[%s264 + $0xc0] sm:$0xf] %vm6189, %v5725
      %6239 = vst.msk [vmem:[%s264 + $0xc4] sm:$0xf] %vm6189, %v5726
      %6240 = vst.msk [vmem:[%s264 + $0xc8] sm:$0xf] %vm6189, %v5727
      %6241 = vst.msk [vmem:[%s264 + $0xcc] sm:$0xf] %vm6189, %v5728
      %6242 = vst.msk [vmem:[%s264 + $0xd0] sm:$0xf] %vm6189, %v5729
      %6243 = vst.msk [vmem:[%s264 + $0xd4] sm:$0xf] %vm6189, %v5730
      %6244 = vst.msk [vmem:[%s264 + $0xd8] sm:$0xf] %vm6189, %v5731
      %6245 = vst.msk [vmem:[%s264 + $0xdc] sm:$0xf] %vm6189, %v5732
      %6246 = vst.msk [vmem:[%s264 + $0xe0] sm:$0xf] %vm6189, %v5733
      %6247 = vst.msk [vmem:[%s264 + $0xe4] sm:$0xf] %vm6189, %v5734
      %6248 = vst.msk [vmem:[%s264 + $0xe8] sm:$0xf] %vm6189, %v5735
      %6249 = vst.msk [vmem:[%s264 + $0xec] sm:$0xf] %vm6189, %v5736
      %6250 = vst.msk [vmem:[%s264 + $0xf0] sm:$0xf] %vm6189, %v5737
      %6251 = vst.msk [vmem:[%s264 + $0xf4] sm:$0xf] %vm6189, %v5738
      %6252 = vst.msk [vmem:[%s264 + $0xf8] sm:$0xf] %vm6189, %v5739
      %6253 = vst.msk [vmem:[%s264 + $0xfc] sm:$0xf] %vm6189, %v5740
      %6254 = vst.msk [vmem:[%s264 + $0x100] sm:$0xf] %vm6189, %v5741
      %6255 = vst.msk [vmem:[%s264 + $0x104] sm:$0xf] %vm6189, %v5742
      %6256 = vst.msk [vmem:[%s264 + $0x108] sm:$0xf] %vm6189, %v5743
      %6257 = vst.msk [vmem:[%s264 + $0x10c] sm:$0xf] %vm6189, %v5744
      %6258 = vst.msk [vmem:[%s264 + $0x110] sm:$0xf] %vm6189, %v5745
      %6259 = vst.msk [vmem:[%s264 + $0x114] sm:$0xf] %vm6189, %v5746
      %6260 = vst.msk [vmem:[%s264 + $0x118] sm:$0xf] %vm6189, %v5747
      %6261 = vst.msk [vmem:[%s264 + $0x11c] sm:$0xf] %vm6189, %v5748
      %6262 = vst.msk [vmem:[%s264 + $0x120] sm:$0xf] %vm6189, %v5749
      %6263 = vst.msk [vmem:[%s264 + $0x124] sm:$0xf] %vm6189, %v5750
      %6264 = vst.msk [vmem:[%s264 + $0x128] sm:$0xf] %vm6189, %v5751
      %6265 = vst.msk [vmem:[%s264 + $0x12c] sm:$0xf] %vm6189, %v5752
      %6266 = vst.msk [vmem:[%s264 + $0x130] sm:$0xf] %vm6189, %v5753
      %6267 = vst.msk [vmem:[%s264 + $0x134] sm:$0xf] %vm6189, %v5754
      %6268 = vst.msk [vmem:[%s264 + $0x138] sm:$0xf] %vm6189, %v5755
      %6269 = vst.msk [vmem:[%s264 + $0x13c] sm:$0xf] %vm6189, %v5756
      %6270 = vst.msk [vmem:[%s264 + $0x140] sm:$0xf] %vm6189, %v5757
      %6271 = vst.msk [vmem:[%s264 + $0x144] sm:$0xf] %vm6189, %v5758
      %6272 = vst.msk [vmem:[%s264 + $0x148] sm:$0xf] %vm6189, %v5759
      %6273 = vst.msk [vmem:[%s264 + $0x14c] sm:$0xf] %vm6189, %v5760
      %6274 = vst.msk [vmem:[%s264 + $0x150] sm:$0xf] %vm6189, %v5761
      %6275 = vst.msk [vmem:[%s264 + $0x154] sm:$0xf] %vm6189, %v5762
      %6276 = vst.msk [vmem:[%s264 + $0x158] sm:$0xf] %vm6189, %v5763
      %6277 = vst.msk [vmem:[%s264 + $0x15c] sm:$0xf] %vm6189, %v5764
      %6278 = vst.msk [vmem:[%s264 + $0x160] sm:$0xf] %vm6189, %v5765
      %6279 = vst.msk [vmem:[%s264 + $0x164] sm:$0xf] %vm6189, %v5766
      %6280 = vst.msk [vmem:[%s264 + $0x168] sm:$0xf] %vm6189, %v5767
      %6281 = vst.msk [vmem:[%s264 + $0x16c] sm:$0xf] %vm6189, %v5768
      %6282 = vst.msk [vmem:[%s264 + $0x170] sm:$0xf] %vm6189, %v5769
      %6283 = vst.msk [vmem:[%s264 + $0x174] sm:$0xf] %vm6189, %v5770
      %6284 = vst.msk [vmem:[%s264 + $0x178] sm:$0xf] %vm6189, %v5771
      %6285 = vst.msk [vmem:[%s264 + $0x17c] sm:$0xf] %vm6189, %v5772
      %6286 = vst.msk [vmem:[%s264 + $0x180] sm:$0xf] %vm6189, %v5773
      %6287 = vst.msk [vmem:[%s264 + $0x184] sm:$0xf] %vm6189, %v5774
      %6288 = vst.msk [vmem:[%s264 + $0x188] sm:$0xf] %vm6189, %v5775
      %6289 = vst.msk [vmem:[%s264 + $0x18c] sm:$0xf] %vm6189, %v5776
      %6290 = vst.msk [vmem:[%s264 + $0x190] sm:$0xf] %vm6189, %v5777
      %6291 = vst.msk [vmem:[%s264 + $0x194] sm:$0xf] %vm6189, %v5778
      %6292 = vst.msk [vmem:[%s264 + $0x198] sm:$0xf] %vm6189, %v5779
      %6293 = vst.msk [vmem:[%s264 + $0x19c] sm:$0xf] %vm6189, %v5780
      %6294 = vst.msk [vmem:[%s264 + $0x1a0] sm:$0xf] %vm6189, %v5781
      %6295 = vst.msk [vmem:[%s264 + $0x1a4] sm:$0xf] %vm6189, %v5782
      %6296 = vst.msk [vmem:[%s264 + $0x1a8] sm:$0xf] %vm6189, %v5783
      %6297 = vst.msk [vmem:[%s264 + $0x1ac] sm:$0xf] %vm6189, %v5784
      %6298 = vst.msk [vmem:[%s264 + $0x1b0] sm:$0xf] %vm6189, %v5785
      %6299 = vst.msk [vmem:[%s264 + $0x1b4] sm:$0xf] %vm6189, %v5786
      %6300 = vst.msk [vmem:[%s264 + $0x1b8] sm:$0xf] %vm6189, %v5787
      %6301 = vst.msk [vmem:[%s264 + $0x1bc] sm:$0xf] %vm6189, %v5788
      %6302 = vst.msk [vmem:[%s264 + $0x1c0] sm:$0xf] %vm6189, %v5789
      %6303 = vst.msk [vmem:[%s264 + $0x1c4] sm:$0xf] %vm6189, %v5790
      %6304 = vst.msk [vmem:[%s264 + $0x1c8] sm:$0xf] %vm6189, %v5791
      %6305 = vst.msk [vmem:[%s264 + $0x1cc] sm:$0xf] %vm6189, %v5792
      %6306 = vst.msk [vmem:[%s264 + $0x1d0] sm:$0xf] %vm6189, %v5793
      %6307 = vst.msk [vmem:[%s264 + $0x1d4] sm:$0xf] %vm6189, %v5794
      %6308 = vst.msk [vmem:[%s264 + $0x1d8] sm:$0xf] %vm6189, %v5795
      %6309 = vst.msk [vmem:[%s264 + $0x1dc] sm:$0xf] %vm6189, %v5796
      %6310 = vst.msk [vmem:[%s264 + $0x1e0] sm:$0xf] %vm6189, %v5797
      %6311 = vst.msk [vmem:[%s264 + $0x1e4] sm:$0xf] %vm6189, %v5798
      %6312 = vst.msk [vmem:[%s264 + $0x1e8] sm:$0xf] %vm6189, %v5799
      %6313 = vst.msk [vmem:[%s264 + $0x1ec] sm:$0xf] %vm6189, %v5800
      %6314 = vst.msk [vmem:[%s264 + $0x1f0] sm:$0xf] %vm6189, %v5801
      %6315 = vst.msk [vmem:[%s264 + $0x1f4] sm:$0xf] %vm6189, %v5802
      %6316 = vst.msk [vmem:[%s264 + $0x1f8] sm:$0xf] %vm6189, %v5803
      %6317 = vst.msk [vmem:[%s264 + $0x1fc] sm:$0xf] %vm6189, %v5804
      %6318 = vst.msk [vmem:[%s264 + $0x200] sm:$0xf] %vm6189, %v5805
      %6319 = vst.msk [vmem:[%s264 + $0x204] sm:$0xf] %vm6189, %v5806
      %6320 = vst.msk [vmem:[%s264 + $0x208] sm:$0xf] %vm6189, %v5807
      %6321 = vst.msk [vmem:[%s264 + $0x20c] sm:$0xf] %vm6189, %v5808
      %6322 = vst.msk [vmem:[%s264 + $0x210] sm:$0xf] %vm6189, %v5809
      %6323 = vst.msk [vmem:[%s264 + $0x214] sm:$0xf] %vm6189, %v5810
      %6324 = vst.msk [vmem:[%s264 + $0x218] sm:$0xf] %vm6189, %v5811
      %6325 = vst.msk [vmem:[%s264 + $0x21c] sm:$0xf] %vm6189, %v5812
      %6326 = vst.msk [vmem:[%s264 + $0x220] sm:$0xf] %vm6189, %v5813
      %6327 = vst.msk [vmem:[%s264 + $0x224] sm:$0xf] %vm6189, %v5814
      %6328 = vst.msk [vmem:[%s264 + $0x228] sm:$0xf] %vm6189, %v5815
      %6329 = vst.msk [vmem:[%s264 + $0x22c] sm:$0xf] %vm6189, %v5816
      %6330 = vst.msk [vmem:[%s264 + $0x230] sm:$0xf] %vm6189, %v5817
      %6331 = vst.msk [vmem:[%s264 + $0x234] sm:$0xf] %vm6189, %v5818
      %6332 = vst.msk [vmem:[%s264 + $0x238] sm:$0xf] %vm6189, %v5819
      %6333 = vst.msk [vmem:[%s264 + $0x23c] sm:$0xf] %vm6189, %v5820
      %6334 = vst.msk [vmem:[%s264 + $0x240] sm:$0xf] %vm6189, %v5821
      %6335 = vst.msk [vmem:[%s264 + $0x244] sm:$0xf] %vm6189, %v5822
      %6336 = vst.msk [vmem:[%s264 + $0x248] sm:$0xf] %vm6189, %v5823
      %6337 = vst.msk [vmem:[%s264 + $0x24c] sm:$0xf] %vm6189, %v5824
      %6338 = vst.msk [vmem:[%s264 + $0x250] sm:$0xf] %vm6189, %v5825
      %6339 = vst.msk [vmem:[%s264 + $0x254] sm:$0xf] %vm6189, %v5826
      %6340 = vst.msk [vmem:[%s264 + $0x258] sm:$0xf] %vm6189, %v5827
      %6341 = vst.msk [vmem:[%s264 + $0x25c] sm:$0xf] %vm6189, %v5828
      %6342 = vst.msk [vmem:[%s264 + $0x260] sm:$0xf] %vm6189, %v5829
      %6343 = vst.msk [vmem:[%s264 + $0x264] sm:$0xf] %vm6189, %v5830
      %6344 = vst.msk [vmem:[%s264 + $0x268] sm:$0xf] %vm6189, %v5831
      %6345 = vst.msk [vmem:[%s264 + $0x26c] sm:$0xf] %vm6189, %v5832
      %6346 = vst.msk [vmem:[%s264 + $0x270] sm:$0xf] %vm6189, %v5833
      %6347 = vst.msk [vmem:[%s264 + $0x274] sm:$0xf] %vm6189, %v5834
      %6348 = vst.msk [vmem:[%s264 + $0x278] sm:$0xf] %vm6189, %v5835
      %6349 = vst.msk [vmem:[%s264 + $0x27c] sm:$0xf] %vm6189, %v5836
      %6350 = vst.msk [vmem:[%s264 + $0x280] sm:$0xf] %vm6189, %v5837
      %6351 = vst.msk [vmem:[%s264 + $0x284] sm:$0xf] %vm6189, %v5838
      %6352 = vst.msk [vmem:[%s264 + $0x288] sm:$0xf] %vm6189, %v5839
      %6353 = vst.msk [vmem:[%s264 + $0x28c] sm:$0xf] %vm6189, %v5840
      %6354 = vst.msk [vmem:[%s264 + $0x290] sm:$0xf] %vm6189, %v5841
      %6355 = vst.msk [vmem:[%s264 + $0x294] sm:$0xf] %vm6189, %v5842
      %6356 = vst.msk [vmem:[%s264 + $0x298] sm:$0xf] %vm6189, %v5843
      %6357 = vst.msk [vmem:[%s264 + $0x29c] sm:$0xf] %vm6189, %v5844
      %6358 = vst.msk [vmem:[%s264 + $0x2a0] sm:$0xf] %vm6189, %v5845
      %6359 = vst.msk [vmem:[%s264 + $0x2a4] sm:$0xf] %vm6189, %v5846
      %6360 = vst.msk [vmem:[%s264 + $0x2a8] sm:$0xf] %vm6189, %v5847
      %6361 = vst.msk [vmem:[%s264 + $0x2ac] sm:$0xf] %vm6189, %v5848
      %6362 = vst.msk [vmem:[%s264 + $0x2b0] sm:$0xf] %vm6189, %v5849
      %6363 = vst.msk [vmem:[%s264 + $0x2b4] sm:$0xf] %vm6189, %v5850
      %6364 = vst.msk [vmem:[%s264 + $0x2b8] sm:$0xf] %vm6189, %v5851
      %6365 = vst.msk [vmem:[%s264 + $0x2bc] sm:$0xf] %vm6189, %v5852
      %6366 = vst.msk [vmem:[%s264 + $0x2c0] sm:$0xf] %vm6189, %v5853
      %6367 = vst.msk [vmem:[%s264 + $0x2c4] sm:$0xf] %vm6189, %v5854
      %6368 = vst.msk [vmem:[%s264 + $0x2c8] sm:$0xf] %vm6189, %v5855
      %6369 = vst.msk [vmem:[%s264 + $0x2cc] sm:$0xf] %vm6189, %v5856
      %6370 = vst.msk [vmem:[%s264 + $0x2d0] sm:$0xf] %vm6189, %v5857
      %6371 = vst.msk [vmem:[%s264 + $0x2d4] sm:$0xf] %vm6189, %v5858
      %6372 = vst.msk [vmem:[%s264 + $0x2d8] sm:$0xf] %vm6189, %v5859
      %6373 = vst.msk [vmem:[%s264 + $0x2dc] sm:$0xf] %vm6189, %v5860
      %6374 = vst.msk [vmem:[%s264 + $0x2e0] sm:$0xf] %vm6189, %v5861
      %6375 = vst.msk [vmem:[%s264 + $0x2e4] sm:$0xf] %vm6189, %v5862
      %6376 = vst.msk [vmem:[%s264 + $0x2e8] sm:$0xf] %vm6189, %v5863
      %6377 = vst.msk [vmem:[%s264 + $0x2ec] sm:$0xf] %vm6189, %v5864
      %6378 = vst.msk [vmem:[%s264 + $0x2f0] sm:$0xf] %vm6189, %v5865
      %6379 = vst.msk [vmem:[%s264 + $0x2f4] sm:$0xf] %vm6189, %v5866
      %6380 = vst.msk [vmem:[%s264 + $0x2f8] sm:$0xf] %vm6189, %v5867
      %6381 = vst.msk [vmem:[%s264 + $0x2fc] sm:$0xf] %vm6189, %v5868
      %6382 = vst.msk [vmem:[%s264 + $0x300] sm:$0xf] %vm6189, %v5869
      %6383 = vst.msk [vmem:[%s264 + $0x304] sm:$0xf] %vm6189, %v5870
      %6384 = vst.msk [vmem:[%s264 + $0x308] sm:$0xf] %vm6189, %v5871
      %6385 = vst.msk [vmem:[%s264 + $0x30c] sm:$0xf] %vm6189, %v5872
      %6386 = vst.msk [vmem:[%s264 + $0x310] sm:$0xf] %vm6189, %v5873
      %6387 = vst.msk [vmem:[%s264 + $0x314] sm:$0xf] %vm6189, %v5874
      %6388 = vst.msk [vmem:[%s264 + $0x318] sm:$0xf] %vm6189, %v5875
      %6389 = vst.msk [vmem:[%s264 + $0x31c] sm:$0xf] %vm6189, %v5876
      %6390 = vst.msk [vmem:[%s264 + $0x320] sm:$0xf] %vm6189, %v5877
      %6391 = vst.msk [vmem:[%s264 + $0x324] sm:$0xf] %vm6189, %v5878
      %6392 = vst.msk [vmem:[%s264 + $0x328] sm:$0xf] %vm6189, %v5879
      %6393 = vst.msk [vmem:[%s264 + $0x32c] sm:$0xf] %vm6189, %v5880
      %6394 = vst.msk [vmem:[%s264 + $0x330] sm:$0xf] %vm6189, %v5881
      %6395 = vst.msk [vmem:[%s264 + $0x334] sm:$0xf] %vm6189, %v5882
      %6396 = vst.msk [vmem:[%s264 + $0x338] sm:$0xf] %vm6189, %v5883
      %6397 = vst.msk [vmem:[%s264 + $0x33c] sm:$0xf] %vm6189, %v5884
      %6398 = vst.msk [vmem:[%s264 + $0x340] sm:$0xf] %vm6189, %v5885
      %6399 = vst.msk [vmem:[%s264 + $0x344] sm:$0xf] %vm6189, %v5886
      %6400 = vst.msk [vmem:[%s264 + $0x348] sm:$0xf] %vm6189, %v5887
      %6401 = vst.msk [vmem:[%s264 + $0x34c] sm:$0xf] %vm6189, %v5888
      %6402 = vst.msk [vmem:[%s264 + $0x350] sm:$0xf] %vm6189, %v5889
      %6403 = vst.msk [vmem:[%s264 + $0x354] sm:$0xf] %vm6189, %v5890
      %6404 = vst.msk [vmem:[%s264 + $0x358] sm:$0xf] %vm6189, %v5891
      %6405 = vst.msk [vmem:[%s264 + $0x35c] sm:$0xf] %vm6189, %v5892
      %6406 = vst.msk [vmem:[%s264 + $0x360] sm:$0xf] %vm6189, %v5893
      %6407 = vst.msk [vmem:[%s264 + $0x364] sm:$0xf] %vm6189, %v5894
      %6408 = vst.msk [vmem:[%s264 + $0x368] sm:$0xf] %vm6189, %v5895
      %6409 = vst.msk [vmem:[%s264 + $0x36c] sm:$0xf] %vm6189, %v5896
      %6410 = vst.msk [vmem:[%s264 + $0x370] sm:$0xf] %vm6189, %v5897
      %6411 = vst.msk [vmem:[%s264 + $0x374] sm:$0xf] %vm6189, %v5898
      %6412 = vst.msk [vmem:[%s264 + $0x378] sm:$0xf] %vm6189, %v5899
      %6413 = vst.msk [vmem:[%s264 + $0x37c] sm:$0xf] %vm6189, %v5900
      %6414 = vst.msk [vmem:[%s264 + $0x380] sm:$0xf] %vm6189, %v5901
      %6415 = vst.msk [vmem:[%s264 + $0x384] sm:$0xf] %vm6189, %v5902
      %6416 = vst.msk [vmem:[%s264 + $0x388] sm:$0xf] %vm6189, %v5903
      %6417 = vst.msk [vmem:[%s264 + $0x38c] sm:$0xf] %vm6189, %v5904
      %6418 = vst.msk [vmem:[%s264 + $0x390] sm:$0xf] %vm6189, %v5905
      %6419 = vst.msk [vmem:[%s264 + $0x394] sm:$0xf] %vm6189, %v5906
      %6420 = vst.msk [vmem:[%s264 + $0x398] sm:$0xf] %vm6189, %v5907
      %6421 = vst.msk [vmem:[%s264 + $0x39c] sm:$0xf] %vm6189, %v5908
      %6422 = vst.msk [vmem:[%s264 + $0x3a0] sm:$0xf] %vm6189, %v5909
      %6423 = vst.msk [vmem:[%s264 + $0x3a4] sm:$0xf] %vm6189, %v5910
      %6424 = vst.msk [vmem:[%s264 + $0x3a8] sm:$0xf] %vm6189, %v5911
      %6425 = vst.msk [vmem:[%s264 + $0x3ac] sm:$0xf] %vm6189, %v5912
      %6426 = vst.msk [vmem:[%s264 + $0x3b0] sm:$0xf] %vm6189, %v5913
      %6427 = vst.msk [vmem:[%s264 + $0x3b4] sm:$0xf] %vm6189, %v5914
      %6428 = vst.msk [vmem:[%s264 + $0x3b8] sm:$0xf] %vm6189, %v5915
      %6429 = vst.msk [vmem:[%s264 + $0x3bc] sm:$0xf] %vm6189, %v5916
      %6430 = vst.msk [vmem:[%s264 + $0x3c0] sm:$0xf] %vm6189, %v5917
      %6431 = vst.msk [vmem:[%s264 + $0x3c4] sm:$0xf] %vm6189, %v5918
      %6432 = vst.msk [vmem:[%s264 + $0x3c8] sm:$0xf] %vm6189, %v5919
      %6433 = vst.msk [vmem:[%s264 + $0x3cc] sm:$0xf] %vm6189, %v5920
      %6434 = vst.msk [vmem:[%s264 + $0x3d0] sm:$0xf] %vm6189, %v5921
      %6435 = vst.msk [vmem:[%s264 + $0x3d4] sm:$0xf] %vm6189, %v5922
      %6436 = vst.msk [vmem:[%s264 + $0x3d8] sm:$0xf] %vm6189, %v5923
      %6437 = vst.msk [vmem:[%s264 + $0x3dc] sm:$0xf] %vm6189, %v5924
      %6438 = vst.msk [vmem:[%s264 + $0x3e0] sm:$0xf] %vm6189, %v5925
      %6439 = vst.msk [vmem:[%s264 + $0x3e4] sm:$0xf] %vm6189, %v5926
      %6440 = vst.msk [vmem:[%s264 + $0x3e8] sm:$0xf] %vm6189, %v5927
      %6441 = vst.msk [vmem:[%s264 + $0x3ec] sm:$0xf] %vm6189, %v5928
      %6442 = vst.msk [vmem:[%s264 + $0x3f0] sm:$0xf] %vm6189, %v5929
      %6443 = vst.msk [vmem:[%s264 + $0x3f4] sm:$0xf] %vm6189, %v5930
      %6444 = vst.msk [vmem:[%s264 + $0x3f8] sm:$0xf] %vm6189, %v5931
      %6445 = vst.msk [vmem:[%s264 + $0x3fc] sm:$0xf] %vm6189, %v5932
      %6446 = vst.msk [vmem:[%s264 + $0x400] sm:$0xf] %vm6189, %v5933
      %6447 = vst.msk [vmem:[%s264 + $0x404] sm:$0xf] %vm6189, %v5934
      %6448 = vst.msk [vmem:[%s264 + $0x408] sm:$0xf] %vm6189, %v5935
      %6449 = vst.msk [vmem:[%s264 + $0x40c] sm:$0xf] %vm6189, %v5936
      %6450 = vst.msk [vmem:[%s264 + $0x410] sm:$0xf] %vm6189, %v5937
      %6451 = vst.msk [vmem:[%s264 + $0x414] sm:$0xf] %vm6189, %v5938
      %6452 = vst.msk [vmem:[%s264 + $0x418] sm:$0xf] %vm6189, %v5939
      %6453 = vst.msk [vmem:[%s264 + $0x41c] sm:$0xf] %vm6189, %v5940
      %6454 = vst.msk [vmem:[%s264 + $0x420] sm:$0xf] %vm6189, %v5941
      %6455 = vst.msk [vmem:[%s264 + $0x424] sm:$0xf] %vm6189, %v5942
      %6456 = vst.msk [vmem:[%s264 + $0x428] sm:$0xf] %vm6189, %v5943
      %6457 = vst.msk [vmem:[%s264 + $0x42c] sm:$0xf] %vm6189, %v5944
      %6458 = vst.msk [vmem:[%s264 + $0x430] sm:$0xf] %vm6189, %v5945
      %6459 = vst.msk [vmem:[%s264 + $0x434] sm:$0xf] %vm6189, %v5946
      %6460 = vst.msk [vmem:[%s264 + $0x438] sm:$0xf] %vm6189, %v5947
      %6461 = vst.msk [vmem:[%s264 + $0x43c] sm:$0xf] %vm6189, %v5948
      %6462 = vst.msk [vmem:[%s264 + $0x440] sm:$0xf] %vm6189, %v5949
      %6463 = vst.msk [vmem:[%s264 + $0x444] sm:$0xf] %vm6189, %v5950
      %6464 = vst.msk [vmem:[%s264 + $0x448] sm:$0xf] %vm6189, %v5951
      %6465 = vst.msk [vmem:[%s264 + $0x44c] sm:$0xf] %vm6189, %v5952
      %6466 = vst.msk [vmem:[%s264 + $0x450] sm:$0xf] %vm6189, %v5953
      %6467 = vst.msk [vmem:[%s264 + $0x454] sm:$0xf] %vm6189, %v5954
      %6468 = vst.msk [vmem:[%s264 + $0x458] sm:$0xf] %vm6189, %v5955
      %6469 = vst.msk [vmem:[%s264 + $0x45c] sm:$0xf] %vm6189, %v5956
      %6470 = vst.msk [vmem:[%s264 + $0x460] sm:$0xf] %vm6189, %v5957
      %6471 = vst.msk [vmem:[%s264 + $0x464] sm:$0xf] %vm6189, %v5958
      %6472 = vst.msk [vmem:[%s264 + $0x468] sm:$0xf] %vm6189, %v5959
      %6473 = vst.msk [vmem:[%s264 + $0x46c] sm:$0xf] %vm6189, %v5960
      %6474 = vst.msk [vmem:[%s264 + $0x470] sm:$0xf] %vm6189, %v5961
      %6475 = vst.msk [vmem:[%s264 + $0x474] sm:$0xf] %vm6189, %v5962
      %6476 = vst.msk [vmem:[%s264 + $0x478] sm:$0xf] %vm6189, %v5963
      %6477 = vst.msk [vmem:[%s264 + $0x47c] sm:$0xf] %vm6189, %v5964
      %6478 = vst.msk [vmem:[%s264 + $0x480] sm:$0xf] %vm6189, %v5965
      %6479 = vst.msk [vmem:[%s264 + $0x484] sm:$0xf] %vm6189, %v5966
      %6480 = vst.msk [vmem:[%s264 + $0x488] sm:$0xf] %vm6189, %v5967
      %6481 = vst.msk [vmem:[%s264 + $0x48c] sm:$0xf] %vm6189, %v5968
      %6482 = vst.msk [vmem:[%s264 + $0x490] sm:$0xf] %vm6189, %v5969
      %6483 = vst.msk [vmem:[%s264 + $0x494] sm:$0xf] %vm6189, %v5970
      %6484 = vst.msk [vmem:[%s264 + $0x498] sm:$0xf] %vm6189, %v5971
      %6485 = vst.msk [vmem:[%s264 + $0x49c] sm:$0xf] %vm6189, %v5972
      %6486 = vst.msk [vmem:[%s264 + $0x4a0] sm:$0xf] %vm6189, %v5973
      %6487 = vst.msk [vmem:[%s264 + $0x4a4] sm:$0xf] %vm6189, %v5974
      %6488 = vst.msk [vmem:[%s264 + $0x4a8] sm:$0xf] %vm6189, %v5975
      %6489 = vst.msk [vmem:[%s264 + $0x4ac] sm:$0xf] %vm6189, %v5976
      %6490 = vst.msk [vmem:[%s264 + $0x4b0] sm:$0xf] %vm6189, %v5977
      %6491 = vst.msk [vmem:[%s264 + $0x4b4] sm:$0xf] %vm6189, %v5978
      %6492 = vst.msk [vmem:[%s264 + $0x4b8] sm:$0xf] %vm6189, %v5979
      %6493 = vst.msk [vmem:[%s264 + $0x4bc] sm:$0xf] %vm6189, %v5980
      %6494 = vst.msk [vmem:[%s264 + $0x4c0] sm:$0xf] %vm6189, %v5981
      %6495 = vst.msk [vmem:[%s264 + $0x4c4] sm:$0xf] %vm6189, %v5982
      %6496 = vst.msk [vmem:[%s264 + $0x4c8] sm:$0xf] %vm6189, %v5983
      %6497 = vst.msk [vmem:[%s264 + $0x4cc] sm:$0xf] %vm6189, %v5984
      %6498 = vst.msk [vmem:[%s264 + $0x4d0] sm:$0xf] %vm6189, %v5985
      %6499 = vst.msk [vmem:[%s264 + $0x4d4] sm:$0xf] %vm6189, %v5986
      %6500 = vst.msk [vmem:[%s264 + $0x4d8] sm:$0xf] %vm6189, %v5987
      %6501 = vst.msk [vmem:[%s264 + $0x4dc] sm:$0xf] %vm6189, %v5988
      %6502 = vst.msk [vmem:[%s264 + $0x4e0] sm:$0xf] %vm6189, %v5989
      %6503 = vst.msk [vmem:[%s264 + $0x4e4] sm:$0xf] %vm6189, %v5990
      %6504 = vst.msk [vmem:[%s264 + $0x4e8] sm:$0xf] %vm6189, %v5991
      %6505 = vst.msk [vmem:[%s264 + $0x4ec] sm:$0xf] %vm6189, %v5992
      %6506 = vst.msk [vmem:[%s264 + $0x4f0] sm:$0xf] %vm6189, %v5993
      %6507 = vst.msk [vmem:[%s264 + $0x4f4] sm:$0xf] %vm6189, %v5994
      %6508 = vst.msk [vmem:[%s264 + $0x4f8] sm:$0xf] %vm6189, %v5995
      %6509 = vst.msk [vmem:[%s264 + $0x4fc] sm:$0xf] %vm6189, %v5996
      %6510 = vst.msk [vmem:[%s264 + $0x500] sm:$0xf] %vm6189, %v5997
      %6511 = vst.msk [vmem:[%s264 + $0x504] sm:$0xf] %vm6189, %v5998
      %6512 = vst.msk [vmem:[%s264 + $0x508] sm:$0xf] %vm6189, %v5999
      %6513 = vst.msk [vmem:[%s264 + $0x50c] sm:$0xf] %vm6189, %v6000
      %6514 = vst.msk [vmem:[%s264 + $0x510] sm:$0xf] %vm6189, %v6001
      %6515 = vst.msk [vmem:[%s264 + $0x514] sm:$0xf] %vm6189, %v6002
      %6516 = vst.msk [vmem:[%s264 + $0x518] sm:$0xf] %vm6189, %v6003
      %6517 = vst.msk [vmem:[%s264 + $0x51c] sm:$0xf] %vm6189, %v6004
      %6518 = vst.msk [vmem:[%s264 + $0x520] sm:$0xf] %vm6189, %v6005
      %6519 = vst.msk [vmem:[%s264 + $0x524] sm:$0xf] %vm6189, %v6006
      %6520 = vst.msk [vmem:[%s264 + $0x528] sm:$0xf] %vm6189, %v6007
      %6521 = vst.msk [vmem:[%s264 + $0x52c] sm:$0xf] %vm6189, %v6008
      %6522 = vst.msk [vmem:[%s264 + $0x530] sm:$0xf] %vm6189, %v6009
      %6523 = vst.msk [vmem:[%s264 + $0x534] sm:$0xf] %vm6189, %v6010
      %6524 = vst.msk [vmem:[%s264 + $0x538] sm:$0xf] %vm6189, %v6011
      %6525 = vst.msk [vmem:[%s264 + $0x53c] sm:$0xf] %vm6189, %v6012
      %6526 = vst.msk [vmem:[%s264 + $0x540] sm:$0xf] %vm6189, %v6013
      %6527 = vst.msk [vmem:[%s264 + $0x544] sm:$0xf] %vm6189, %v6014
      %6528 = vst.msk [vmem:[%s264 + $0x548] sm:$0xf] %vm6189, %v6015
      %6529 = vst.msk [vmem:[%s264 + $0x54c] sm:$0xf] %vm6189, %v6016
      %6530 = vst.msk [vmem:[%s264 + $0x550] sm:$0xf] %vm6189, %v6017
      %6531 = vst.msk [vmem:[%s264 + $0x554] sm:$0xf] %vm6189, %v6018
      %6532 = vst.msk [vmem:[%s264 + $0x558] sm:$0xf] %vm6189, %v6019
      %6533 = vst.msk [vmem:[%s264 + $0x55c] sm:$0xf] %vm6189, %v6020
      %6534 = vst.msk [vmem:[%s264 + $0x560] sm:$0xf] %vm6189, %v6021
      %6535 = vst.msk [vmem:[%s264 + $0x564] sm:$0xf] %vm6189, %v6022
      %6536 = vst.msk [vmem:[%s264 + $0x568] sm:$0xf] %vm6189, %v6023
      %6537 = vst.msk [vmem:[%s264 + $0x56c] sm:$0xf] %vm6189, %v6024
      %6538 = vst.msk [vmem:[%s264 + $0x570] sm:$0xf] %vm6189, %v6025
      %6539 = vst.msk [vmem:[%s264 + $0x574] sm:$0xf] %vm6189, %v6026
      %6540 = vst.msk [vmem:[%s264 + $0x578] sm:$0xf] %vm6189, %v6027
      %6541 = vst.msk [vmem:[%s264 + $0x57c] sm:$0xf] %vm6189, %v6028
      %6542 = vst.msk [vmem:[%s264 + $0x580] sm:$0xf] %vm6189, %v6029
      %6543 = vst.msk [vmem:[%s264 + $0x584] sm:$0xf] %vm6189, %v6030
      %6544 = vst.msk [vmem:[%s264 + $0x588] sm:$0xf] %vm6189, %v6031
      %6545 = vst.msk [vmem:[%s264 + $0x58c] sm:$0xf] %vm6189, %v6032
      %6546 = vst.msk [vmem:[%s264 + $0x590] sm:$0xf] %vm6189, %v6033
      %6547 = vst.msk [vmem:[%s264 + $0x594] sm:$0xf] %vm6189, %v6034
      %6548 = vst.msk [vmem:[%s264 + $0x598] sm:$0xf] %vm6189, %v6035
      %6549 = vst.msk [vmem:[%s264 + $0x59c] sm:$0xf] %vm6189, %v6036
      %6550 = vst.msk [vmem:[%s264 + $0x5a0] sm:$0xf] %vm6189, %v6037
      %6551 = vst.msk [vmem:[%s264 + $0x5a4] sm:$0xf] %vm6189, %v6038
      %6552 = vst.msk [vmem:[%s264 + $0x5a8] sm:$0xf] %vm6189, %v6039
      %6553 = vst.msk [vmem:[%s264 + $0x5ac] sm:$0xf] %vm6189, %v6040
      %6554 = vst.msk [vmem:[%s264 + $0x5b0] sm:$0xf] %vm6189, %v6041
      %6555 = vst.msk [vmem:[%s264 + $0x5b4] sm:$0xf] %vm6189, %v6042
      %6556 = vst.msk [vmem:[%s264 + $0x5b8] sm:$0xf] %vm6189, %v6043
      %6557 = vst.msk [vmem:[%s264 + $0x5bc] sm:$0xf] %vm6189, %v6044
      %6558 = vst.msk [vmem:[%s264 + $0x5c0] sm:$0xf] %vm6189, %v6045
      %6559 = vst.msk [vmem:[%s264 + $0x5c4] sm:$0xf] %vm6189, %v6046
      %6560 = vst.msk [vmem:[%s264 + $0x5c8] sm:$0xf] %vm6189, %v6047
      %6561 = vst.msk [vmem:[%s264 + $0x5cc] sm:$0xf] %vm6189, %v6048
      %6562 = vst.msk [vmem:[%s264 + $0x5d0] sm:$0xf] %vm6189, %v6049
      %6563 = vst.msk [vmem:[%s264 + $0x5d4] sm:$0xf] %vm6189, %v6050
      %6564 = vst.msk [vmem:[%s264 + $0x5d8] sm:$0xf] %vm6189, %v6051
      %6565 = vst.msk [vmem:[%s264 + $0x5dc] sm:$0xf] %vm6189, %v6052
      %6566 = vst.msk [vmem:[%s264 + $0x5e0] sm:$0xf] %vm6189, %v6053
      %6567 = vst.msk [vmem:[%s264 + $0x5e4] sm:$0xf] %vm6189, %v6054
      %6568 = vst.msk [vmem:[%s264 + $0x5e8] sm:$0xf] %vm6189, %v6055
      %6569 = vst.msk [vmem:[%s264 + $0x5ec] sm:$0xf] %vm6189, %v6056
      %6570 = vst.msk [vmem:[%s264 + $0x5f0] sm:$0xf] %vm6189, %v6057
      %6571 = vst.msk [vmem:[%s264 + $0x5f4] sm:$0xf] %vm6189, %v6058
      %6572 = vst.msk [vmem:[%s264 + $0x5f8] sm:$0xf] %vm6189, %v6059
      %6573 = vst.msk [vmem:[%s264 + $0x5fc] sm:$0xf] %vm6189, %v6060
      %6574 = vst.msk [vmem:[%s264 + $0x600] sm:$0xf] %vm6189, %v6061
      %6575 = vst.msk [vmem:[%s264 + $0x604] sm:$0xf] %vm6189, %v6062
      %6576 = vst.msk [vmem:[%s264 + $0x608] sm:$0xf] %vm6189, %v6063
      %6577 = vst.msk [vmem:[%s264 + $0x60c] sm:$0xf] %vm6189, %v6064
      %6578 = vst.msk [vmem:[%s264 + $0x610] sm:$0xf] %vm6189, %v6065
      %6579 = vst.msk [vmem:[%s264 + $0x614] sm:$0xf] %vm6189, %v6066
      %6580 = vst.msk [vmem:[%s264 + $0x618] sm:$0xf] %vm6189, %v6067
      %6581 = vst.msk [vmem:[%s264 + $0x61c] sm:$0xf] %vm6189, %v6068
      %6582 = vst.msk [vmem:[%s264 + $0x620] sm:$0xf] %vm6189, %v6069
      %6583 = vst.msk [vmem:[%s264 + $0x624] sm:$0xf] %vm6189, %v6070
      %6584 = vst.msk [vmem:[%s264 + $0x628] sm:$0xf] %vm6189, %v6071
      %6585 = vst.msk [vmem:[%s264 + $0x62c] sm:$0xf] %vm6189, %v6072
      %6586 = vst.msk [vmem:[%s264 + $0x630] sm:$0xf] %vm6189, %v6073
      %6587 = vst.msk [vmem:[%s264 + $0x634] sm:$0xf] %vm6189, %v6074
      %6588 = vst.msk [vmem:[%s264 + $0x638] sm:$0xf] %vm6189, %v6075
      %6589 = vst.msk [vmem:[%s264 + $0x63c] sm:$0xf] %vm6189, %v6076
      %6590 = vst.msk [vmem:[%s264 + $0x640] sm:$0xf] %vm6189, %v6077
      %6591 = vst.msk [vmem:[%s264 + $0x644] sm:$0xf] %vm6189, %v6078
      %6592 = vst.msk [vmem:[%s264 + $0x648] sm:$0xf] %vm6189, %v6079
      %6593 = vst.msk [vmem:[%s264 + $0x64c] sm:$0xf] %vm6189, %v6080
      %6594 = vst.msk [vmem:[%s264 + $0x650] sm:$0xf] %vm6189, %v6081
      %6595 = vst.msk [vmem:[%s264 + $0x654] sm:$0xf] %vm6189, %v6082
      %6596 = vst.msk [vmem:[%s264 + $0x658] sm:$0xf] %vm6189, %v6083
      %6597 = vst.msk [vmem:[%s264 + $0x65c] sm:$0xf] %vm6189, %v6084
      %6598 = vst.msk [vmem:[%s264 + $0x660] sm:$0xf] %vm6189, %v6085
      %6599 = vst.msk [vmem:[%s264 + $0x664] sm:$0xf] %vm6189, %v6086
      %6600 = vst.msk [vmem:[%s264 + $0x668] sm:$0xf] %vm6189, %v6087
      %6601 = vst.msk [vmem:[%s264 + $0x66c] sm:$0xf] %vm6189, %v6088
      %6602 = vst.msk [vmem:[%s264 + $0x670] sm:$0xf] %vm6189, %v6089
      %6603 = vst.msk [vmem:[%s264 + $0x674] sm:$0xf] %vm6189, %v6090
      %6604 = vst.msk [vmem:[%s264 + $0x678] sm:$0xf] %vm6189, %v6091
      %6605 = vst.msk [vmem:[%s264 + $0x67c] sm:$0xf] %vm6189, %v6092
      %6606 = vst.msk [vmem:[%s264 + $0x680] sm:$0xf] %vm6189, %v6093
      %6607 = vst.msk [vmem:[%s264 + $0x684] sm:$0xf] %vm6189, %v6094
      %6608 = vst.msk [vmem:[%s264 + $0x688] sm:$0xf] %vm6189, %v6095
      %6609 = vst.msk [vmem:[%s264 + $0x68c] sm:$0xf] %vm6189, %v6096
      %6610 = vst.msk [vmem:[%s264 + $0x690] sm:$0xf] %vm6189, %v6097
      %6611 = vst.msk [vmem:[%s264 + $0x694] sm:$0xf] %vm6189, %v6098
      %6612 = vst.msk [vmem:[%s264 + $0x698] sm:$0xf] %vm6189, %v6099
      %6613 = vst.msk [vmem:[%s264 + $0x69c] sm:$0xf] %vm6189, %v6100
      %6614 = vst.msk [vmem:[%s264 + $0x6a0] sm:$0xf] %vm6189, %v6101
      %6615 = vst.msk [vmem:[%s264 + $0x6a4] sm:$0xf] %vm6189, %v6102
      %6616 = vst.msk [vmem:[%s264 + $0x6a8] sm:$0xf] %vm6189, %v6103
      %6617 = vst.msk [vmem:[%s264 + $0x6ac] sm:$0xf] %vm6189, %v6104
      %6618 = vst.msk [vmem:[%s264 + $0x6b0] sm:$0xf] %vm6189, %v6105
      %6619 = vst.msk [vmem:[%s264 + $0x6b4] sm:$0xf] %vm6189, %v6106
      %6620 = vst.msk [vmem:[%s264 + $0x6b8] sm:$0xf] %vm6189, %v6107
      %6621 = vst.msk [vmem:[%s264 + $0x6bc] sm:$0xf] %vm6189, %v6108
      %6622 = vst.msk [vmem:[%s264 + $0x6c0] sm:$0xf] %vm6189, %v6109
      %6623 = vst.msk [vmem:[%s264 + $0x6c4] sm:$0xf] %vm6189, %v6110
      %6624 = vst.msk [vmem:[%s264 + $0x6c8] sm:$0xf] %vm6189, %v6111
      %6625 = vst.msk [vmem:[%s264 + $0x6cc] sm:$0xf] %vm6189, %v6112
      %6626 = vst.msk [vmem:[%s264 + $0x6d0] sm:$0xf] %vm6189, %v6113
      %6627 = vst.msk [vmem:[%s264 + $0x6d4] sm:$0xf] %vm6189, %v6114
      %6628 = vst.msk [vmem:[%s264 + $0x6d8] sm:$0xf] %vm6189, %v6115
      %6629 = vst.msk [vmem:[%s264 + $0x6dc] sm:$0xf] %vm6189, %v6116
      %6630 = vst.msk [vmem:[%s264 + $0x6e0] sm:$0xf] %vm6189, %v6117
      %6631 = vst.msk [vmem:[%s264 + $0x6e4] sm:$0xf] %vm6189, %v6118
      %6632 = vst.msk [vmem:[%s264 + $0x6e8] sm:$0xf] %vm6189, %v6119
      %6633 = vst.msk [vmem:[%s264 + $0x6ec] sm:$0xf] %vm6189, %v6120
      %6634 = vst.msk [vmem:[%s264 + $0x6f0] sm:$0xf] %vm6189, %v6121
      %6635 = vst.msk [vmem:[%s264 + $0x6f4] sm:$0xf] %vm6189, %v6122
      %6636 = vst.msk [vmem:[%s264 + $0x6f8] sm:$0xf] %vm6189, %v6123
      %6637 = vst.msk [vmem:[%s264 + $0x6fc] sm:$0xf] %vm6189, %v6124
      %6638 = vst.msk [vmem:[%s264 + $0x700] sm:$0xf] %vm6189, %v6125
      %6639 = vst.msk [vmem:[%s264 + $0x704] sm:$0xf] %vm6189, %v6126
      %6640 = vst.msk [vmem:[%s264 + $0x708] sm:$0xf] %vm6189, %v6127
      %6641 = vst.msk [vmem:[%s264 + $0x70c] sm:$0xf] %vm6189, %v6128
      %6642 = vst.msk [vmem:[%s264 + $0x710] sm:$0xf] %vm6189, %v6129
      %6643 = vst.msk [vmem:[%s264 + $0x714] sm:$0xf] %vm6189, %v6130
      %6644 = vst.msk [vmem:[%s264 + $0x718] sm:$0xf] %vm6189, %v6131
      %6645 = vst.msk [vmem:[%s264 + $0x71c] sm:$0xf] %vm6189, %v6132
      %6646 = vst.msk [vmem:[%s264 + $0x720] sm:$0xf] %vm6189, %v6133
      %6647 = vst.msk [vmem:[%s264 + $0x724] sm:$0xf] %vm6189, %v6134
      %6648 = vst.msk [vmem:[%s264 + $0x728] sm:$0xf] %vm6189, %v6135
      %6649 = vst.msk [vmem:[%s264 + $0x72c] sm:$0xf] %vm6189, %v6136
      %6650 = vst.msk [vmem:[%s264 + $0x730] sm:$0xf] %vm6189, %v6137
      %6651 = vst.msk [vmem:[%s264 + $0x734] sm:$0xf] %vm6189, %v6138
      %6652 = vst.msk [vmem:[%s264 + $0x738] sm:$0xf] %vm6189, %v6139
      %6653 = vst.msk [vmem:[%s264 + $0x73c] sm:$0xf] %vm6189, %v6140
      %6654 = vst.msk [vmem:[%s264 + $0x740] sm:$0xf] %vm6189, %v6141
      %6655 = vst.msk [vmem:[%s264 + $0x744] sm:$0xf] %vm6189, %v6142
      %6656 = vst.msk [vmem:[%s264 + $0x748] sm:$0xf] %vm6189, %v6143
      %6657 = vst.msk [vmem:[%s264 + $0x74c] sm:$0xf] %vm6189, %v6144
      %6658 = vst.msk [vmem:[%s264 + $0x750] sm:$0xf] %vm6189, %v6145
      %6659 = vst.msk [vmem:[%s264 + $0x754] sm:$0xf] %vm6189, %v6146
      %6660 = vst.msk [vmem:[%s264 + $0x758] sm:$0xf] %vm6189, %v6147
      %6661 = vst.msk [vmem:[%s264 + $0x75c] sm:$0xf] %vm6189, %v6148
      %6662 = vst.msk [vmem:[%s264 + $0x760] sm:$0xf] %vm6189, %v6149
      %6663 = vst.msk [vmem:[%s264 + $0x764] sm:$0xf] %vm6189, %v6150
      %6664 = vst.msk [vmem:[%s264 + $0x768] sm:$0xf] %vm6189, %v6151
      %6665 = vst.msk [vmem:[%s264 + $0x76c] sm:$0xf] %vm6189, %v6152
      %6666 = vst.msk [vmem:[%s264 + $0x770] sm:$0xf] %vm6189, %v6153
      %6667 = vst.msk [vmem:[%s264 + $0x774] sm:$0xf] %vm6189, %v6154
      %6668 = vst.msk [vmem:[%s264 + $0x778] sm:$0xf] %vm6189, %v6155
      %6669 = vst.msk [vmem:[%s264 + $0x77c] sm:$0xf] %vm6189, %v6156
      %6670 = vst.msk [vmem:[%s264 + $0x780] sm:$0xf] %vm6189, %v6157
      %6671 = vst.msk [vmem:[%s264 + $0x784] sm:$0xf] %vm6189, %v6158
      %6672 = vst.msk [vmem:[%s264 + $0x788] sm:$0xf] %vm6189, %v6159
      %6673 = vst.msk [vmem:[%s264 + $0x78c] sm:$0xf] %vm6189, %v6160
      %6674 = vst.msk [vmem:[%s264 + $0x790] sm:$0xf] %vm6189, %v6161
      %6675 = vst.msk [vmem:[%s264 + $0x794] sm:$0xf] %vm6189, %v6162
      %6676 = vst.msk [vmem:[%s264 + $0x798] sm:$0xf] %vm6189, %v6163
      %6677 = vst.msk [vmem:[%s264 + $0x79c] sm:$0xf] %vm6189, %v6164
      %6678 = vst.msk [vmem:[%s264 + $0x7a0] sm:$0xf] %vm6189, %v6165
      %6679 = vst.msk [vmem:[%s264 + $0x7a4] sm:$0xf] %vm6189, %v6166
      %6680 = vst.msk [vmem:[%s264 + $0x7a8] sm:$0xf] %vm6189, %v6167
      %6681 = vst.msk [vmem:[%s264 + $0x7ac] sm:$0xf] %vm6189, %v6168
      %6682 = vst.msk [vmem:[%s264 + $0x7b0] sm:$0xf] %vm6189, %v6169
      %6683 = vst.msk [vmem:[%s264 + $0x7b4] sm:$0xf] %vm6189, %v6170
      %6684 = vst.msk [vmem:[%s264 + $0x7b8] sm:$0xf] %vm6189, %v6171
      %6685 = vst.msk [vmem:[%s264 + $0x7bc] sm:$0xf] %vm6189, %v6172
      %6686 = vst.msk [vmem:[%s264 + $0x7c0] sm:$0xf] %vm6189, %v6173
      %6687 = vst.msk [vmem:[%s264 + $0x7c4] sm:$0xf] %vm6189, %v6174
      %6688 = vst.msk [vmem:[%s264 + $0x7c8] sm:$0xf] %vm6189, %v6175
      %6689 = vst.msk [vmem:[%s264 + $0x7cc] sm:$0xf] %vm6189, %v6176
      %6690 = vst.msk [vmem:[%s264 + $0x7d0] sm:$0xf] %vm6189, %v6177
      %6691 = vst.msk [vmem:[%s264 + $0x7d4] sm:$0xf] %vm6189, %v6178
      %6692 = vst.msk [vmem:[%s264 + $0x7d8] sm:$0xf] %vm6189, %v6179
      %6693 = vst.msk [vmem:[%s264 + $0x7dc] sm:$0xf] %vm6189, %v6180
      %6694 = vst.msk [vmem:[%s264 + $0x7e0] sm:$0xf] %vm6189, %v6181
      %6695 = vst.msk [vmem:[%s264 + $0x7e4] sm:$0xf] %vm6189, %v6182
      %6696 = vst.msk [vmem:[%s264 + $0x7e8] sm:$0xf] %vm6189, %v6183
      %6697 = vst.msk [vmem:[%s264 + $0x7ec] sm:$0xf] %vm6189, %v6184
      %6698 = vst.msk [vmem:[%s264 + $0x7f0] sm:$0xf] %vm6189, %v6185
      %6699 = vst.msk [vmem:[%s264 + $0x7f4] sm:$0xf] %vm6189, %v6186
      %6700 = vst.msk [vmem:[%s264 + $0x7f8] sm:$0xf] %vm6189, %v6187
      %6701 = vst.msk [vmem:[%s264 + $0x7fc] sm:$0xf] %vm6189, %v6188
      %s6702 = smul.u32 512, %s19
      %p6703 = scmp.lt.s32.totalorder %s6702, 4095
      %s6704 = scalar_select %p6703, %s6702, 4095
      %p6705 = scmp.lt.s32.totalorder %s20, 0
      %s6706 = scalar_select %p6705, %s20, 0
      %s6707 = sadd.s32 %s6706, %s6704
      %s6708 = smul.addr %s6707, 4
      %s6709 = scalar_lea.vmem %s4, %s6708
      // Predicated region
      $region37: #{tpu_custom_call.1} parent=35 // pred_check
        %p6710 = pneg %p151
      $region38: #{tpu_custom_call.1} parent=35 // pred_check_branch
        %6712 = sbr.rel (%p6710) target = $region40
      $region39: #{tpu_custom_call.1} parent=35 // pred_region
        %s6713 = smul.u32 512, %s19
      $region40: #{tpu_custom_call.1} parent=35 // pred_fallthru
        _
    $region36: #{tpu_custom_call.1} parent=5 // pred_fallthru
      _
    %p6714 = scmp.le.s32.totalorder 2, %s10
    // Predicated region
    $region41: #{tpu_custom_call.1} parent=5 // pred_check
      %p6715 = pneg %p6714
    $region42: #{tpu_custom_call.1} parent=5 // pred_check_branch
      %6717 = sbr.rel (%p6715) target = $region44
    $region43: #{tpu_custom_call.1} parent=5 // pred_region
      %s6718 = ssub.s32 %s10, 2
      // Predicated region
      $region45: #{tpu_custom_call.1} parent=43 // pred_check
        %p6719 = pneg %p157
      $region46: #{tpu_custom_call.1} parent=43 // pred_check_branch
        %6721 = sbr.rel (%p6719) target = $region48
      $region47: #{tpu_custom_call.1} parent=43 // pred_region
        %s6722 = smul.u32 512, %s21
        %p6723 = scmp.lt.s32.totalorder %s6722, 4095
        %s6724 = scalar_select %p6723, %s6722, 4095
        %p6725 = scmp.lt.s32.totalorder %s22, 0
        %s6726 = scalar_select %p6725, %s22, 0
        %s6727 = sadd.s32 %s6726, %s6724
        %s6728 = smul.addr %s6727, 4
        %s6729 = scalar_lea.vmem %s4, %s6728
      $region48: #{tpu_custom_call.1} parent=43 // pred_fallthru
        _
    $region44: #{tpu_custom_call.1} parent=5 // pred_fallthru
      _
  $region6: #{tpu_custom_call.1} parent=0 // loop_footer
    %s14 = sadd.s32 1, %s10
  $region7: #{tpu_custom_call.1} parent=0 // loop_footer_branch
    %9 = sbr.rel target = $region3
  $region8: #{tpu_custom_call.1} parent=0 // loop_exit
    _

</llo_original>
